<compile_context>
chip_gen: v5e
topology: v5e:2x2
jax: 0.10.0
libtpu: 0.0.40
codegen_flags: <defaults>
</compile_context>

<pallas_src>
import jax
import jax.numpy as jnp
from jax import lax
from jax.experimental import pallas as pl
from jax.experimental.pallas import tpu as pltpu

_LANE = 128      # vreg lane width
_SUBLANE = 8     # f32 sublane count


def _round_up(x, m):
    return (x + m - 1) // m * m


def _pick_vmem_limit_bytes():
    """Generation-aware scoped-VMEM budget: ~75% of physical, capped at 100 MiB.

    v5e/v6e (128 MiB physical) -> 96 MiB; v7x (64 MiB per TC) -> 48 MiB.
    """
    try:
        cap = pltpu.get_tpu_info().vmem_capacity_bytes
    except Exception:
        cap = 64 << 20            # conservative fallback
    return int(min(cap * 3 // 4, 100 << 20))


# ------------------------------ fused kernel ---------------------------------
def _make_fused_lstm_kernel(num_layers, seq_chunk, batch_p):
    """Kernel for one sequence chunk: num_layers x LSTM -> Linear, all in VMEM."""
    SC, B = seq_chunk, batch_p
    unroll = max(1, min(SC, 8))   # partial unroll: LLO visibility w/o vreg blowup

    def kernel(*refs):
        x_ref = refs[0]                         # (SC*B, Din)    f32  chunk
        w_refs = refs[1:1 + 3 * num_layers]     # per layer: w_ih_t, w_hh_t, bias
        fc_w_ref = refs[1 + 3 * num_layers]     # (Hp, Op)       bf16
        fc_b_ref = refs[2 + 3 * num_layers]     # (1, Op)        f32
        y_ref = refs[3 + 3 * num_layers]        # (SC*B, Op)     f32  chunk
        xp_scr = refs[4 + 3 * num_layers]       # (SC*B, 4*Hp)   f32  per-chunk
        hseq_scr = refs[5 + 3 * num_layers]     # (SC*B, Hp)     f32  per-chunk
        h_scr = refs[6 + 3 * num_layers]        # (L, B, Hp)     f32  persistent
        c_scr = refs[7 + 3 * num_layers]        # (L, B, Hp)     f32  persistent

        Hp = hseq_scr.shape[-1]

        # Zero the recurrent state once, at the first sequence chunk.
        @pl.when(pl.program_id(0) == 0)
        def _init_state():
            h_scr[...] = jnp.zeros_like(h_scr)
            c_scr[...] = jnp.zeros_like(c_scr)

        def run_layer(layer, inp_bf16):
            w_ih_ref = w_refs[3 * layer]        # (Din_l, 4*Hp)  bf16
            w_hh_ref = w_refs[3 * layer + 1]    # (Hp, 4*Hp)     bf16
            b_ref = w_refs[3 * layer + 2]       # (1, 4*Hp)      f32

            # (1) Hoisted input projection: one bf16 MXU GEMM over the whole
            #     chunk, f32 accumulation, bias folded in once.
            xp_scr[...] = (
                jnp.dot(inp_bf16, w_ih_ref[...],
                        preferred_element_type=jnp.float32)
                + b_ref[...]
            )

            # (2) Serial recurrence: only h @ W_hh + f32 gate math per step.
            def step(t, carry):
                h, c = carry
                row = pl.multiple_of(t * B, B)   # sublane-aligned dynamic start
                gates = xp_scr[pl.ds(row, B), :] + jnp.dot(
                    h.astype(jnp.bfloat16), w_hh_ref[...],
                    preferred_element_type=jnp.float32)
                # PyTorch gate order i, f, g, o; each slice is 128-lane aligned
                # because Hp is a multiple of 128 (no XLU permutes).
                i_g = jax.nn.sigmoid(gates[:, 0 * Hp:1 * Hp])
                f_g = jax.nn.sigmoid(gates[:, 1 * Hp:2 * Hp])
                g_g = jnp.tanh(gates[:, 2 * Hp:3 * Hp])
                o_g = jax.nn.sigmoid(gates[:, 3 * Hp:4 * Hp])
                c_new = f_g * c + i_g * g_g
                h_new = o_g * jnp.tanh(c_new)
                hseq_scr[pl.ds(row, B), :] = h_new   # lane-dense store
                return h_new, c_new

            h_fin, c_fin = lax.fori_loop(
                0, SC, step, (h_scr[layer], c_scr[layer]), unroll=unroll)
            # Carry recurrent state to the next sequence chunk.
            h_scr[layer] = h_fin
            c_scr[layer] = c_fin
            # Hidden sequence of this layer as bf16 operand for the next GEMM.
            return hseq_scr[...].astype(jnp.bfloat16)

        h = x_ref[...].astype(jnp.bfloat16)      # bf16 cast done in VMEM
        for l in range(num_layers):
            h = run_layer(l, h)

        # Fused FC head: (SC*B, Hp) @ (Hp, Op) + b, single unmasked output store.
        y_ref[...] = (
            jnp.dot(h, fc_w_ref[...], preferred_element_type=jnp.float32)
            + fc_b_ref[...]
        ).astype(y_ref.dtype)

    return kernel


# --------------------------- parameter preparation ----------------------------
def init_params(key, input_size, hidden_size, output_size, num_layers):
    """Raw PyTorch-equivalent parameters (f32, PyTorch layouts & init)."""
    bound = 1.0 / (hidden_size ** 0.5)
    layers = []
    for layer in range(num_layers):
        din = input_size if layer == 0 else hidden_size
        key, k1, k2, k3, k4 = jax.random.split(key, 5)
        layers.append(dict(
            w_ih=jax.random.uniform(k1, (4 * hidden_size, din), jnp.float32, -bound, bound),
            w_hh=jax.random.uniform(k2, (4 * hidden_size, hidden_size), jnp.float32, -bound, bound),
            b_ih=jax.random.uniform(k3, (4 * hidden_size,), jnp.float32, -bound, bound),
            b_hh=jax.random.uniform(k4, (4 * hidden_size,), jnp.float32, -bound, bound),
        ))
    key, k5, k6 = jax.random.split(key, 3)
    fc_w = jax.random.uniform(k5, (output_size, hidden_size), jnp.float32, -bound, bound)
    fc_b = jax.random.uniform(k6, (output_size,), jnp.float32, -bound, bound)
    return {"layers": layers, "fc_w": fc_w, "fc_b": fc_b}


def _pack_gate_matrix_t(w, in_dim_p, hp):
    """PyTorch (4H, D) gate-major weight -> transposed, zero-padded (D_p, 4*Hp).

    Gate g occupies the lane block [g*Hp, (g+1)*Hp), so in-kernel gate slices
    are 128-lane aligned.  Zero padding keeps padded hidden units exactly zero.
    """
    four_h, d = w.shape
    h = four_h // 4
    out = jnp.zeros((4, hp, in_dim_p), w.dtype)
    out = out.at[:, :h, :d].set(w.reshape(4, h, d))
    return out.reshape(4 * hp, in_dim_p).T


def _pack_gate_bias(b_ih, b_hh, hp):
    b = b_ih + b_hh
    h = b.shape[0] // 4
    out = jnp.zeros((4, hp), b.dtype)
    out = out.at[:, :h].set(b.reshape(4, h))
    return out.reshape(1, 4 * hp)


def prepare_kernel_params(raw, input_size, hidden_size, output_size):
    # NOTE: Hp kept at 128-multiples; for production hidden sizes on v6e/v7x
    # prefer 256-multiples to fill the 256x256 MXU.
    hp = _round_up(hidden_size, _LANE)
    op = _round_up(output_size, _LANE)
    weights = []
    for l, layer in enumerate(raw["layers"]):
        # Layer 0 keeps the TRUE input width (no 16->128 padding of x in HBM);
        # deeper layers consume the padded hidden width.
        in_dim = input_size if l == 0 else hp
        w_ih = _pack_gate_matrix_t(layer["w_ih"], in_dim, hp).astype(jnp.bfloat16)
        w_hh = _pack_gate_matrix_t(layer["w_hh"], hp, hp).astype(jnp.bfloat16)
        bias = _pack_gate_bias(layer["b_ih"], layer["b_hh"], hp)   # f32
        weights.append((w_ih, w_hh, bias))
    fc_w = jnp.zeros((hp, op), jnp.float32)
    fc_w = fc_w.at[:hidden_size, :output_size].set(raw["fc_w"].T)
    fc_b = jnp.zeros((1, op), jnp.float32)
    fc_b = fc_b.at[0, :output_size].set(raw["fc_b"])
    return {
        "weights": weights,
        "fc_w": fc_w.astype(jnp.bfloat16),
        "fc_b": fc_b,
        "hp": hp, "op": op,
        "input_size": input_size,
        "hidden_size": hidden_size, "output_size": output_size,
    }


# ------------------------------- full forward ---------------------------------
def lstm_model_forward(x, kp, *, seq_chunk=None):
    """Equivalent of LSTM.forward: x (S, B, input_size) -> (S, B, output_size)."""
    S, B, din = x.shape
    hp, op = kp["hp"], kp["op"]
    num_layers = len(kp["weights"])
    bp = _round_up(B, _SUBLANE)

    # Sequence chunk: big enough to amortize per-grid-step overhead and keep
    # the hoisted-GEMM M dimension large, small enough to bound VMEM.
    if seq_chunk is None:
        seq_chunk = min(S, 32)
    seq_chunk = max(1, min(seq_chunk, S))
    s_pad = _round_up(S, seq_chunk)
    num_chunks = s_pad // seq_chunk

    # Only batch (->8 sublanes) and sequence-remainder padding in HBM; the
    # feature dim stays at its true width (no lane inflation of x in HBM).
    x_pad = jnp.zeros((s_pad, bp, din), jnp.float32).at[:S, :B, :].set(x)
    x2d = x_pad.reshape(s_pad * bp, din)

    args = [x2d]
    for (w_ih, w_hh, bias) in kp["weights"]:
        args += [w_ih, w_hh, bias]
    args += [kp["fc_w"], kp["fc_b"]]

    const = lambda i: (0, 0)                       # grid-invariant weights
    in_specs = [pl.BlockSpec((seq_chunk * bp, din), lambda i: (i, 0))]
    in_specs += [pl.BlockSpec(a.shape, const) for a in args[1:]]

    y2d = pl.pallas_call(
        _make_fused_lstm_kernel(num_layers, seq_chunk, bp),
        out_shape=jax.ShapeDtypeStruct((s_pad * bp, op), jnp.float32),
        grid_spec=pltpu.PrefetchScalarGridSpec(
            num_scalar_prefetch=0,
            grid=(num_chunks,),                    # pipelined sequence chunks
            in_specs=in_specs,
            out_specs=pl.BlockSpec((seq_chunk * bp, op), lambda i: (i, 0)),
            scratch_shapes=[
                pltpu.VMEM((seq_chunk * bp, 4 * hp), jnp.float32),  # per-chunk x-proj
                pltpu.VMEM((seq_chunk * bp, hp), jnp.float32),      # per-chunk hidden seq
                pltpu.VMEM((num_layers, bp, hp), jnp.float32),      # persistent h
                pltpu.VMEM((num_layers, bp, hp), jnp.float32),      # persistent c
            ],
        ),
        compiler_params=pltpu.CompilerParams(
            # Carries flow across chunks -> the grid axis must stay sequential.
            dimension_semantics=("arbitrary",),
            vmem_limit_bytes=_pick_vmem_limit_bytes(),
        ),
    )(*args)

    return y2d.reshape(s_pad, bp, op)[:S, :B, :kp["output_size"]]


# --------------------------- pure-JAX reference check --------------------------
def reference_forward(x, raw, matmul_dtype=jnp.float32):
    """PyTorch-equivalent math; matmul_dtype mirrors the kernel's bf16 operands."""
    def mm(a, b):
        return jnp.dot(a.astype(matmul_dtype), b.astype(matmul_dtype),
                       preferred_element_type=jnp.float32)

    S, B, _ = x.shape
    h_seq = x
    for layer in raw["layers"]:
        hsz = layer["w_hh"].shape[1]
        w_ih_t, w_hh_t = layer["w_ih"].T, layer["w_hh"].T
        b = (layer["b_ih"] + layer["b_hh"])[None, :]
        xp = (mm(h_seq.reshape(S * B, -1), w_ih_t) + b).reshape(S, B, 4 * hsz)

        def step(carry, xp_t, w_hh_t=w_hh_t, hsz=hsz):
            h, c = carry
            gates = xp_t + mm(h, w_hh_t)
            i = jax.nn.sigmoid(gates[:, 0:hsz])
            f = jax.nn.sigmoid(gates[:, hsz:2 * hsz])
            g = jnp.tanh(gates[:, 2 * hsz:3 * hsz])
            o = jax.nn.sigmoid(gates[:, 3 * hsz:4 * hsz])
            c = f * c + i * g
            h = o * jnp.tanh(c)
            return (h, c), h

        init = (jnp.zeros((B, hsz), jnp.float32), jnp.zeros((B, hsz), jnp.float32))
        _, h_seq = lax.scan(step, init, xp)

    hsz = h_seq.shape[-1]
    y = mm(h_seq.reshape(S * B, hsz), raw["fc_w"].T) + raw["fc_b"][None, :]
    return y.reshape(S, B, -1)


if __name__ == "__main__":
    SEQ, BATCH = 8, 4
    INPUT_SIZE, HIDDEN_SIZE, OUTPUT_SIZE, NUM_LAYERS = 16, 32, 1, 2

    key = jax.random.PRNGKey(0)
    key, xk = jax.random.split(key)
    x = jax.random.normal(xk, (SEQ, BATCH, INPUT_SIZE), jnp.float32)

    raw = init_params(key, INPUT_SIZE, HIDDEN_SIZE, OUTPUT_SIZE, NUM_LAYERS)
    kp = prepare_kernel_params(raw, INPUT_SIZE, HIDDEN_SIZE, OUTPUT_SIZE)

    # seq_chunk=4 -> grid=(2,) so the chunked pipeline and the persistent
    # (h, c) carry across grid steps are actually exercised.
    y = jax.block_until_ready(lstm_model_forward(x, kp, seq_chunk=4))
    assert y.shape == (SEQ, BATCH, OUTPUT_SIZE), y.shape

    # Precision-matched reference (bf16 matmul operands, f32 accumulate/state).
    y_ref_bf16 = reference_forward(x, raw, jnp.bfloat16)
    assert jnp.allclose(y, y_ref_bf16, atol=1e-3, rtol=1e-3), (
        "mismatch vs bf16-matched reference:",
        float(jnp.max(jnp.abs(y - y_ref_bf16))))

    # Loose sanity check vs the full-f32 PyTorch-equivalent math.
    y_ref_f32 = reference_forward(x, raw, jnp.float32)
    assert jnp.allclose(y, y_ref_f32, atol=1e-1, rtol=1e-1), (
        "mismatch vs f32 reference:",
        float(jnp.max(jnp.abs(y - y_ref_f32))))

    print("KERNEL_OK")
</pallas_src>

<mosaic_0001>
module attributes {stable_mosaic.version = 11 : i64} {
  func.func @kernel(%arg0: i32, %arg1: memref<32x16xf32, #tpu.memory_space<vmem>>, %arg2: memref<16x512xbf16, #tpu.memory_space<vmem>>, %arg3: memref<128x512xbf16, #tpu.memory_space<vmem>>, %arg4: memref<1x512xf32, #tpu.memory_space<vmem>>, %arg5: memref<128x512xbf16, #tpu.memory_space<vmem>>, %arg6: memref<128x512xbf16, #tpu.memory_space<vmem>>, %arg7: memref<1x512xf32, #tpu.memory_space<vmem>>, %arg8: memref<128x128xbf16, #tpu.memory_space<vmem>>, %arg9: memref<1x128xf32, #tpu.memory_space<vmem>>, %arg10: memref<32x128xf32, #tpu.memory_space<vmem>>, %arg11: memref<32x512xf32, #tpu.memory_space<vmem>>, %arg12: memref<32x128xf32, #tpu.memory_space<vmem>>, %arg13: memref<2x8x128xf32, #tpu.memory_space<vmem>>, %arg14: memref<2x8x128xf32, #tpu.memory_space<vmem>>) attributes {dimension_semantics = [#tpu.dimension_semantics<arbitrary>], iteration_bounds = array<i64: 2>, scalar_prefetch = 0 : i64, scratch_operands = 4 : i64, tpu.core_type = #tpu.core_type<tc>, window_params = [{transform_indices = @transform_0, window_bounds = array<i64: 32, 16>}, {pipeline_mode = #tpu.pipeline_mode<synchronous>, transform_indices = @transform_1, window_bounds = array<i64: 16, 512>}, {pipeline_mode = #tpu.pipeline_mode<synchronous>, transform_indices = @transform_2, window_bounds = array<i64: 128, 512>}, {pipeline_mode = #tpu.pipeline_mode<synchronous>, transform_indices = @transform_3, window_bounds = array<i64: 1, 512>}, {pipeline_mode = #tpu.pipeline_mode<synchronous>, transform_indices = @transform_4, window_bounds = array<i64: 128, 512>}, {pipeline_mode = #tpu.pipeline_mode<synchronous>, transform_indices = @transform_5, window_bounds = array<i64: 128, 512>}, {pipeline_mode = #tpu.pipeline_mode<synchronous>, transform_indices = @transform_6, window_bounds = array<i64: 1, 512>}, {pipeline_mode = #tpu.pipeline_mode<synchronous>, transform_indices = @transform_7, window_bounds = array<i64: 128, 128>}, {pipeline_mode = #tpu.pipeline_mode<synchronous>, transform_indices = @transform_8, window_bounds = array<i64: 1, 128>}, {transform_indices = @transform_9, window_bounds = array<i64: 32, 128>}]} {
    %c0_i32 = arith.constant 0 : i32
    %0 = arith.cmpi eq, %arg0, %c0_i32 : i32
    %1 = arith.extui %0 : i1 to i32
    %c0_i32_0 = arith.constant 0 : i32
    %2 = arith.cmpi ne, %1, %c0_i32_0 : i32
    scf.if %2 {
      %cst_126 = arith.constant 0.000000e+00 : f32
      %327 = vector.broadcast %cst_126 : f32 to vector<2x8x128xf32>
      %c0_127 = arith.constant 0 : index
      %c0_128 = arith.constant 0 : index
      %c0_129 = arith.constant 0 : index
      %328 = vector.load %arg13[%c0_127, %c0_128, %c0_129] : memref<2x8x128xf32, #tpu.memory_space<vmem>>, vector<2x8x128xf32>
      tpu.vector_store %arg13[%c0_127, %c0_128, %c0_129], %327 {strides = array<i32>} : memref<2x8x128xf32, #tpu.memory_space<vmem>>, vector<2x8x128xf32>,
      %cst_130 = arith.constant 0.000000e+00 : f32
      %329 = vector.broadcast %cst_130 : f32 to vector<2x8x128xf32>
      %c0_131 = arith.constant 0 : index
      %c0_132 = arith.constant 0 : index
      %c0_133 = arith.constant 0 : index
      %330 = vector.load %arg14[%c0_131, %c0_132, %c0_133] : memref<2x8x128xf32, #tpu.memory_space<vmem>>, vector<2x8x128xf32>
      tpu.vector_store %arg14[%c0_131, %c0_132, %c0_133], %329 {strides = array<i32>} : memref<2x8x128xf32, #tpu.memory_space<vmem>>, vector<2x8x128xf32>,
    } else {
    }
    %c0 = arith.constant 0 : index
    %c0_1 = arith.constant 0 : index
    %3 = vector.load %arg1[%c0, %c0_1] : memref<32x16xf32, #tpu.memory_space<vmem>>, vector<32x16xf32>
    %4 = arith.truncf %3 : vector<32x16xf32> to vector<32x16xbf16>
    %c0_2 = arith.constant 0 : index
    %c0_3 = arith.constant 0 : index
    %5 = vector.load %arg2[%c0_2, %c0_3] : memref<16x512xbf16, #tpu.memory_space<vmem>>, vector<16x512xbf16>
    %cst = arith.constant dense<0.000000e+00> : vector<32x512xf32>
    %6 = tpu.matmul %4, %5, %cst {dimension_numbers = #tpu.dot_dimension_numbers<[1], [0], [0], [1], [0, 0, 1, 1], [], []>} : vector<32x16xbf16>, vector<16x512xbf16>, vector<32x512xf32> -> vector<32x512xf32>
    %c0_4 = arith.constant 0 : index
    %c0_5 = arith.constant 0 : index
    %7 = vector.load %arg4[%c0_4, %c0_5] : memref<1x512xf32, #tpu.memory_space<vmem>>, vector<1x512xf32>
    %8 = vector.broadcast %7 : vector<1x512xf32> to vector<32x512xf32>
    %9 = arith.addf %6, %8 : vector<32x512xf32>
    %c0_6 = arith.constant 0 : index
    %c0_7 = arith.constant 0 : index
    %10 = vector.load %arg11[%c0_6, %c0_7] : memref<32x512xf32, #tpu.memory_space<vmem>>, vector<32x512xf32>
    tpu.vector_store %arg11[%c0_6, %c0_7], %9 {strides = array<i32>} : memref<32x512xf32, #tpu.memory_space<vmem>>, vector<32x512xf32>,
    %c0_8 = arith.constant 0 : index
    %c0_9 = arith.constant 0 : index
    %c0_10 = arith.constant 0 : index
    %11 = vector.load %arg13[%c0_8, %c0_9, %c0_10] : memref<2x8x128xf32, #tpu.memory_space<vmem>>, vector<1x8x128xf32>
    %12 = vector.shape_cast %11 : vector<1x8x128xf32> to vector<8x128xf32>
    %c0_11 = arith.constant 0 : index
    %c0_12 = arith.constant 0 : index
    %c0_13 = arith.constant 0 : index
    %13 = vector.load %arg14[%c0_11, %c0_12, %c0_13] : memref<2x8x128xf32, #tpu.memory_space<vmem>>, vector<1x8x128xf32>
    %14 = vector.shape_cast %13 : vector<1x8x128xf32> to vector<8x128xf32>
    %c0_i32_14 = arith.constant 0 : i32
    %c8_i32 = arith.constant 8 : i32
    %15 = arith.muli %c0_i32_14, %c8_i32 : i32
    %16 = tpu.assume_multiple %15, 8 : i32
    %17 = arith.index_cast %16 : i32 to index
    %c0_15 = arith.constant 0 : index
    %18 = vector.load %arg11[%17, %c0_15] : memref<32x512xf32, #tpu.memory_space<vmem>>, vector<8x512xf32>
    %19 = arith.truncf %12 : vector<8x128xf32> to vector<8x128xbf16>
    %c0_16 = arith.constant 0 : index
    %c0_17 = arith.constant 0 : index
    %20 = vector.load %arg3[%c0_16, %c0_17] : memref<128x512xbf16, #tpu.memory_space<vmem>>, vector<128x512xbf16>
    %cst_18 = arith.constant dense<0.000000e+00> : vector<8x512xf32>
    %21 = tpu.matmul %19, %20, %cst_18 {dimension_numbers = #tpu.dot_dimension_numbers<[1], [0], [0], [1], [0, 0, 1, 1], [], []>} : vector<8x128xbf16>, vector<128x512xbf16>, vector<8x512xf32> -> vector<8x512xf32>
    %22 = arith.addf %18, %21 : vector<8x512xf32>
    %23 = vector.extract_strided_slice %22 {offsets = [0, 0], sizes = [8, 128], strides = [1, 1]} : vector<8x512xf32> to vector<8x128xf32>
    %24 = arith.negf %23 : vector<8x128xf32>
    %25 = math.exp %24 : vector<8x128xf32>
    %cst_19 = arith.constant 1.000000e+00 : f32
    %26 = vector.broadcast %cst_19 : f32 to vector<8x128xf32>
    %27 = arith.addf %26, %25 : vector<8x128xf32>
    %28 = arith.divf %26, %27 : vector<8x128xf32>
    %29 = vector.extract_strided_slice %22 {offsets = [0, 128], sizes = [8, 128], strides = [1, 1]} : vector<8x512xf32> to vector<8x128xf32>
    %30 = arith.negf %29 : vector<8x128xf32>
    %31 = math.exp %30 : vector<8x128xf32>
    %cst_20 = arith.constant 1.000000e+00 : f32
    %32 = vector.broadcast %cst_20 : f32 to vector<8x128xf32>
    %33 = arith.addf %32, %31 : vector<8x128xf32>
    %34 = arith.divf %32, %33 : vector<8x128xf32>
    %35 = vector.extract_strided_slice %22 {offsets = [0, 256], sizes = [8, 128], strides = [1, 1]} : vector<8x512xf32> to vector<8x128xf32>
    %36 = math.tanh %35 : vector<8x128xf32>
    %37 = vector.extract_strided_slice %22 {offsets = [0, 384], sizes = [8, 128], strides = [1, 1]} : vector<8x512xf32> to vector<8x128xf32>
    %38 = arith.negf %37 : vector<8x128xf32>
    %39 = math.exp %38 : vector<8x128xf32>
    %cst_21 = arith.constant 1.000000e+00 : f32
    %40 = vector.broadcast %cst_21 : f32 to vector<8x128xf32>
    %41 = arith.addf %40, %39 : vector<8x128xf32>
    %42 = arith.divf %40, %41 : vector<8x128xf32>
    %43 = arith.mulf %34, %14 : vector<8x128xf32>
    %44 = arith.mulf %28, %36 : vector<8x128xf32>
    %45 = arith.addf %43, %44 : vector<8x128xf32>
    %46 = math.tanh %45 : vector<8x128xf32>
    %47 = arith.mulf %42, %46 : vector<8x128xf32>
    %48 = arith.index_cast %16 : i32 to index
    %c0_22 = arith.constant 0 : index
    %49 = vector.load %arg12[%48, %c0_22] : memref<32x128xf32, #tpu.memory_space<vmem>>, vector<8x128xf32>
    tpu.vector_store %arg12[%48, %c0_22], %47 {strides = array<i32>} : memref<32x128xf32, #tpu.memory_space<vmem>>, vector<8x128xf32>,
    %c1_i32 = arith.constant 1 : i32
    %c8_i32_23 = arith.constant 8 : i32
    %50 = arith.muli %c1_i32, %c8_i32_23 : i32
    %51 = tpu.assume_multiple %50, 8 : i32
    %52 = arith.index_cast %51 : i32 to index
    %c0_24 = arith.constant 0 : index
    %53 = vector.load %arg11[%52, %c0_24] : memref<32x512xf32, #tpu.memory_space<vmem>>, vector<8x512xf32>
    %54 = arith.truncf %47 : vector<8x128xf32> to vector<8x128xbf16>
    %c0_25 = arith.constant 0 : index
    %c0_26 = arith.constant 0 : index
    %55 = vector.load %arg3[%c0_25, %c0_26] : memref<128x512xbf16, #tpu.memory_space<vmem>>, vector<128x512xbf16>
    %cst_27 = arith.constant dense<0.000000e+00> : vector<8x512xf32>
    %56 = tpu.matmul %54, %55, %cst_27 {dimension_numbers = #tpu.dot_dimension_numbers<[1], [0], [0], [1], [0, 0, 1, 1], [], []>} : vector<8x128xbf16>, vector<128x512xbf16>, vector<8x512xf32> -> vector<8x512xf32>
    %57 = arith.addf %53, %56 : vector<8x512xf32>
    %58 = vector.extract_strided_slice %57 {offsets = [0, 0], sizes = [8, 128], strides = [1, 1]} : vector<8x512xf32> to vector<8x128xf32>
    %59 = arith.negf %58 : vector<8x128xf32>
    %60 = math.exp %59 : vector<8x128xf32>
    %cst_28 = arith.constant 1.000000e+00 : f32
    %61 = vector.broadcast %cst_28 : f32 to vector<8x128xf32>
    %62 = arith.addf %61, %60 : vector<8x128xf32>
    %63 = arith.divf %61, %62 : vector<8x128xf32>
    %64 = vector.extract_strided_slice %57 {offsets = [0, 128], sizes = [8, 128], strides = [1, 1]} : vector<8x512xf32> to vector<8x128xf32>
    %65 = arith.negf %64 : vector<8x128xf32>
    %66 = math.exp %65 : vector<8x128xf32>
    %cst_29 = arith.constant 1.000000e+00 : f32
    %67 = vector.broadcast %cst_29 : f32 to vector<8x128xf32>
    %68 = arith.addf %67, %66 : vector<8x128xf32>
    %69 = arith.divf %67, %68 : vector<8x128xf32>
    %70 = vector.extract_strided_slice %57 {offsets = [0, 256], sizes = [8, 128], strides = [1, 1]} : vector<8x512xf32> to vector<8x128xf32>
    %71 = math.tanh %70 : vector<8x128xf32>
    %72 = vector.extract_strided_slice %57 {offsets = [0, 384], sizes = [8, 128], strides = [1, 1]} : vector<8x512xf32> to vector<8x128xf32>
    %73 = arith.negf %72 : vector<8x128xf32>
    %74 = math.exp %73 : vector<8x128xf32>
    %cst_30 = arith.constant 1.000000e+00 : f32
    %75 = vector.broadcast %cst_30 : f32 to vector<8x128xf32>
    %76 = arith.addf %75, %74 : vector<8x128xf32>
    %77 = arith.divf %75, %76 : vector<8x128xf32>
    %78 = arith.mulf %69, %45 : vector<8x128xf32>
    %79 = arith.mulf %63, %71 : vector<8x128xf32>
    %80 = arith.addf %78, %79 : vector<8x128xf32>
    %81 = math.tanh %80 : vector<8x128xf32>
    %82 = arith.mulf %77, %81 : vector<8x128xf32>
    %83 = arith.index_cast %51 : i32 to index
    %c0_31 = arith.constant 0 : index
    %84 = vector.load %arg12[%83, %c0_31] : memref<32x128xf32, #tpu.memory_space<vmem>>, vector<8x128xf32>
    tpu.vector_store %arg12[%83, %c0_31], %82 {strides = array<i32>} : memref<32x128xf32, #tpu.memory_space<vmem>>, vector<8x128xf32>,
    %c2_i32 = arith.constant 2 : i32
    %c8_i32_32 = arith.constant 8 : i32
    %85 = arith.muli %c2_i32, %c8_i32_32 : i32
    %86 = tpu.assume_multiple %85, 8 : i32
    %87 = arith.index_cast %86 : i32 to index
    %c0_33 = arith.constant 0 : index
    %88 = vector.load %arg11[%87, %c0_33] : memref<32x512xf32, #tpu.memory_space<vmem>>, vector<8x512xf32>
    %89 = arith.truncf %82 : vector<8x128xf32> to vector<8x128xbf16>
    %c0_34 = arith.constant 0 : index
    %c0_35 = arith.constant 0 : index
    %90 = vector.load %arg3[%c0_34, %c0_35] : memref<128x512xbf16, #tpu.memory_space<vmem>>, vector<128x512xbf16>
    %cst_36 = arith.constant dense<0.000000e+00> : vector<8x512xf32>
    %91 = tpu.matmul %89, %90, %cst_36 {dimension_numbers = #tpu.dot_dimension_numbers<[1], [0], [0], [1], [0, 0, 1, 1], [], []>} : vector<8x128xbf16>, vector<128x512xbf16>, vector<8x512xf32> -> vector<8x512xf32>
    %92 = arith.addf %88, %91 : vector<8x512xf32>
    %93 = vector.extract_strided_slice %92 {offsets = [0, 0], sizes = [8, 128], strides = [1, 1]} : vector<8x512xf32> to vector<8x128xf32>
    %94 = arith.negf %93 : vector<8x128xf32>
    %95 = math.exp %94 : vector<8x128xf32>
    %cst_37 = arith.constant 1.000000e+00 : f32
    %96 = vector.broadcast %cst_37 : f32 to vector<8x128xf32>
    %97 = arith.addf %96, %95 : vector<8x128xf32>
    %98 = arith.divf %96, %97 : vector<8x128xf32>
    %99 = vector.extract_strided_slice %92 {offsets = [0, 128], sizes = [8, 128], strides = [1, 1]} : vector<8x512xf32> to vector<8x128xf32>
    %100 = arith.negf %99 : vector<8x128xf32>
    %101 = math.exp %100 : vector<8x128xf32>
    %cst_38 = arith.constant 1.000000e+00 : f32
    %102 = vector.broadcast %cst_38 : f32 to vector<8x128xf32>
    %103 = arith.addf %102, %101 : vector<8x128xf32>
    %104 = arith.divf %102, %103 : vector<8x128xf32>
    %105 = vector.extract_strided_slice %92 {offsets = [0, 256], sizes = [8, 128], strides = [1, 1]} : vector<8x512xf32> to vector<8x128xf32>
    %106 = math.tanh %105 : vector<8x128xf32>
    %107 = vector.extract_strided_slice %92 {offsets = [0, 384], sizes = [8, 128], strides = [1, 1]} : vector<8x512xf32> to vector<8x128xf32>
    %108 = arith.negf %107 : vector<8x128xf32>
    %109 = math.exp %108 : vector<8x128xf32>
    %cst_39 = arith.constant 1.000000e+00 : f32
    %110 = vector.broadcast %cst_39 : f32 to vector<8x128xf32>
    %111 = arith.addf %110, %109 : vector<8x128xf32>
    %112 = arith.divf %110, %111 : vector<8x128xf32>
    %113 = arith.mulf %104, %80 : vector<8x128xf32>
    %114 = arith.mulf %98, %106 : vector<8x128xf32>
    %115 = arith.addf %113, %114 : vector<8x128xf32>
    %116 = math.tanh %115 : vector<8x128xf32>
    %117 = arith.mulf %112, %116 : vector<8x128xf32>
    %118 = arith.index_cast %86 : i32 to index
    %c0_40 = arith.constant 0 : index
    %119 = vector.load %arg12[%118, %c0_40] : memref<32x128xf32, #tpu.memory_space<vmem>>, vector<8x128xf32>
    tpu.vector_store %arg12[%118, %c0_40], %117 {strides = array<i32>} : memref<32x128xf32, #tpu.memory_space<vmem>>, vector<8x128xf32>,
    %c3_i32 = arith.constant 3 : i32
    %c8_i32_41 = arith.constant 8 : i32
    %120 = arith.muli %c3_i32, %c8_i32_41 : i32
    %121 = tpu.assume_multiple %120, 8 : i32
    %122 = arith.index_cast %121 : i32 to index
    %c0_42 = arith.constant 0 : index
    %123 = vector.load %arg11[%122, %c0_42] : memref<32x512xf32, #tpu.memory_space<vmem>>, vector<8x512xf32>
    %124 = arith.truncf %117 : vector<8x128xf32> to vector<8x128xbf16>
    %c0_43 = arith.constant 0 : index
    %c0_44 = arith.constant 0 : index
    %125 = vector.load %arg3[%c0_43, %c0_44] : memref<128x512xbf16, #tpu.memory_space<vmem>>, vector<128x512xbf16>
    %cst_45 = arith.constant dense<0.000000e+00> : vector<8x512xf32>
    %126 = tpu.matmul %124, %125, %cst_45 {dimension_numbers = #tpu.dot_dimension_numbers<[1], [0], [0], [1], [0, 0, 1, 1], [], []>} : vector<8x128xbf16>, vector<128x512xbf16>, vector<8x512xf32> -> vector<8x512xf32>
    %127 = arith.addf %123, %126 : vector<8x512xf32>
    %128 = vector.extract_strided_slice %127 {offsets = [0, 0], sizes = [8, 128], strides = [1, 1]} : vector<8x512xf32> to vector<8x128xf32>
    %129 = arith.negf %128 : vector<8x128xf32>
    %130 = math.exp %129 : vector<8x128xf32>
    %cst_46 = arith.constant 1.000000e+00 : f32
    %131 = vector.broadcast %cst_46 : f32 to vector<8x128xf32>
    %132 = arith.addf %131, %130 : vector<8x128xf32>
    %133 = arith.divf %131, %132 : vector<8x128xf32>
    %134 = vector.extract_strided_slice %127 {offsets = [0, 128], sizes = [8, 128], strides = [1, 1]} : vector<8x512xf32> to vector<8x128xf32>
    %135 = arith.negf %134 : vector<8x128xf32>
    %136 = math.exp %135 : vector<8x128xf32>
    %cst_47 = arith.constant 1.000000e+00 : f32
    %137 = vector.broadcast %cst_47 : f32 to vector<8x128xf32>
    %138 = arith.addf %137, %136 : vector<8x128xf32>
    %139 = arith.divf %137, %138 : vector<8x128xf32>
    %140 = vector.extract_strided_slice %127 {offsets = [0, 256], sizes = [8, 128], strides = [1, 1]} : vector<8x512xf32> to vector<8x128xf32>
    %141 = math.tanh %140 : vector<8x128xf32>
    %142 = vector.extract_strided_slice %127 {offsets = [0, 384], sizes = [8, 128], strides = [1, 1]} : vector<8x512xf32> to vector<8x128xf32>
    %143 = arith.negf %142 : vector<8x128xf32>
    %144 = math.exp %143 : vector<8x128xf32>
    %cst_48 = arith.constant 1.000000e+00 : f32
    %145 = vector.broadcast %cst_48 : f32 to vector<8x128xf32>
    %146 = arith.addf %145, %144 : vector<8x128xf32>
    %147 = arith.divf %145, %146 : vector<8x128xf32>
    %148 = arith.mulf %139, %115 : vector<8x128xf32>
    %149 = arith.mulf %133, %141 : vector<8x128xf32>
    %150 = arith.addf %148, %149 : vector<8x128xf32>
    %151 = math.tanh %150 : vector<8x128xf32>
    %152 = arith.mulf %147, %151 : vector<8x128xf32>
    %153 = arith.index_cast %121 : i32 to index
    %c0_49 = arith.constant 0 : index
    %154 = vector.load %arg12[%153, %c0_49] : memref<32x128xf32, #tpu.memory_space<vmem>>, vector<8x128xf32>
    tpu.vector_store %arg12[%153, %c0_49], %152 {strides = array<i32>} : memref<32x128xf32, #tpu.memory_space<vmem>>, vector<8x128xf32>,
    %c4_i32 = arith.constant 4 : i32
    %c0_50 = arith.constant 0 : index
    %c0_51 = arith.constant 0 : index
    %c0_52 = arith.constant 0 : index
    %155 = vector.load %arg13[%c0_50, %c0_51, %c0_52] : memref<2x8x128xf32, #tpu.memory_space<vmem>>, vector<1x8x128xf32>
    %156 = vector.shape_cast %155 : vector<1x8x128xf32> to vector<8x128xf32>
    %157 = vector.shape_cast %152 : vector<8x128xf32> to vector<1x8x128xf32>
    tpu.vector_store %arg13[%c0_50, %c0_51, %c0_52], %157 {strides = array<i32>} : memref<2x8x128xf32, #tpu.memory_space<vmem>>, vector<1x8x128xf32>,
    %c0_53 = arith.constant 0 : index
    %c0_54 = arith.constant 0 : index
    %c0_55 = arith.constant 0 : index
    %158 = vector.load %arg14[%c0_53, %c0_54, %c0_55] : memref<2x8x128xf32, #tpu.memory_space<vmem>>, vector<1x8x128xf32>
    %159 = vector.shape_cast %158 : vector<1x8x128xf32> to vector<8x128xf32>
    %160 = vector.shape_cast %150 : vector<8x128xf32> to vector<1x8x128xf32>
    tpu.vector_store %arg14[%c0_53, %c0_54, %c0_55], %160 {strides = array<i32>} : memref<2x8x128xf32, #tpu.memory_space<vmem>>, vector<1x8x128xf32>,
    %c0_56 = arith.constant 0 : index
    %c0_57 = arith.constant 0 : index
    %161 = vector.load %arg12[%c0_56, %c0_57] : memref<32x128xf32, #tpu.memory_space<vmem>>, vector<32x128xf32>
    %162 = arith.truncf %161 : vector<32x128xf32> to vector<32x128xbf16>
    %c0_58 = arith.constant 0 : index
    %c0_59 = arith.constant 0 : index
    %163 = vector.load %arg5[%c0_58, %c0_59] : memref<128x512xbf16, #tpu.memory_space<vmem>>, vector<128x512xbf16>
    %cst_60 = arith.constant dense<0.000000e+00> : vector<32x512xf32>
    %164 = tpu.matmul %162, %163, %cst_60 {dimension_numbers = #tpu.dot_dimension_numbers<[1], [0], [0], [1], [0, 0, 1, 1], [], []>} : vector<32x128xbf16>, vector<128x512xbf16>, vector<32x512xf32> -> vector<32x512xf32>
    %c0_61 = arith.constant 0 : index
    %c0_62 = arith.constant 0 : index
    %165 = vector.load %arg7[%c0_61, %c0_62] : memref<1x512xf32, #tpu.memory_space<vmem>>, vector<1x512xf32>
    %166 = vector.broadcast %165 : vector<1x512xf32> to vector<32x512xf32>
    %167 = arith.addf %164, %166 : vector<32x512xf32>
    %c0_63 = arith.constant 0 : index
    %c0_64 = arith.constant 0 : index
    %168 = vector.load %arg11[%c0_63, %c0_64] : memref<32x512xf32, #tpu.memory_space<vmem>>, vector<32x512xf32>
    tpu.vector_store %arg11[%c0_63, %c0_64], %167 {strides = array<i32>} : memref<32x512xf32, #tpu.memory_space<vmem>>, vector<32x512xf32>,
    %c1 = arith.constant 1 : index
    %c0_65 = arith.constant 0 : index
    %c0_66 = arith.constant 0 : index
    %169 = vector.load %arg13[%c1, %c0_65, %c0_66] : memref<2x8x128xf32, #tpu.memory_space<vmem>>, vector<1x8x128xf32>
    %170 = vector.shape_cast %169 : vector<1x8x128xf32> to vector<8x128xf32>
    %c1_67 = arith.constant 1 : index
    %c0_68 = arith.constant 0 : index
    %c0_69 = arith.constant 0 : index
    %171 = vector.load %arg14[%c1_67, %c0_68, %c0_69] : memref<2x8x128xf32, #tpu.memory_space<vmem>>, vector<1x8x128xf32>
    %172 = vector.shape_cast %171 : vector<1x8x128xf32> to vector<8x128xf32>
    %c0_i32_70 = arith.constant 0 : i32
    %c8_i32_71 = arith.constant 8 : i32
    %173 = arith.muli %c0_i32_70, %c8_i32_71 : i32
    %174 = tpu.assume_multiple %173, 8 : i32
    %175 = arith.index_cast %174 : i32 to index
    %c0_72 = arith.constant 0 : index
    %176 = vector.load %arg11[%175, %c0_72] : memref<32x512xf32, #tpu.memory_space<vmem>>, vector<8x512xf32>
    %177 = arith.truncf %170 : vector<8x128xf32> to vector<8x128xbf16>
    %c0_73 = arith.constant 0 : index
    %c0_74 = arith.constant 0 : index
    %178 = vector.load %arg6[%c0_73, %c0_74] : memref<128x512xbf16, #tpu.memory_space<vmem>>, vector<128x512xbf16>
    %cst_75 = arith.constant dense<0.000000e+00> : vector<8x512xf32>
    %179 = tpu.matmul %177, %178, %cst_75 {dimension_numbers = #tpu.dot_dimension_numbers<[1], [0], [0], [1], [0, 0, 1, 1], [], []>} : vector<8x128xbf16>, vector<128x512xbf16>, vector<8x512xf32> -> vector<8x512xf32>
    %180 = arith.addf %176, %179 : vector<8x512xf32>
    %181 = vector.extract_strided_slice %180 {offsets = [0, 0], sizes = [8, 128], strides = [1, 1]} : vector<8x512xf32> to vector<8x128xf32>
    %182 = arith.negf %181 : vector<8x128xf32>
    %183 = math.exp %182 : vector<8x128xf32>
    %cst_76 = arith.constant 1.000000e+00 : f32
    %184 = vector.broadcast %cst_76 : f32 to vector<8x128xf32>
    %185 = arith.addf %184, %183 : vector<8x128xf32>
    %186 = arith.divf %184, %185 : vector<8x128xf32>
    %187 = vector.extract_strided_slice %180 {offsets = [0, 128], sizes = [8, 128], strides = [1, 1]} : vector<8x512xf32> to vector<8x128xf32>
    %188 = arith.negf %187 : vector<8x128xf32>
    %189 = math.exp %188 : vector<8x128xf32>
    %cst_77 = arith.constant 1.000000e+00 : f32
    %190 = vector.broadcast %cst_77 : f32 to vector<8x128xf32>
    %191 = arith.addf %190, %189 : vector<8x128xf32>
    %192 = arith.divf %190, %191 : vector<8x128xf32>
    %193 = vector.extract_strided_slice %180 {offsets = [0, 256], sizes = [8, 128], strides = [1, 1]} : vector<8x512xf32> to vector<8x128xf32>
    %194 = math.tanh %193 : vector<8x128xf32>
    %195 = vector.extract_strided_slice %180 {offsets = [0, 384], sizes = [8, 128], strides = [1, 1]} : vector<8x512xf32> to vector<8x128xf32>
    %196 = arith.negf %195 : vector<8x128xf32>
    %197 = math.exp %196 : vector<8x128xf32>
    %cst_78 = arith.constant 1.000000e+00 : f32
    %198 = vector.broadcast %cst_78 : f32 to vector<8x128xf32>
    %199 = arith.addf %198, %197 : vector<8x128xf32>
    %200 = arith.divf %198, %199 : vector<8x128xf32>
    %201 = arith.mulf %192, %172 : vector<8x128xf32>
    %202 = arith.mulf %186, %194 : vector<8x128xf32>
    %203 = arith.addf %201, %202 : vector<8x128xf32>
    %204 = math.tanh %203 : vector<8x128xf32>
    %205 = arith.mulf %200, %204 : vector<8x128xf32>
    %206 = arith.index_cast %174 : i32 to index
    %c0_79 = arith.constant 0 : index
    %207 = vector.load %arg12[%206, %c0_79] : memref<32x128xf32, #tpu.memory_space<vmem>>, vector<8x128xf32>
    tpu.vector_store %arg12[%206, %c0_79], %205 {strides = array<i32>} : memref<32x128xf32, #tpu.memory_space<vmem>>, vector<8x128xf32>,
    %c1_i32_80 = arith.constant 1 : i32
    %c8_i32_81 = arith.constant 8 : i32
    %208 = arith.muli %c1_i32_80, %c8_i32_81 : i32
    %209 = tpu.assume_multiple %208, 8 : i32
    %210 = arith.index_cast %209 : i32 to index
    %c0_82 = arith.constant 0 : index
    %211 = vector.load %arg11[%210, %c0_82] : memref<32x512xf32, #tpu.memory_space<vmem>>, vector<8x512xf32>
    %212 = arith.truncf %205 : vector<8x128xf32> to vector<8x128xbf16>
    %c0_83 = arith.constant 0 : index
    %c0_84 = arith.constant 0 : index
    %213 = vector.load %arg6[%c0_83, %c0_84] : memref<128x512xbf16, #tpu.memory_space<vmem>>, vector<128x512xbf16>
    %cst_85 = arith.constant dense<0.000000e+00> : vector<8x512xf32>
    %214 = tpu.matmul %212, %213, %cst_85 {dimension_numbers = #tpu.dot_dimension_numbers<[1], [0], [0], [1], [0, 0, 1, 1], [], []>} : vector<8x128xbf16>, vector<128x512xbf16>, vector<8x512xf32> -> vector<8x512xf32>
    %215 = arith.addf %211, %214 : vector<8x512xf32>
    %216 = vector.extract_strided_slice %215 {offsets = [0, 0], sizes = [8, 128], strides = [1, 1]} : vector<8x512xf32> to vector<8x128xf32>
    %217 = arith.negf %216 : vector<8x128xf32>
    %218 = math.exp %217 : vector<8x128xf32>
    %cst_86 = arith.constant 1.000000e+00 : f32
    %219 = vector.broadcast %cst_86 : f32 to vector<8x128xf32>
    %220 = arith.addf %219, %218 : vector<8x128xf32>
    %221 = arith.divf %219, %220 : vector<8x128xf32>
    %222 = vector.extract_strided_slice %215 {offsets = [0, 128], sizes = [8, 128], strides = [1, 1]} : vector<8x512xf32> to vector<8x128xf32>
    %223 = arith.negf %222 : vector<8x128xf32>
    %224 = math.exp %223 : vector<8x128xf32>
    %cst_87 = arith.constant 1.000000e+00 : f32
    %225 = vector.broadcast %cst_87 : f32 to vector<8x128xf32>
    %226 = arith.addf %225, %224 : vector<8x128xf32>
    %227 = arith.divf %225, %226 : vector<8x128xf32>
    %228 = vector.extract_strided_slice %215 {offsets = [0, 256], sizes = [8, 128], strides = [1, 1]} : vector<8x512xf32> to vector<8x128xf32>
    %229 = math.tanh %228 : vector<8x128xf32>
    %230 = vector.extract_strided_slice %215 {offsets = [0, 384], sizes = [8, 128], strides = [1, 1]} : vector<8x512xf32> to vector<8x128xf32>
    %231 = arith.negf %230 : vector<8x128xf32>
    %232 = math.exp %231 : vector<8x128xf32>
    %cst_88 = arith.constant 1.000000e+00 : f32
    %233 = vector.broadcast %cst_88 : f32 to vector<8x128xf32>
    %234 = arith.addf %233, %232 : vector<8x128xf32>
    %235 = arith.divf %233, %234 : vector<8x128xf32>
    %236 = arith.mulf %227, %203 : vector<8x128xf32>
    %237 = arith.mulf %221, %229 : vector<8x128xf32>
    %238 = arith.addf %236, %237 : vector<8x128xf32>
    %239 = math.tanh %238 : vector<8x128xf32>
    %240 = arith.mulf %235, %239 : vector<8x128xf32>
    %241 = arith.index_cast %209 : i32 to index
    %c0_89 = arith.constant 0 : index
    %242 = vector.load %arg12[%241, %c0_89] : memref<32x128xf32, #tpu.memory_space<vmem>>, vector<8x128xf32>
    tpu.vector_store %arg12[%241, %c0_89], %240 {strides = array<i32>} : memref<32x128xf32, #tpu.memory_space<vmem>>, vector<8x128xf32>,
    %c2_i32_90 = arith.constant 2 : i32
    %c8_i32_91 = arith.constant 8 : i32
    %243 = arith.muli %c2_i32_90, %c8_i32_91 : i32
    %244 = tpu.assume_multiple %243, 8 : i32
    %245 = arith.index_cast %244 : i32 to index
    %c0_92 = arith.constant 0 : index
    %246 = vector.load %arg11[%245, %c0_92] : memref<32x512xf32, #tpu.memory_space<vmem>>, vector<8x512xf32>
    %247 = arith.truncf %240 : vector<8x128xf32> to vector<8x128xbf16>
    %c0_93 = arith.constant 0 : index
    %c0_94 = arith.constant 0 : index
    %248 = vector.load %arg6[%c0_93, %c0_94] : memref<128x512xbf16, #tpu.memory_space<vmem>>, vector<128x512xbf16>
    %cst_95 = arith.constant dense<0.000000e+00> : vector<8x512xf32>
    %249 = tpu.matmul %247, %248, %cst_95 {dimension_numbers = #tpu.dot_dimension_numbers<[1], [0], [0], [1], [0, 0, 1, 1], [], []>} : vector<8x128xbf16>, vector<128x512xbf16>, vector<8x512xf32> -> vector<8x512xf32>
    %250 = arith.addf %246, %249 : vector<8x512xf32>
    %251 = vector.extract_strided_slice %250 {offsets = [0, 0], sizes = [8, 128], strides = [1, 1]} : vector<8x512xf32> to vector<8x128xf32>
    %252 = arith.negf %251 : vector<8x128xf32>
    %253 = math.exp %252 : vector<8x128xf32>
    %cst_96 = arith.constant 1.000000e+00 : f32
    %254 = vector.broadcast %cst_96 : f32 to vector<8x128xf32>
    %255 = arith.addf %254, %253 : vector<8x128xf32>
    %256 = arith.divf %254, %255 : vector<8x128xf32>
    %257 = vector.extract_strided_slice %250 {offsets = [0, 128], sizes = [8, 128], strides = [1, 1]} : vector<8x512xf32> to vector<8x128xf32>
    %258 = arith.negf %257 : vector<8x128xf32>
    %259 = math.exp %258 : vector<8x128xf32>
    %cst_97 = arith.constant 1.000000e+00 : f32
    %260 = vector.broadcast %cst_97 : f32 to vector<8x128xf32>
    %261 = arith.addf %260, %259 : vector<8x128xf32>
    %262 = arith.divf %260, %261 : vector<8x128xf32>
    %263 = vector.extract_strided_slice %250 {offsets = [0, 256], sizes = [8, 128], strides = [1, 1]} : vector<8x512xf32> to vector<8x128xf32>
    %264 = math.tanh %263 : vector<8x128xf32>
    %265 = vector.extract_strided_slice %250 {offsets = [0, 384], sizes = [8, 128], strides = [1, 1]} : vector<8x512xf32> to vector<8x128xf32>
    %266 = arith.negf %265 : vector<8x128xf32>
    %267 = math.exp %266 : vector<8x128xf32>
    %cst_98 = arith.constant 1.000000e+00 : f32
    %268 = vector.broadcast %cst_98 : f32 to vector<8x128xf32>
    %269 = arith.addf %268, %267 : vector<8x128xf32>
    %270 = arith.divf %268, %269 : vector<8x128xf32>
    %271 = arith.mulf %262, %238 : vector<8x128xf32>
    %272 = arith.mulf %256, %264 : vector<8x128xf32>
    %273 = arith.addf %271, %272 : vector<8x128xf32>
    %274 = math.tanh %273 : vector<8x128xf32>
    %275 = arith.mulf %270, %274 : vector<8x128xf32>
    %276 = arith.index_cast %244 : i32 to index
    %c0_99 = arith.constant 0 : index
    %277 = vector.load %arg12[%276, %c0_99] : memref<32x128xf32, #tpu.memory_space<vmem>>, vector<8x128xf32>
    tpu.vector_store %arg12[%276, %c0_99], %275 {strides = array<i32>} : memref<32x128xf32, #tpu.memory_space<vmem>>, vector<8x128xf32>,
    %c3_i32_100 = arith.constant 3 : i32
    %c8_i32_101 = arith.constant 8 : i32
    %278 = arith.muli %c3_i32_100, %c8_i32_101 : i32
    %279 = tpu.assume_multiple %278, 8 : i32
    %280 = arith.index_cast %279 : i32 to index
    %c0_102 = arith.constant 0 : index
    %281 = vector.load %arg11[%280, %c0_102] : memref<32x512xf32, #tpu.memory_space<vmem>>, vector<8x512xf32>
    %282 = arith.truncf %275 : vector<8x128xf32> to vector<8x128xbf16>
    %c0_103 = arith.constant 0 : index
    %c0_104 = arith.constant 0 : index
    %283 = vector.load %arg6[%c0_103, %c0_104] : memref<128x512xbf16, #tpu.memory_space<vmem>>, vector<128x512xbf16>
    %cst_105 = arith.constant dense<0.000000e+00> : vector<8x512xf32>
    %284 = tpu.matmul %282, %283, %cst_105 {dimension_numbers = #tpu.dot_dimension_numbers<[1], [0], [0], [1], [0, 0, 1, 1], [], []>} : vector<8x128xbf16>, vector<128x512xbf16>, vector<8x512xf32> -> vector<8x512xf32>
    %285 = arith.addf %281, %284 : vector<8x512xf32>
    %286 = vector.extract_strided_slice %285 {offsets = [0, 0], sizes = [8, 128], strides = [1, 1]} : vector<8x512xf32> to vector<8x128xf32>
    %287 = arith.negf %286 : vector<8x128xf32>
    %288 = math.exp %287 : vector<8x128xf32>
    %cst_106 = arith.constant 1.000000e+00 : f32
    %289 = vector.broadcast %cst_106 : f32 to vector<8x128xf32>
    %290 = arith.addf %289, %288 : vector<8x128xf32>
    %291 = arith.divf %289, %290 : vector<8x128xf32>
    %292 = vector.extract_strided_slice %285 {offsets = [0, 128], sizes = [8, 128], strides = [1, 1]} : vector<8x512xf32> to vector<8x128xf32>
    %293 = arith.negf %292 : vector<8x128xf32>
    %294 = math.exp %293 : vector<8x128xf32>
    %cst_107 = arith.constant 1.000000e+00 : f32
    %295 = vector.broadcast %cst_107 : f32 to vector<8x128xf32>
    %296 = arith.addf %295, %294 : vector<8x128xf32>
    %297 = arith.divf %295, %296 : vector<8x128xf32>
    %298 = vector.extract_strided_slice %285 {offsets = [0, 256], sizes = [8, 128], strides = [1, 1]} : vector<8x512xf32> to vector<8x128xf32>
    %299 = math.tanh %298 : vector<8x128xf32>
    %300 = vector.extract_strided_slice %285 {offsets = [0, 384], sizes = [8, 128], strides = [1, 1]} : vector<8x512xf32> to vector<8x128xf32>
    %301 = arith.negf %300 : vector<8x128xf32>
    %302 = math.exp %301 : vector<8x128xf32>
    %cst_108 = arith.constant 1.000000e+00 : f32
    %303 = vector.broadcast %cst_108 : f32 to vector<8x128xf32>
    %304 = arith.addf %303, %302 : vector<8x128xf32>
    %305 = arith.divf %303, %304 : vector<8x128xf32>
    %306 = arith.mulf %297, %273 : vector<8x128xf32>
    %307 = arith.mulf %291, %299 : vector<8x128xf32>
    %308 = arith.addf %306, %307 : vector<8x128xf32>
    %309 = math.tanh %308 : vector<8x128xf32>
    %310 = arith.mulf %305, %309 : vector<8x128xf32>
    %311 = arith.index_cast %279 : i32 to index
    %c0_109 = arith.constant 0 : index
    %312 = vector.load %arg12[%311, %c0_109] : memref<32x128xf32, #tpu.memory_space<vmem>>, vector<8x128xf32>
    tpu.vector_store %arg12[%311, %c0_109], %310 {strides = array<i32>} : memref<32x128xf32, #tpu.memory_space<vmem>>, vector<8x128xf32>,
    %c4_i32_110 = arith.constant 4 : i32
    %c1_111 = arith.constant 1 : index
    %c0_112 = arith.constant 0 : index
    %c0_113 = arith.constant 0 : index
    %313 = vector.load %arg13[%c1_111, %c0_112, %c0_113] : memref<2x8x128xf32, #tpu.memory_space<vmem>>, vector<1x8x128xf32>
    %314 = vector.shape_cast %313 : vector<1x8x128xf32> to vector<8x128xf32>
    %315 = vector.shape_cast %310 : vector<8x128xf32> to vector<1x8x128xf32>
    tpu.vector_store %arg13[%c1_111, %c0_112, %c0_113], %315 {strides = array<i32>} : memref<2x8x128xf32, #tpu.memory_space<vmem>>, vector<1x8x128xf32>,
    %c1_114 = arith.constant 1 : index
    %c0_115 = arith.constant 0 : index
    %c0_116 = arith.constant 0 : index
    %316 = vector.load %arg14[%c1_114, %c0_115, %c0_116] : memref<2x8x128xf32, #tpu.memory_space<vmem>>, vector<1x8x128xf32>
    %317 = vector.shape_cast %316 : vector<1x8x128xf32> to vector<8x128xf32>
    %318 = vector.shape_cast %308 : vector<8x128xf32> to vector<1x8x128xf32>
    tpu.vector_store %arg14[%c1_114, %c0_115, %c0_116], %318 {strides = array<i32>} : memref<2x8x128xf32, #tpu.memory_space<vmem>>, vector<1x8x128xf32>,
    %c0_117 = arith.constant 0 : index
    %c0_118 = arith.constant 0 : index
    %319 = vector.load %arg12[%c0_117, %c0_118] : memref<32x128xf32, #tpu.memory_space<vmem>>, vector<32x128xf32>
    %320 = arith.truncf %319 : vector<32x128xf32> to vector<32x128xbf16>
    %c0_119 = arith.constant 0 : index
    %c0_120 = arith.constant 0 : index
    %321 = vector.load %arg8[%c0_119, %c0_120] : memref<128x128xbf16, #tpu.memory_space<vmem>>, vector<128x128xbf16>
    %cst_121 = arith.constant dense<0.000000e+00> : vector<32x128xf32>
    %322 = tpu.matmul %320, %321, %cst_121 {dimension_numbers = #tpu.dot_dimension_numbers<[1], [0], [0], [1], [0, 0, 1, 1], [], []>} : vector<32x128xbf16>, vector<128x128xbf16>, vector<32x128xf32> -> vector<32x128xf32>
    %c0_122 = arith.constant 0 : index
    %c0_123 = arith.constant 0 : index
    %323 = vector.load %arg9[%c0_122, %c0_123] : memref<1x128xf32, #tpu.memory_space<vmem>>, vector<1x128xf32>
    %324 = vector.broadcast %323 : vector<1x128xf32> to vector<32x128xf32>
    %325 = arith.addf %322, %324 : vector<32x128xf32>
    %c0_124 = arith.constant 0 : index
    %c0_125 = arith.constant 0 : index
    %326 = vector.load %arg10[%c0_124, %c0_125] : memref<32x128xf32, #tpu.memory_space<vmem>>, vector<32x128xf32>
    tpu.vector_store %arg10[%c0_124, %c0_125], %325 {strides = array<i32>} : memref<32x128xf32, #tpu.memory_space<vmem>>, vector<32x128xf32>,
    return
  }
  func.func @transform_0(%arg0: i32) -> (i32, i32) {
    %c0_i32 = arith.constant 0 : i32
    %c0_i32_0 = arith.constant 0 : i32
    return %arg0, %c0_i32 : i32, i32
  }
  func.func @transform_1(%arg0: i32) -> (i32, i32) {
    %c0_i32 = arith.constant 0 : i32
    %c0_i32_0 = arith.constant 0 : i32
    %c0_i32_1 = arith.constant 0 : i32
    return %c0_i32, %c0_i32_0 : i32, i32
  }
  func.func @transform_2(%arg0: i32) -> (i32, i32) {
    %c0_i32 = arith.constant 0 : i32
    %c0_i32_0 = arith.constant 0 : i32
    %c0_i32_1 = arith.constant 0 : i32
    return %c0_i32, %c0_i32_0 : i32, i32
  }
  func.func @transform_3(%arg0: i32) -> (i32, i32) {
    %c0_i32 = arith.constant 0 : i32
    %c0_i32_0 = arith.constant 0 : i32
    %c0_i32_1 = arith.constant 0 : i32
    return %c0_i32, %c0_i32_0 : i32, i32
  }
  func.func @transform_4(%arg0: i32) -> (i32, i32) {
    %c0_i32 = arith.constant 0 : i32
    %c0_i32_0 = arith.constant 0 : i32
    %c0_i32_1 = arith.constant 0 : i32
    return %c0_i32, %c0_i32_0 : i32, i32
  }
  func.func @transform_5(%arg0: i32) -> (i32, i32) {
    %c0_i32 = arith.constant 0 : i32
    %c0_i32_0 = arith.constant 0 : i32
    %c0_i32_1 = arith.constant 0 : i32
    return %c0_i32, %c0_i32_0 : i32, i32
  }
  func.func @transform_6(%arg0: i32) -> (i32, i32) {
    %c0_i32 = arith.constant 0 : i32
    %c0_i32_0 = arith.constant 0 : i32
    %c0_i32_1 = arith.constant 0 : i32
    return %c0_i32, %c0_i32_0 : i32, i32
  }
  func.func @transform_7(%arg0: i32) -> (i32, i32) {
    %c0_i32 = arith.constant 0 : i32
    %c0_i32_0 = arith.constant 0 : i32
    %c0_i32_1 = arith.constant 0 : i32
    return %c0_i32, %c0_i32_0 : i32, i32
  }
  func.func @transform_8(%arg0: i32) -> (i32, i32) {
    %c0_i32 = arith.constant 0 : i32
    %c0_i32_0 = arith.constant 0 : i32
    %c0_i32_1 = arith.constant 0 : i32
    return %c0_i32, %c0_i32_0 : i32, i32
  }
  func.func @transform_9(%arg0: i32) -> (i32, i32) {
    %c0_i32 = arith.constant 0 : i32
    %c0_i32_0 = arith.constant 0 : i32
    return %arg0, %c0_i32 : i32, i32
  }
}

</mosaic_0001>

<llo_original>
// kernel: tpu_custom_call.1
$region0: #{tpu_custom_call.1}
  #allocation0 [shape = 'u32[]', space=smem, size = 0x4, offset = 0x4, fixed_abs, tag = 'smem constant byte address 0x4 - core index']
  #allocation1 [shape = 'u32[72,128]{1,0:T(1,128)}', space=vmem, size = 0x9000, scoped, tag = 'internal scratch']
  #allocation2 [shape = 'f32[32,512]{1,0:T(8,128)}', space=vmem, size = 0x10000, scoped, tag = 'scratch operand']
  #allocation3 [shape = 'f32[32,128]{1,0:T(8,128)}', space=vmem, size = 0x4000, scoped, tag = 'scratch operand']
  #allocation4 [shape = 'f32[2,8,128]{2,1,0:T(8,128)}', space=vmem, size = 0x2000, scoped, tag = 'scratch operand']
  #allocation5 [shape = 'f32[2,8,128]{2,1,0:T(8,128)}', space=vmem, size = 0x2000, scoped, tag = 'scratch operand']
  %s0 = inlined_call_operand.vmem [shape: f32[64,16], index: 0, kind: input, shape index: {}]
  %s1 = inlined_call_operand.hbm [shape: bf16[16,512], index: 1, kind: input, shape index: {}]
  %s2 = inlined_call_operand.hbm [shape: bf16[128,512], index: 2, kind: input, shape index: {}]
  %s3 = inlined_call_operand.vmem [shape: f32[1,512], index: 3, kind: input, shape index: {}]
  %s4 = inlined_call_operand.hbm [shape: bf16[128,512], index: 4, kind: input, shape index: {}]
  %s5 = inlined_call_operand.hbm [shape: bf16[128,512], index: 5, kind: input, shape index: {}]
  %s6 = inlined_call_operand.vmem [shape: f32[1,512], index: 6, kind: input, shape index: {}]
  %s7 = inlined_call_operand.vmem [shape: bf16[128,128], index: 7, kind: input, shape index: {}]
  %s8 = inlined_call_operand.vmem [shape: f32[1,128], index: 8, kind: input, shape index: {}]
  %s9 = inlined_call_operand.hbm [shape: f32[64,128], index: 9, kind: output, shape index: {}]
  %s10 = sld [smem:[#allocation0]]
  $region89: #{tpu_custom_call.1} parent=0
    _
  %s12 = ssub.s32 1, %s10
  %s13 = scalar_select 0, %s12, %s10
  $region1: #{tpu_custom_call.1} parent=0
    #allocation6 [shape = 'u8[16384]{0}', space=vmem, size = 0x4000, scoped, tag = 'input window, operand 1, single buffered']
    #allocation7 [shape = 's32[2]{0}', space=sflag, size = 0x8, scoped, tag = 'scoped memory for tpu_custom_call.1']
    #allocation8 [shape = 's32[2]{0}', space=sflag, size = 0x8, scoped, tag = 'scoped memory for tpu_custom_call.1']
    #allocation9 [shape = 'u8[131072]{0}', space=vmem, size = 0x20000, scoped, tag = 'input window, operand 2, single buffered']
    #allocation10 [shape = 's32[1]{0}', space=sflag, size = 0x4, scoped, tag = 'scoped memory for tpu_custom_call.1']
    #allocation11 [shape = 'u8[131072]{0}', space=vmem, size = 0x20000, scoped, tag = 'input window, operand 4, single buffered']
    #allocation12 [shape = 'u8[131072]{0}', space=vmem, size = 0x20000, scoped, tag = 'input window, operand 5, single buffered']
    #allocation13 [shape = 's32[1]{0}', space=sflag, size = 0x4, scoped, tag = 'scoped memory for tpu_custom_call.1']
    #allocation14 [shape = 'u8[32768]{0}', space=vmem, size = 0x8000, scoped, tag = 'output window, operand 0']
    %14 = vsyncpa [#allocation7], 0
    %15 = vsyncpa [#allocation10], 0
    %16 = vsyncpa [#allocation13], 0
    %17 = vsyncpa [#allocation8], 0
    %s18 = scalar_lea.sflag [#allocation8], 1
    %19 = vsyncpa %s18, 0
    loop: start=0, step=1, limit=4
    $region2: #{tpu_custom_call.1} parent=1 // loop_pre_header
      _
    $region3: #{tpu_custom_call.1} parent=1 // loop_header
      %s21 = sphi 0, %s25
      %p22 = scmp.ge.s32.totalorder %s21, 4
      %s31 = sphi 0, %s33
      %s34 = sphi 0, %s31
      %s35 = sphi 0, %s34
      %s51 = sphi 0, %s35
      %s55 = sphi 0, %s55
      %s57 = sphi 0, %s55
      %s58 = sphi 0, %s57
      %s72 = sphi 0, %s58
      %s76 = sphi 0, %s76
      %s78 = sphi 0, %s76
      %s79 = sphi 0, %s78
      %s93 = sphi 0, %s79
      %s97 = sphi 0, %s97
      %s99 = sphi 0, %s97
      %s100 = sphi 0, %s99
      %s114 = sphi 0, %s100
      %s118 = sphi 0, %s118
      %s120 = sphi 0, %s118
      %s121 = sphi 0, %s120
      %s135 = sphi 0, %s121
      %s139 = sphi 0, %s139
      %s141 = sphi 0, %s139
      %s142 = sphi 0, %s141
      %s156 = sphi 0, %s142
      %s160 = sphi 0, %s160
      %s162 = sphi 0, %s160
      %s163 = sphi 0, %s162
      %s177 = sphi 0, %s163
      %s181 = sphi 0, %s181
      %s183 = sphi 0, %s181
      %s184 = sphi 0, %s183
      %s198 = sphi 0, %s184
      %s202 = sphi 0, %s202
      %s204 = sphi 0, %s202
      %s205 = sphi 0, %s204
      %s219 = sphi 0, %s205
      %s225 = sphi 0, %s227
      %s228 = sphi 0, %s225
      %s229 = sphi 0, %s228
      %s245 = sphi 0, %s229
    $region4: #{tpu_custom_call.1} parent=1 // loop_header_branch
      %24 = sbr.rel (%p22) target = $region8
    $region5: #{tpu_custom_call.1} parent=1 // loop_body
      %s26 = ssub.s32 %s21, 1
      %s27 = ssub.s32 %s21, 2
      %s28 = sadd.s32 %s21, 1
      %s29 = ssub.s32 %s21, %s28
      %p30 = scmp.eq.s32.totalorder %s29, 0
      %s32 = sadd.s32 %s31, 1
      %s33 = scalar_select %p30, %s31, %s32
      %p36 = pneg %p30
      %p37 = scmp.eq.s32.totalorder %s21, 1
      %p38 = por %p36, %p37
      %p39 = scmp.ne.s32.totalorder %s31, %s34
      %p40 = scmp.eq.s32.totalorder %s21, 0
      %p41 = por %p39, %p40
      %p42 = scmp.ne.s32.totalorder %s31, %s34
      %p43 = scmp.eq.s32.totalorder %s26, 1
      %p44 = por %p42, %p43
      %p45 = scmp.ne.s32.totalorder %s34, %s35
      %p46 = scmp.eq.s32.totalorder %s26, 0
      %p47 = por %p45, %p46
      %p48 = scmp.ne.s32.totalorder %s34, %s35
      %p49 = scmp.eq.s32.totalorder %s27, 1
      %p50 = por %p48, %p49
      %p52 = scmp.ne.s32.totalorder %s35, %s51
      %p53 = scmp.eq.s32.totalorder %s27, 0
      %p54 = por %p52, %p53
      %s56 = sadd.s32 %s55, 1
      %p59 = scmp.eq.s32.totalorder %s21, 1
      %p60 = scmp.ne.s32.totalorder %s55, %s57
      %p61 = scmp.eq.s32.totalorder %s21, 0
      %p62 = por %p60, %p61
      %p63 = scmp.ne.s32.totalorder %s55, %s57
      %p64 = scmp.eq.s32.totalorder %s26, 1
      %p65 = por %p63, %p64
      %p66 = scmp.ne.s32.totalorder %s57, %s58
      %p67 = scmp.eq.s32.totalorder %s26, 0
      %p68 = por %p66, %p67
      %p69 = scmp.ne.s32.totalorder %s57, %s58
      %p70 = scmp.eq.s32.totalorder %s27, 1
      %p71 = por %p69, %p70
      %p73 = scmp.ne.s32.totalorder %s58, %s72
      %p74 = scmp.eq.s32.totalorder %s27, 0
      %p75 = por %p73, %p74
      %s77 = sadd.s32 %s76, 1
      %p80 = scmp.eq.s32.totalorder %s21, 1
      %p81 = scmp.ne.s32.totalorder %s76, %s78
      %p82 = scmp.eq.s32.totalorder %s21, 0
      %p83 = por %p81, %p82
      %p84 = scmp.ne.s32.totalorder %s76, %s78
      %p85 = scmp.eq.s32.totalorder %s26, 1
      %p86 = por %p84, %p85
      %p87 = scmp.ne.s32.totalorder %s78, %s79
      %p88 = scmp.eq.s32.totalorder %s26, 0
      %p89 = por %p87, %p88
      %p90 = scmp.ne.s32.totalorder %s78, %s79
      %p91 = scmp.eq.s32.totalorder %s27, 1
      %p92 = por %p90, %p91
      %p94 = scmp.ne.s32.totalorder %s79, %s93
      %p95 = scmp.eq.s32.totalorder %s27, 0
      %p96 = por %p94, %p95
      %s98 = sadd.s32 %s97, 1
      %p101 = scmp.eq.s32.totalorder %s21, 1
      %p102 = scmp.ne.s32.totalorder %s97, %s99
      %p103 = scmp.eq.s32.totalorder %s21, 0
      %p104 = por %p102, %p103
      %p105 = scmp.ne.s32.totalorder %s97, %s99
      %p106 = scmp.eq.s32.totalorder %s26, 1
      %p107 = por %p105, %p106
      %p108 = scmp.ne.s32.totalorder %s99, %s100
      %p109 = scmp.eq.s32.totalorder %s26, 0
      %p110 = por %p108, %p109
      %p111 = scmp.ne.s32.totalorder %s99, %s100
      %p112 = scmp.eq.s32.totalorder %s27, 1
      %p113 = por %p111, %p112
      %p115 = scmp.ne.s32.totalorder %s100, %s114
      %p116 = scmp.eq.s32.totalorder %s27, 0
      %p117 = por %p115, %p116
      %s119 = sadd.s32 %s118, 1
      %p122 = scmp.eq.s32.totalorder %s21, 1
      %p123 = scmp.ne.s32.totalorder %s118, %s120
      %p124 = scmp.eq.s32.totalorder %s21, 0
      %p125 = por %p123, %p124
      %p126 = scmp.ne.s32.totalorder %s118, %s120
      %p127 = scmp.eq.s32.totalorder %s26, 1
      %p128 = por %p126, %p127
      %p129 = scmp.ne.s32.totalorder %s120, %s121
      %p130 = scmp.eq.s32.totalorder %s26, 0
      %p131 = por %p129, %p130
      %p132 = scmp.ne.s32.totalorder %s120, %s121
      %p133 = scmp.eq.s32.totalorder %s27, 1
      %p134 = por %p132, %p133
      %p136 = scmp.ne.s32.totalorder %s121, %s135
      %p137 = scmp.eq.s32.totalorder %s27, 0
      %p138 = por %p136, %p137
      %s140 = sadd.s32 %s139, 1
      %p143 = scmp.eq.s32.totalorder %s21, 1
      %p144 = scmp.ne.s32.totalorder %s139, %s141
      %p145 = scmp.eq.s32.totalorder %s21, 0
      %p146 = por %p144, %p145
      %p147 = scmp.ne.s32.totalorder %s139, %s141
      %p148 = scmp.eq.s32.totalorder %s26, 1
      %p149 = por %p147, %p148
      %p150 = scmp.ne.s32.totalorder %s141, %s142
      %p151 = scmp.eq.s32.totalorder %s26, 0
      %p152 = por %p150, %p151
      %p153 = scmp.ne.s32.totalorder %s141, %s142
      %p154 = scmp.eq.s32.totalorder %s27, 1
      %p155 = por %p153, %p154
      %p157 = scmp.ne.s32.totalorder %s142, %s156
      %p158 = scmp.eq.s32.totalorder %s27, 0
      %p159 = por %p157, %p158
      %s161 = sadd.s32 %s160, 1
      %p164 = scmp.eq.s32.totalorder %s21, 1
      %p165 = scmp.ne.s32.totalorder %s160, %s162
      %p166 = scmp.eq.s32.totalorder %s21, 0
      %p167 = por %p165, %p166
      %p168 = scmp.ne.s32.totalorder %s160, %s162
      %p169 = scmp.eq.s32.totalorder %s26, 1
      %p170 = por %p168, %p169
      %p171 = scmp.ne.s32.totalorder %s162, %s163
      %p172 = scmp.eq.s32.totalorder %s26, 0
      %p173 = por %p171, %p172
      %p174 = scmp.ne.s32.totalorder %s162, %s163
      %p175 = scmp.eq.s32.totalorder %s27, 1
      %p176 = por %p174, %p175
      %p178 = scmp.ne.s32.totalorder %s163, %s177
      %p179 = scmp.eq.s32.totalorder %s27, 0
      %p180 = por %p178, %p179
      %s182 = sadd.s32 %s181, 1
      %p185 = scmp.eq.s32.totalorder %s21, 1
      %p186 = scmp.ne.s32.totalorder %s181, %s183
      %p187 = scmp.eq.s32.totalorder %s21, 0
      %p188 = por %p186, %p187
      %p189 = scmp.ne.s32.totalorder %s181, %s183
      %p190 = scmp.eq.s32.totalorder %s26, 1
      %p191 = por %p189, %p190
      %p192 = scmp.ne.s32.totalorder %s183, %s184
      %p193 = scmp.eq.s32.totalorder %s26, 0
      %p194 = por %p192, %p193
      %p195 = scmp.ne.s32.totalorder %s183, %s184
      %p196 = scmp.eq.s32.totalorder %s27, 1
      %p197 = por %p195, %p196
      %p199 = scmp.ne.s32.totalorder %s184, %s198
      %p200 = scmp.eq.s32.totalorder %s27, 0
      %p201 = por %p199, %p200
      %s203 = sadd.s32 %s202, 1
      %p206 = scmp.eq.s32.totalorder %s21, 1
      %p207 = scmp.ne.s32.totalorder %s202, %s204
      %p208 = scmp.eq.s32.totalorder %s21, 0
      %p209 = por %p207, %p208
      %p210 = scmp.ne.s32.totalorder %s202, %s204
      %p211 = scmp.eq.s32.totalorder %s26, 1
      %p212 = por %p210, %p211
      %p213 = scmp.ne.s32.totalorder %s204, %s205
      %p214 = scmp.eq.s32.totalorder %s26, 0
      %p215 = por %p213, %p214
      %p216 = scmp.ne.s32.totalorder %s204, %s205
      %p217 = scmp.eq.s32.totalorder %s27, 1
      %p218 = por %p216, %p217
      %p220 = scmp.ne.s32.totalorder %s205, %s219
      %p221 = scmp.eq.s32.totalorder %s27, 0
      %p222 = por %p220, %p221
      %s223 = ssub.s32 %s21, %s28
      %p224 = scmp.eq.s32.totalorder %s223, 0
      %s226 = sadd.s32 %s225, 1
      %s227 = scalar_select %p224, %s225, %s226
      %p230 = pneg %p224
      %p231 = scmp.eq.s32.totalorder %s21, 1
      %p232 = por %p230, %p231
      %p233 = scmp.ne.s32.totalorder %s225, %s228
      %p234 = scmp.eq.s32.totalorder %s21, 0
      %p235 = por %p233, %p234
      %p236 = scmp.ne.s32.totalorder %s225, %s228
      %p237 = scmp.eq.s32.totalorder %s26, 1
      %p238 = por %p236, %p237
      %p239 = scmp.ne.s32.totalorder %s228, %s229
      %p240 = scmp.eq.s32.totalorder %s26, 0
      %p241 = por %p239, %p240
      %p242 = scmp.ne.s32.totalorder %s228, %s229
      %p243 = scmp.eq.s32.totalorder %s27, 1
      %p244 = por %p242, %p243
      %p246 = scmp.ne.s32.totalorder %s229, %s245
      %p247 = scmp.eq.s32.totalorder %s27, 0
      %p248 = por %p246, %p247
      %p249 = scmp.le.s32.totalorder 1, %s21
      %p250 = scmp.lt.s32.totalorder %s21, 3
      %p251 = pnand %p249, %p250
      %p252 = pneg %p251
      // Predicated region
      $region9: #{tpu_custom_call.1} parent=5 // pred_check
        _
      $region10: #{tpu_custom_call.1} parent=5 // pred_check_branch
        %254 = sbr.rel (%p251) target = $region12
      $region11: #{tpu_custom_call.1} parent=5 // pred_region
        %s255 = ssub.s32 %s21, 1
        // Predicated region
        $region13: #{tpu_custom_call.1} parent=11 // pred_check
          %p256 = pneg %p68
        $region14: #{tpu_custom_call.1} parent=11 // pred_check_branch
          %258 = sbr.rel (%p256) target = $region16
        $region15: #{tpu_custom_call.1} parent=11 // pred_region
          %260 = vsyncadd [#allocation7], 0
          %s261 = sshll.u32 %s1, 4
          %s262 = int_to_ptr.hbm [resolvable:$true] %s261
          %s263 = sshll.u32 [#allocation6], 4
          %s264 = int_to_ptr.vmem [resolvable:$true] %s263
          %269 = dma.hbm_to_vmem [thread:$0]  %s262, 512, %s264, [#allocation7], 256, 256, 16
        $region16: #{tpu_custom_call.1} parent=11 // pred_fallthru
          _
        // Predicated region
        $region17: #{tpu_custom_call.1} parent=11 // pred_check
          %p270 = pneg %p89
        $region18: #{tpu_custom_call.1} parent=11 // pred_check_branch
          %272 = sbr.rel (%p270) target = $region20
        $region19: #{tpu_custom_call.1} parent=11 // pred_region
          %274 = vsyncadd [#allocation10], 0
          %s275 = sshll.u32 %s2, 4
          %s276 = int_to_ptr.hbm [resolvable:$true] %s275
          %s277 = sshll.u32 [#allocation9], 4
          %s278 = int_to_ptr.vmem [resolvable:$true] %s277
          %283 = dma.hbm_to_vmem [thread:$0]  %s276, 4096, %s278, [#allocation10], 256, 256, 16
        $region20: #{tpu_custom_call.1} parent=11 // pred_fallthru
          _
        // Predicated region
        $region21: #{tpu_custom_call.1} parent=11 // pred_check
          %p284 = pneg %p110
        $region22: #{tpu_custom_call.1} parent=11 // pred_check_branch
          %286 = sbr.rel (%p284) target = $region24
        $region23: #{tpu_custom_call.1} parent=11 // pred_region
          _
        $region24: #{tpu_custom_call.1} parent=11 // pred_fallthru
          _
        // Predicated region
        $region25: #{tpu_custom_call.1} parent=11 // pred_check
          %p287 = pneg %p131
        $region26: #{tpu_custom_call.1} parent=11 // pred_check_branch
          %289 = sbr.rel (%p287) target = $region28
        $region27: #{tpu_custom_call.1} parent=11 // pred_region
          %291 = vsyncadd [#allocation10], 0
          %s292 = sshll.u32 %s4, 4
          %s293 = int_to_ptr.hbm [resolvable:$true] %s292
          %s294 = sshll.u32 [#allocation11], 4
          %s295 = int_to_ptr.vmem [resolvable:$true] %s294
          %300 = dma.hbm_to_vmem [thread:$0]  %s293, 4096, %s295, [#allocation10], 256, 256, 16
        $region28: #{tpu_custom_call.1} parent=11 // pred_fallthru
          _
        // Predicated region
        $region29: #{tpu_custom_call.1} parent=11 // pred_check
          %p301 = pneg %p152
        $region30: #{tpu_custom_call.1} parent=11 // pred_check_branch
          %303 = sbr.rel (%p301) target = $region32
        $region31: #{tpu_custom_call.1} parent=11 // pred_region
          %305 = vsyncadd [#allocation13], 0
          %s306 = sshll.u32 %s5, 4
          %s307 = int_to_ptr.hbm [resolvable:$true] %s306
          %s308 = sshll.u32 [#allocation12], 4
          %s309 = int_to_ptr.vmem [resolvable:$true] %s308
          %314 = dma.hbm_to_vmem [thread:$0]  %s307, 4096, %s309, [#allocation13], 256, 256, 16
        $region32: #{tpu_custom_call.1} parent=11 // pred_fallthru
          _
        // Predicated region
        $region33: #{tpu_custom_call.1} parent=11 // pred_check
          %p315 = pneg %p173
        $region34: #{tpu_custom_call.1} parent=11 // pred_check_branch
          %317 = sbr.rel (%p315) target = $region36
        $region35: #{tpu_custom_call.1} parent=11 // pred_region
          _
        $region36: #{tpu_custom_call.1} parent=11 // pred_fallthru
          _
        // Predicated region
        $region37: #{tpu_custom_call.1} parent=11 // pred_check
          %p318 = pneg %p194
        $region38: #{tpu_custom_call.1} parent=11 // pred_check_branch
          %320 = sbr.rel (%p318) target = $region40
        $region39: #{tpu_custom_call.1} parent=11 // pred_region
          _
        $region40: #{tpu_custom_call.1} parent=11 // pred_fallthru
          _
        // Predicated region
        $region41: #{tpu_custom_call.1} parent=11 // pred_check
          %p321 = pneg %p215
        $region42: #{tpu_custom_call.1} parent=11 // pred_check_branch
          %323 = sbr.rel (%p321) target = $region44
        $region43: #{tpu_custom_call.1} parent=11 // pred_region
          _
        $region44: #{tpu_custom_call.1} parent=11 // pred_fallthru
          _
      $region12: #{tpu_custom_call.1} parent=5 // pred_fallthru
        _
      %p324 = scmp.lt.s32.totalorder %s21, 2
      // Predicated region
      $region45: #{tpu_custom_call.1} parent=5 // pred_check
        %p325 = pneg %p324
      $region46: #{tpu_custom_call.1} parent=5 // pred_check_branch
        %327 = sbr.rel (%p325) target = $region48
      $region47: #{tpu_custom_call.1} parent=5 // pred_region
        // Predicated region
        $region49: #{tpu_custom_call.1} parent=47 // pred_check
          %p328 = pneg %p41
        $region50: #{tpu_custom_call.1} parent=47 // pred_check_branch
          %330 = sbr.rel (%p328) target = $region52
        $region51: #{tpu_custom_call.1} parent=47 // pred_region
          %s331 = smul.u32 4, %s21
          %p332 = scmp.lt.s32.totalorder %s331, 7
          %s333 = scalar_select %p332, %s331, 7
          %s334 = smul.addr %s333, 8
          %s335 = scalar_lea.vmem %s0, %s334
          %s336 = smul.u32 4, %s21
        $region52: #{tpu_custom_call.1} parent=47 // pred_fallthru
          _
      $region48: #{tpu_custom_call.1} parent=5 // pred_fallthru
        _
      %p337 = scmp.le.s32.totalorder 1, %s21
      %p338 = scmp.lt.s32.totalorder %s21, 3
      %p339 = pnand %p337, %p338
      %p340 = pneg %p339
      // Predicated region
      $region53: #{tpu_custom_call.1} parent=5 // pred_check
        _
      $region54: #{tpu_custom_call.1} parent=5 // pred_check_branch
        %342 = sbr.rel (%p339) target = $region56
      $region55: #{tpu_custom_call.1} parent=5 // pred_region
        %s343 = ssub.s32 %s21, 1
        // Predicated region
        $region57: #{tpu_custom_call.1} parent=55 // pred_check
          %p344 = pneg %p68
        $region58: #{tpu_custom_call.1} parent=55 // pred_check_branch
          %346 = sbr.rel (%p344) target = $region60
        $region59: #{tpu_custom_call.1} parent=55 // pred_region
          %348 = dma.done [#allocation7], 512
        $region60: #{tpu_custom_call.1} parent=55 // pred_fallthru
          _
        // Predicated region
        $region61: #{tpu_custom_call.1} parent=55 // pred_check
          %p349 = pneg %p89
        $region62: #{tpu_custom_call.1} parent=55 // pred_check_branch
          %351 = sbr.rel (%p349) target = $region64
        $region63: #{tpu_custom_call.1} parent=55 // pred_region
          %353 = dma.done [#allocation10], 4096
        $region64: #{tpu_custom_call.1} parent=55 // pred_fallthru
          _
        // Predicated region
        $region65: #{tpu_custom_call.1} parent=55 // pred_check
          %p354 = pneg %p131
        $region66: #{tpu_custom_call.1} parent=55 // pred_check_branch
          %356 = sbr.rel (%p354) target = $region68
        $region67: #{tpu_custom_call.1} parent=55 // pred_region
          %358 = dma.done [#allocation10], 4096
        $region68: #{tpu_custom_call.1} parent=55 // pred_fallthru
          _
        // Predicated region
        $region69: #{tpu_custom_call.1} parent=55 // pred_check
          %p359 = pneg %p152
        $region70: #{tpu_custom_call.1} parent=55 // pred_check_branch
          %361 = sbr.rel (%p359) target = $region72
        $region71: #{tpu_custom_call.1} parent=55 // pred_region
          %363 = dma.done [#allocation13], 4096
        $region72: #{tpu_custom_call.1} parent=55 // pred_fallthru
          _
        %s364 = smul.u32 4, %s26
        %p365 = scmp.lt.s32.totalorder %s364, 7
        %s366 = scalar_select %p365, %s364, 7
        %s367 = smul.addr %s366, 8
        %s368 = scalar_lea.vmem %s0, %s367
        %p369 = pneg %p47
        %p370 = pneg %p44
        %p371 = pneg %p68
        %p372 = pneg %p65
        %p373 = pneg %p89
        %p374 = pneg %p86
        %p375 = pneg %p110
        %p376 = pneg %p107
        %p377 = pneg %p131
        %p378 = pneg %p128
        %p379 = pneg %p152
        %p380 = pneg %p149
        %p381 = pneg %p173
        %p382 = pneg %p170
        %p383 = pneg %p194
        %p384 = pneg %p191
        %p385 = pneg %p215
        %p386 = pneg %p212
        %p387 = pneg %p241
        %p388 = pneg %p238
        %s389 = sand.u32 %s228, 1
        %s390 = scalar_lea.sflag [#allocation8], %s389
        %s391 = sand.u32 %s228, 1
        %s392 = smul.addr %s391, 32
        %s393 = scalar_lea.vmem [#allocation14], %s392
        %s394 = smul.u32 4, %s26
        %p395 = scmp.lt.s32.totalorder %s394, 7
        %s396 = scalar_select %p395, %s394, 7
        %s397 = smul.addr %s396, 8
        %s398 = scalar_lea.vmem %s0, %s397
        %s399 = smul.u32 4, %s26
        %s400 = smul.u32 4, %s26
        %p402 = scmp.eq.s32.totalorder %s26, 0
        // Predicated region
        $region73: #{tpu_custom_call.1} parent=55 // pred_check
          %p403 = pneg %p402
        $region74: #{tpu_custom_call.1} parent=55 // pred_check_branch
          %405 = sbr.rel (%p403) target = $region76
        $region75: #{tpu_custom_call.1} parent=55 // pred_region
          %406 = vst [vmem:[#allocation4] sm:$0xff] 0.0
          %407 = vst [vmem:[#allocation4 + $0x8] sm:$0xff] 0.0
          %408 = vst [vmem:[#allocation5] sm:$0xff] 0.0
          %409 = vst [vmem:[#allocation5 + $0x8] sm:$0xff] 0.0
        $region76: #{tpu_custom_call.1} parent=55 // pred_fallthru
          _
        %v410 = vld [vmem:[%s398] sm:$0xff]
        %v411 = vld [vmem:[%s398 + $0x8] sm:$0xff]
        %v412 = vld [vmem:[%s398 + $0x10] sm:$0xff]
        %v413 = vld [vmem:[%s398 + $0x18] sm:$0xff]
        %v414 = vpack.c.bf16 %v411, %v410
        %v415 = vpack.c.bf16 %v413, %v412
        %v416 = vld [vmem:[#allocation6] sm:$0xff]
        %v417 = vld [vmem:[#allocation6 + $0x8] sm:$0xff]
        %v418 = vld [vmem:[#allocation6 + $0x10] sm:$0xff]
        %v419 = vld [vmem:[#allocation6 + $0x18] sm:$0xff]
        %v420 = vld [vmem:[%s3] sm:$0xf]
        %v422 = vperm.slane %v420, 0
        %v423 = vperm.slane %v420, 1
        %v424 = vperm.slane %v420, 2
        %v425 = vperm.slane %v420, 3
        %v434 = vunpack.c.l.b16 %v416
        %v435 = vunpack.c.h.b16 %v416
        %v436 = vunpack.c.l.b16 %v417
        %v437 = vunpack.c.h.b16 %v417
        %v438 = vunpack.c.l.b16 %v418
        %v439 = vunpack.c.h.b16 %v418
        %v440 = vunpack.c.l.b16 %v419
        %v441 = vunpack.c.h.b16 %v419
        %v442 = vpack.c.b16 %v438, %v434
        %v443 = vpack.c.b16 %v439, %v435
        %v444 = vpack.c.b16 %v440, %v436
        %v445 = vpack.c.b16 %v441, %v437
        %vm450 = vcmask 130048
        %v452 = vsel %vm450, %v414, 0
        %v455 = vsel %vm450, %v415, 0
        %457 = vmatpush.bf16.msra.mxu0 0
        %458 = vmatpush.bf16.msra.mxu0 0
        %459 = vmatpush.bf16.msra.mxu0 0
        %460 = vmatpush.bf16.msra.mxu0 0
        %461 = vmatpush.bf16.msra.mxu0 0
        %462 = vmatpush.bf16.msra.mxu0 0
        %463 = vmatpush.bf16.msra.mxu0 0
        %464 = vmatpush.bf16.msra.mxu0 %v442
        %465 = vmatmul.bf16.gmra.mxu0 %v452
        %v466 = vpop.f32.mrf.mxu0
        %v467 = vadd.f32 %v422, %v466
        %v468 = vpop.f32.mrf.mxu0
        %v469 = vadd.f32 %v422, %v468
        %470 = vmatmul.bf16.gmra.mxu0 %v455
        %v471 = vpop.f32.mrf.mxu0
        %v472 = vadd.f32 %v422, %v471
        %v473 = vpop.f32.mrf.mxu0
        %v474 = vadd.f32 %v422, %v473
        %475 = vdwg.mxu0
        %476 = vmatpush.bf16.msra.mxu0 0
        %477 = vmatpush.bf16.msra.mxu0 0
        %478 = vmatpush.bf16.msra.mxu0 0
        %479 = vmatpush.bf16.msra.mxu0 0
        %480 = vmatpush.bf16.msra.mxu0 0
        %481 = vmatpush.bf16.msra.mxu0 0
        %482 = vmatpush.bf16.msra.mxu0 0
        %483 = vmatpush.bf16.msra.mxu0 %v443
        %484 = vmatmul.bf16.gmra.mxu0 %v452
        %v485 = vpop.f32.mrf.mxu0
        %v486 = vadd.f32 %v423, %v485
        %v487 = vpop.f32.mrf.mxu0
        %v488 = vadd.f32 %v423, %v487
        %489 = vmatmul.bf16.gmra.mxu0 %v455
        %v490 = vpop.f32.mrf.mxu0
        %v491 = vadd.f32 %v423, %v490
        %v492 = vpop.f32.mrf.mxu0
        %v493 = vadd.f32 %v423, %v492
        %494 = vdwg.mxu0
        %495 = vmatpush.bf16.msra.mxu0 0
        %496 = vmatpush.bf16.msra.mxu0 0
        %497 = vmatpush.bf16.msra.mxu0 0
        %498 = vmatpush.bf16.msra.mxu0 0
        %499 = vmatpush.bf16.msra.mxu0 0
        %500 = vmatpush.bf16.msra.mxu0 0
        %501 = vmatpush.bf16.msra.mxu0 0
        %502 = vmatpush.bf16.msra.mxu0 %v444
        %503 = vmatmul.bf16.gmra.mxu0 %v452
        %v504 = vpop.f32.mrf.mxu0
        %v505 = vadd.f32 %v424, %v504
        %v506 = vpop.f32.mrf.mxu0
        %v507 = vadd.f32 %v424, %v506
        %508 = vmatmul.bf16.gmra.mxu0 %v455
        %v509 = vpop.f32.mrf.mxu0
        %v510 = vadd.f32 %v424, %v509
        %v511 = vpop.f32.mrf.mxu0
        %v512 = vadd.f32 %v424, %v511
        %513 = vdwg.mxu0
        %514 = vmatpush.bf16.msra.mxu0 0
        %515 = vmatpush.bf16.msra.mxu0 0
        %516 = vmatpush.bf16.msra.mxu0 0
        %517 = vmatpush.bf16.msra.mxu0 0
        %518 = vmatpush.bf16.msra.mxu0 0
        %519 = vmatpush.bf16.msra.mxu0 0
        %520 = vmatpush.bf16.msra.mxu0 0
        %521 = vmatpush.bf16.msra.mxu0 %v445
        %522 = vmatmul.bf16.gmra.mxu0 %v452
        %v523 = vpop.f32.mrf.mxu0
        %v524 = vadd.f32 %v425, %v523
        %v525 = vpop.f32.mrf.mxu0
        %v526 = vadd.f32 %v425, %v525
        %527 = vmatmul.bf16.gmra.mxu0 %v455
        %v528 = vpop.f32.mrf.mxu0
        %v529 = vadd.f32 %v425, %v528
        %v530 = vpop.f32.mrf.mxu0
        %v531 = vadd.f32 %v425, %v530
        %532 = vdwg.mxu0
        %533 = vst [vmem:[#allocation2] sm:$0xff] %v467
        %534 = vst [vmem:[#allocation2 + $0x8] sm:$0xff] %v486
        %535 = vst [vmem:[#allocation2 + $0x10] sm:$0xff] %v505
        %536 = vst [vmem:[#allocation2 + $0x18] sm:$0xff] %v524
        %537 = vst [vmem:[#allocation2 + $0x20] sm:$0xff] %v469
        %538 = vst [vmem:[#allocation2 + $0x28] sm:$0xff] %v488
        %539 = vst [vmem:[#allocation2 + $0x30] sm:$0xff] %v507
        %540 = vst [vmem:[#allocation2 + $0x38] sm:$0xff] %v526
        %541 = vst [vmem:[#allocation2 + $0x40] sm:$0xff] %v472
        %542 = vst [vmem:[#allocation2 + $0x48] sm:$0xff] %v491
        %543 = vst [vmem:[#allocation2 + $0x50] sm:$0xff] %v510
        %544 = vst [vmem:[#allocation2 + $0x58] sm:$0xff] %v529
        %545 = vst [vmem:[#allocation2 + $0x60] sm:$0xff] %v474
        %546 = vst [vmem:[#allocation2 + $0x68] sm:$0xff] %v493
        %547 = vst [vmem:[#allocation2 + $0x70] sm:$0xff] %v512
        %548 = vst [vmem:[#allocation2 + $0x78] sm:$0xff] %v531
        %v549 = vld [vmem:[#allocation4] sm:$0xff]
        %v550 = vld [vmem:[#allocation5] sm:$0xff]
        %s551 = smul.u32 0, 4
        %s552 = smul.addr %s551, 8
        %s553 = scalar_lea.vmem [#allocation2], %s552
        %v554 = vld [vmem:[%s553] sm:$0xff]
        %v555 = vld [vmem:[%s553 + $0x8] sm:$0xff]
        %v556 = vld [vmem:[%s553 + $0x10] sm:$0xff]
        %v557 = vld [vmem:[%s553 + $0x18] sm:$0xff]
        %v558 = vpack.c.bf16 %v549, %v549
        %v559 = vld [vmem:[#allocation9] sm:$0xff]
        %v560 = vld [vmem:[#allocation9 + $0x8] sm:$0xff]
        %v561 = vld [vmem:[#allocation9 + $0x10] sm:$0xff]
        %v562 = vld [vmem:[#allocation9 + $0x18] sm:$0xff]
        %v563 = vld [vmem:[#allocation9 + $0x20] sm:$0xff]
        %v564 = vld [vmem:[#allocation9 + $0x28] sm:$0xff]
        %v565 = vld [vmem:[#allocation9 + $0x30] sm:$0xff]
        %v566 = vld [vmem:[#allocation9 + $0x38] sm:$0xff]
        %v567 = vld [vmem:[#allocation9 + $0x40] sm:$0xff]
        %v568 = vld [vmem:[#allocation9 + $0x48] sm:$0xff]
        %v569 = vld [vmem:[#allocation9 + $0x50] sm:$0xff]
        %v570 = vld [vmem:[#allocation9 + $0x58] sm:$0xff]
        %v571 = vld [vmem:[#allocation9 + $0x60] sm:$0xff]
        %v572 = vld [vmem:[#allocation9 + $0x68] sm:$0xff]
        %v573 = vld [vmem:[#allocation9 + $0x70] sm:$0xff]
        %v574 = vld [vmem:[#allocation9 + $0x78] sm:$0xff]
        %v575 = vld [vmem:[#allocation9 + $0x80] sm:$0xff]
        %v576 = vld [vmem:[#allocation9 + $0x88] sm:$0xff]
        %v577 = vld [vmem:[#allocation9 + $0x90] sm:$0xff]
        %v578 = vld [vmem:[#allocation9 + $0x98] sm:$0xff]
        %v579 = vld [vmem:[#allocation9 + $0xa0] sm:$0xff]
        %v580 = vld [vmem:[#allocation9 + $0xa8] sm:$0xff]
        %v581 = vld [vmem:[#allocation9 + $0xb0] sm:$0xff]
        %v582 = vld [vmem:[#allocation9 + $0xb8] sm:$0xff]
        %v583 = vld [vmem:[#allocation9 + $0xc0] sm:$0xff]
        %v584 = vld [vmem:[#allocation9 + $0xc8] sm:$0xff]
        %v585 = vld [vmem:[#allocation9 + $0xd0] sm:$0xff]
        %v586 = vld [vmem:[#allocation9 + $0xd8] sm:$0xff]
        %v587 = vld [vmem:[#allocation9 + $0xe0] sm:$0xff]
        %v588 = vld [vmem:[#allocation9 + $0xe8] sm:$0xff]
        %v589 = vld [vmem:[#allocation9 + $0xf0] sm:$0xff]
        %v590 = vld [vmem:[#allocation9 + $0xf8] sm:$0xff]
        %v623 = vunpack.c.l.b16 %v559
        %v624 = vunpack.c.h.b16 %v559
        %v625 = vunpack.c.l.b16 %v560
        %v626 = vunpack.c.h.b16 %v560
        %v627 = vunpack.c.l.b16 %v561
        %v628 = vunpack.c.h.b16 %v561
        %v629 = vunpack.c.l.b16 %v562
        %v630 = vunpack.c.h.b16 %v562
        %v631 = vunpack.c.l.b16 %v563
        %v632 = vunpack.c.h.b16 %v563
        %v633 = vunpack.c.l.b16 %v564
        %v634 = vunpack.c.h.b16 %v564
        %v635 = vunpack.c.l.b16 %v565
        %v636 = vunpack.c.h.b16 %v565
        %v637 = vunpack.c.l.b16 %v566
        %v638 = vunpack.c.h.b16 %v566
        %v639 = vunpack.c.l.b16 %v567
        %v640 = vunpack.c.h.b16 %v567
        %v641 = vunpack.c.l.b16 %v568
        %v642 = vunpack.c.h.b16 %v568
        %v643 = vunpack.c.l.b16 %v569
        %v644 = vunpack.c.h.b16 %v569
        %v645 = vunpack.c.l.b16 %v570
        %v646 = vunpack.c.h.b16 %v570
        %v647 = vunpack.c.l.b16 %v571
        %v648 = vunpack.c.h.b16 %v571
        %v649 = vunpack.c.l.b16 %v572
        %v650 = vunpack.c.h.b16 %v572
        %v651 = vunpack.c.l.b16 %v573
        %v652 = vunpack.c.h.b16 %v573
        %v653 = vunpack.c.l.b16 %v574
        %v654 = vunpack.c.h.b16 %v574
        %v655 = vunpack.c.l.b16 %v575
        %v656 = vunpack.c.h.b16 %v575
        %v657 = vunpack.c.l.b16 %v576
        %v658 = vunpack.c.h.b16 %v576
        %v659 = vunpack.c.l.b16 %v577
        %v660 = vunpack.c.h.b16 %v577
        %v661 = vunpack.c.l.b16 %v578
        %v662 = vunpack.c.h.b16 %v578
        %v663 = vunpack.c.l.b16 %v579
        %v664 = vunpack.c.h.b16 %v579
        %v665 = vunpack.c.l.b16 %v580
        %v666 = vunpack.c.h.b16 %v580
        %v667 = vunpack.c.l.b16 %v581
        %v668 = vunpack.c.h.b16 %v581
        %v669 = vunpack.c.l.b16 %v582
        %v670 = vunpack.c.h.b16 %v582
        %v671 = vunpack.c.l.b16 %v583
        %v672 = vunpack.c.h.b16 %v583
        %v673 = vunpack.c.l.b16 %v584
        %v674 = vunpack.c.h.b16 %v584
        %v675 = vunpack.c.l.b16 %v585
        %v676 = vunpack.c.h.b16 %v585
        %v677 = vunpack.c.l.b16 %v586
        %v678 = vunpack.c.h.b16 %v586
        %v679 = vunpack.c.l.b16 %v587
        %v680 = vunpack.c.h.b16 %v587
        %v681 = vunpack.c.l.b16 %v588
        %v682 = vunpack.c.h.b16 %v588
        %v683 = vunpack.c.l.b16 %v589
        %v684 = vunpack.c.h.b16 %v589
        %v685 = vunpack.c.l.b16 %v590
        %v686 = vunpack.c.h.b16 %v590
        %v687 = vpack.c.b16 %v627, %v623
        %v688 = vpack.c.b16 %v628, %v624
        %v689 = vpack.c.b16 %v629, %v625
        %v690 = vpack.c.b16 %v630, %v626
        %v691 = vpack.c.b16 %v635, %v631
        %v692 = vpack.c.b16 %v636, %v632
        %v693 = vpack.c.b16 %v637, %v633
        %v694 = vpack.c.b16 %v638, %v634
        %v695 = vpack.c.b16 %v643, %v639
        %v696 = vpack.c.b16 %v644, %v640
        %v697 = vpack.c.b16 %v645, %v641
        %v698 = vpack.c.b16 %v646, %v642
        %v699 = vpack.c.b16 %v651, %v647
        %v700 = vpack.c.b16 %v652, %v648
        %v701 = vpack.c.b16 %v653, %v649
        %v702 = vpack.c.b16 %v654, %v650
        %v703 = vpack.c.b16 %v659, %v655
        %v704 = vpack.c.b16 %v660, %v656
        %v705 = vpack.c.b16 %v661, %v657
        %v706 = vpack.c.b16 %v662, %v658
        %v707 = vpack.c.b16 %v667, %v663
        %v708 = vpack.c.b16 %v668, %v664
        %v709 = vpack.c.b16 %v669, %v665
        %v710 = vpack.c.b16 %v670, %v666
        %v711 = vpack.c.b16 %v675, %v671
        %v712 = vpack.c.b16 %v676, %v672
        %v713 = vpack.c.b16 %v677, %v673
        %v714 = vpack.c.b16 %v678, %v674
        %v715 = vpack.c.b16 %v683, %v679
        %v716 = vpack.c.b16 %v684, %v680
        %v717 = vpack.c.b16 %v685, %v681
        %v718 = vpack.c.b16 %v686, %v682
        %751 = vmatpush.bf16.msra.mxu0 %v715
        %752 = vmatpush.bf16.msra.mxu0 %v711
        %753 = vmatpush.bf16.msra.mxu0 %v707
        %754 = vmatpush.bf16.msra.mxu0 %v703
        %755 = vmatpush.bf16.msra.mxu0 %v699
        %756 = vmatpush.bf16.msra.mxu0 %v695
        %757 = vmatpush.bf16.msra.mxu0 %v691
        %758 = vmatpush.bf16.msra.mxu0 %v687
        %759 = vmatmul.bf16.gmra.mxu0 %v558
        %v760 = vpop.f32.mrf.mxu0
        %v761 = vadd.f32 0.0, %v760
        %v762 = vpop.f32.mrf.mxu0
        %763 = vdwg.mxu0
        %764 = vmatpush.bf16.msra.mxu0 %v716
        %765 = vmatpush.bf16.msra.mxu0 %v712
        %766 = vmatpush.bf16.msra.mxu0 %v708
        %767 = vmatpush.bf16.msra.mxu0 %v704
        %768 = vmatpush.bf16.msra.mxu0 %v700
        %769 = vmatpush.bf16.msra.mxu0 %v696
        %770 = vmatpush.bf16.msra.mxu0 %v692
        %771 = vmatpush.bf16.msra.mxu0 %v688
        %772 = vmatmul.bf16.gmra.mxu0 %v558
        %v773 = vpop.f32.mrf.mxu0
        %v774 = vadd.f32 0.0, %v773
        %v775 = vpop.f32.mrf.mxu0
        %776 = vdwg.mxu0
        %777 = vmatpush.bf16.msra.mxu0 %v717
        %778 = vmatpush.bf16.msra.mxu0 %v713
        %779 = vmatpush.bf16.msra.mxu0 %v709
        %780 = vmatpush.bf16.msra.mxu0 %v705
        %781 = vmatpush.bf16.msra.mxu0 %v701
        %782 = vmatpush.bf16.msra.mxu0 %v697
        %783 = vmatpush.bf16.msra.mxu0 %v693
        %784 = vmatpush.bf16.msra.mxu0 %v689
        %785 = vmatmul.bf16.gmra.mxu0 %v558
        %v786 = vpop.f32.mrf.mxu0
        %v787 = vadd.f32 0.0, %v786
        %v788 = vpop.f32.mrf.mxu0
        %789 = vdwg.mxu0
        %790 = vmatpush.bf16.msra.mxu0 %v718
        %791 = vmatpush.bf16.msra.mxu0 %v714
        %792 = vmatpush.bf16.msra.mxu0 %v710
        %793 = vmatpush.bf16.msra.mxu0 %v706
        %794 = vmatpush.bf16.msra.mxu0 %v702
        %795 = vmatpush.bf16.msra.mxu0 %v698
        %796 = vmatpush.bf16.msra.mxu0 %v694
        %797 = vmatpush.bf16.msra.mxu0 %v690
        %798 = vmatmul.bf16.gmra.mxu0 %v558
        %v799 = vpop.f32.mrf.mxu0
        %v800 = vadd.f32 0.0, %v799
        %v801 = vpop.f32.mrf.mxu0
        %802 = vdwg.mxu0
        %v803 = vadd.f32 %v554, %v761
        %v804 = vadd.f32 %v555, %v774
        %v805 = vadd.f32 %v556, %v787
        %v806 = vadd.f32 %v557, %v800
        %v807 = vxor.u32 %v803, 2147483648
        %v808 = vmul.f32 %v807, 1.442695
        %v809 = vpow.pop %v808
        %v810 = vadd.f32 %v809, 1.0
        %v811 = vrcp.pop %v810
        %v812 = vmul.f32 %v810, %v811
        %v813 = vsub.f32 1.0, %v812
        %v814 = vmul.f32 %v811, %v813
        %v815 = vadd.f32 %v811, %v814
        %vm816 = vweird.f32 %v810
        %vm817 = vweird.f32 %v811
        %vm818 = vmor %vm816, %vm817
        %v819 = vsel %vm818, %v811, %v815
        %v820 = vand.u32 2147483647, %v810
        %vm821 = vcmp.eq.f32.partialorder %v820, 8.507059e+37
        %v822 = vand.u32 %v810, 2147483648
        %v823 = vor.u32 1.1754944e-38, %v822
        %v824 = vsel %vm821, %v823, %v819
        %v825 = vmul.f32 1.0, %v824
        %v826 = vxor.u32 %v804, 2147483648
        %v827 = vmul.f32 %v826, 1.442695
        %v828 = vpow.pop %v827
        %v829 = vadd.f32 %v828, 1.0
        %v830 = vrcp.pop %v829
        %v831 = vmul.f32 %v829, %v830
        %v832 = vsub.f32 1.0, %v831
        %v833 = vmul.f32 %v830, %v832
        %v834 = vadd.f32 %v830, %v833
        %vm835 = vweird.f32 %v829
        %vm836 = vweird.f32 %v830
        %vm837 = vmor %vm835, %vm836
        %v838 = vsel %vm837, %v830, %v834
        %v839 = vand.u32 2147483647, %v829
        %vm840 = vcmp.eq.f32.partialorder %v839, 8.507059e+37
        %v841 = vand.u32 %v829, 2147483648
        %v842 = vor.u32 1.1754944e-38, %v841
        %v843 = vsel %vm840, %v842, %v838
        %v844 = vmul.f32 1.0, %v843
        %v845 = vtanh.pop %v805
        %v846 = vxor.u32 %v806, 2147483648
        %v847 = vmul.f32 %v846, 1.442695
        %v848 = vpow.pop %v847
        %v849 = vadd.f32 %v848, 1.0
        %v850 = vrcp.pop %v849
        %v851 = vmul.f32 %v849, %v850
        %v852 = vsub.f32 1.0, %v851
        %v853 = vmul.f32 %v850, %v852
        %v854 = vadd.f32 %v850, %v853
        %vm855 = vweird.f32 %v849
        %vm856 = vweird.f32 %v850
        %vm857 = vmor %vm855, %vm856
        %v858 = vsel %vm857, %v850, %v854
        %v859 = vand.u32 2147483647, %v849
        %vm860 = vcmp.eq.f32.partialorder %v859, 8.507059e+37
        %v861 = vand.u32 %v849, 2147483648
        %v862 = vor.u32 1.1754944e-38, %v861
        %v863 = vsel %vm860, %v862, %v858
        %v864 = vmul.f32 1.0, %v863
        %v865 = vmul.f32 %v844, %v550
        %v866 = vmul.f32 %v825, %v845
        %v867 = vadd.f32 %v865, %v866
        %v868 = vtanh.pop %v867
        %v869 = vmul.f32 %v864, %v868
        %870 = vst [vmem:[#allocation3] sm:$0xff] %v869
        %s871 = smul.u32 1, 4
        %s872 = smul.addr %s871, 8
        %s873 = scalar_lea.vmem [#allocation2], %s872
        %v874 = vld [vmem:[%s873] sm:$0xff]
        %v875 = vld [vmem:[%s873 + $0x8] sm:$0xff]
        %v876 = vld [vmem:[%s873 + $0x10] sm:$0xff]
        %v877 = vld [vmem:[%s873 + $0x18] sm:$0xff]
        %v878 = vpack.c.bf16 %v869, %v869
        %v879 = vld [vmem:[#allocation9] sm:$0xff]
        %v880 = vld [vmem:[#allocation9 + $0x8] sm:$0xff]
        %v881 = vld [vmem:[#allocation9 + $0x10] sm:$0xff]
        %v882 = vld [vmem:[#allocation9 + $0x18] sm:$0xff]
        %v883 = vld [vmem:[#allocation9 + $0x20] sm:$0xff]
        %v884 = vld [vmem:[#allocation9 + $0x28] sm:$0xff]
        %v885 = vld [vmem:[#allocation9 + $0x30] sm:$0xff]
        %v886 = vld [vmem:[#allocation9 + $0x38] sm:$0xff]
        %v887 = vld [vmem:[#allocation9 + $0x40] sm:$0xff]
        %v888 = vld [vmem:[#allocation9 + $0x48] sm:$0xff]
        %v889 = vld [vmem:[#allocation9 + $0x50] sm:$0xff]
        %v890 = vld [vmem:[#allocation9 + $0x58] sm:$0xff]
        %v891 = vld [vmem:[#allocation9 + $0x60] sm:$0xff]
        %v892 = vld [vmem:[#allocation9 + $0x68] sm:$0xff]
        %v893 = vld [vmem:[#allocation9 + $0x70] sm:$0xff]
        %v894 = vld [vmem:[#allocation9 + $0x78] sm:$0xff]
        %v895 = vld [vmem:[#allocation9 + $0x80] sm:$0xff]
        %v896 = vld [vmem:[#allocation9 + $0x88] sm:$0xff]
        %v897 = vld [vmem:[#allocation9 + $0x90] sm:$0xff]
        %v898 = vld [vmem:[#allocation9 + $0x98] sm:$0xff]
        %v899 = vld [vmem:[#allocation9 + $0xa0] sm:$0xff]
        %v900 = vld [vmem:[#allocation9 + $0xa8] sm:$0xff]
        %v901 = vld [vmem:[#allocation9 + $0xb0] sm:$0xff]
        %v902 = vld [vmem:[#allocation9 + $0xb8] sm:$0xff]
        %v903 = vld [vmem:[#allocation9 + $0xc0] sm:$0xff]
        %v904 = vld [vmem:[#allocation9 + $0xc8] sm:$0xff]
        %v905 = vld [vmem:[#allocation9 + $0xd0] sm:$0xff]
        %v906 = vld [vmem:[#allocation9 + $0xd8] sm:$0xff]
        %v907 = vld [vmem:[#allocation9 + $0xe0] sm:$0xff]
        %v908 = vld [vmem:[#allocation9 + $0xe8] sm:$0xff]
        %v909 = vld [vmem:[#allocation9 + $0xf0] sm:$0xff]
        %v910 = vld [vmem:[#allocation9 + $0xf8] sm:$0xff]
        %v943 = vunpack.c.l.b16 %v879
        %v944 = vunpack.c.h.b16 %v879
        %v945 = vunpack.c.l.b16 %v880
        %v946 = vunpack.c.h.b16 %v880
        %v947 = vunpack.c.l.b16 %v881
        %v948 = vunpack.c.h.b16 %v881
        %v949 = vunpack.c.l.b16 %v882
        %v950 = vunpack.c.h.b16 %v882
        %v951 = vunpack.c.l.b16 %v883
        %v952 = vunpack.c.h.b16 %v883
        %v953 = vunpack.c.l.b16 %v884
        %v954 = vunpack.c.h.b16 %v884
        %v955 = vunpack.c.l.b16 %v885
        %v956 = vunpack.c.h.b16 %v885
        %v957 = vunpack.c.l.b16 %v886
        %v958 = vunpack.c.h.b16 %v886
        %v959 = vunpack.c.l.b16 %v887
        %v960 = vunpack.c.h.b16 %v887
        %v961 = vunpack.c.l.b16 %v888
        %v962 = vunpack.c.h.b16 %v888
        %v963 = vunpack.c.l.b16 %v889
        %v964 = vunpack.c.h.b16 %v889
        %v965 = vunpack.c.l.b16 %v890
        %v966 = vunpack.c.h.b16 %v890
        %v967 = vunpack.c.l.b16 %v891
        %v968 = vunpack.c.h.b16 %v891
        %v969 = vunpack.c.l.b16 %v892
        %v970 = vunpack.c.h.b16 %v892
        %v971 = vunpack.c.l.b16 %v893
        %v972 = vunpack.c.h.b16 %v893
        %v973 = vunpack.c.l.b16 %v894
        %v974 = vunpack.c.h.b16 %v894
        %v975 = vunpack.c.l.b16 %v895
        %v976 = vunpack.c.h.b16 %v895
        %v977 = vunpack.c.l.b16 %v896
        %v978 = vunpack.c.h.b16 %v896
        %v979 = vunpack.c.l.b16 %v897
        %v980 = vunpack.c.h.b16 %v897
        %v981 = vunpack.c.l.b16 %v898
        %v982 = vunpack.c.h.b16 %v898
        %v983 = vunpack.c.l.b16 %v899
        %v984 = vunpack.c.h.b16 %v899
        %v985 = vunpack.c.l.b16 %v900
        %v986 = vunpack.c.h.b16 %v900
        %v987 = vunpack.c.l.b16 %v901
        %v988 = vunpack.c.h.b16 %v901
        %v989 = vunpack.c.l.b16 %v902
        %v990 = vunpack.c.h.b16 %v902
        %v991 = vunpack.c.l.b16 %v903
        %v992 = vunpack.c.h.b16 %v903
        %v993 = vunpack.c.l.b16 %v904
        %v994 = vunpack.c.h.b16 %v904
        %v995 = vunpack.c.l.b16 %v905
        %v996 = vunpack.c.h.b16 %v905
        %v997 = vunpack.c.l.b16 %v906
        %v998 = vunpack.c.h.b16 %v906
        %v999 = vunpack.c.l.b16 %v907
        %v1000 = vunpack.c.h.b16 %v907
        %v1001 = vunpack.c.l.b16 %v908
        %v1002 = vunpack.c.h.b16 %v908
        %v1003 = vunpack.c.l.b16 %v909
        %v1004 = vunpack.c.h.b16 %v909
        %v1005 = vunpack.c.l.b16 %v910
        %v1006 = vunpack.c.h.b16 %v910
        %v1007 = vpack.c.b16 %v947, %v943
        %v1008 = vpack.c.b16 %v948, %v944
        %v1009 = vpack.c.b16 %v949, %v945
        %v1010 = vpack.c.b16 %v950, %v946
        %v1011 = vpack.c.b16 %v955, %v951
        %v1012 = vpack.c.b16 %v956, %v952
        %v1013 = vpack.c.b16 %v957, %v953
        %v1014 = vpack.c.b16 %v958, %v954
        %v1015 = vpack.c.b16 %v963, %v959
        %v1016 = vpack.c.b16 %v964, %v960
        %v1017 = vpack.c.b16 %v965, %v961
        %v1018 = vpack.c.b16 %v966, %v962
        %v1019 = vpack.c.b16 %v971, %v967
        %v1020 = vpack.c.b16 %v972, %v968
        %v1021 = vpack.c.b16 %v973, %v969
        %v1022 = vpack.c.b16 %v974, %v970
        %v1023 = vpack.c.b16 %v979, %v975
        %v1024 = vpack.c.b16 %v980, %v976
        %v1025 = vpack.c.b16 %v981, %v977
        %v1026 = vpack.c.b16 %v982, %v978
        %v1027 = vpack.c.b16 %v987, %v983
        %v1028 = vpack.c.b16 %v988, %v984
        %v1029 = vpack.c.b16 %v989, %v985
        %v1030 = vpack.c.b16 %v990, %v986
        %v1031 = vpack.c.b16 %v995, %v991
        %v1032 = vpack.c.b16 %v996, %v992
        %v1033 = vpack.c.b16 %v997, %v993
        %v1034 = vpack.c.b16 %v998, %v994
        %v1035 = vpack.c.b16 %v1003, %v999
        %v1036 = vpack.c.b16 %v1004, %v1000
        %v1037 = vpack.c.b16 %v1005, %v1001
        %v1038 = vpack.c.b16 %v1006, %v1002
        %1071 = vmatpush.bf16.msra.mxu0 %v1035
        %1072 = vmatpush.bf16.msra.mxu0 %v1031
        %1073 = vmatpush.bf16.msra.mxu0 %v1027
        %1074 = vmatpush.bf16.msra.mxu0 %v1023
        %1075 = vmatpush.bf16.msra.mxu0 %v1019
        %1076 = vmatpush.bf16.msra.mxu0 %v1015
        %1077 = vmatpush.bf16.msra.mxu0 %v1011
        %1078 = vmatpush.bf16.msra.mxu0 %v1007
        %1079 = vmatmul.bf16.gmra.mxu0 %v878
        %v1080 = vpop.f32.mrf.mxu0
        %v1081 = vadd.f32 0.0, %v1080
        %v1082 = vpop.f32.mrf.mxu0
        %1083 = vdwg.mxu0
        %1084 = vmatpush.bf16.msra.mxu0 %v1036
        %1085 = vmatpush.bf16.msra.mxu0 %v1032
        %1086 = vmatpush.bf16.msra.mxu0 %v1028
        %1087 = vmatpush.bf16.msra.mxu0 %v1024
        %1088 = vmatpush.bf16.msra.mxu0 %v1020
        %1089 = vmatpush.bf16.msra.mxu0 %v1016
        %1090 = vmatpush.bf16.msra.mxu0 %v1012
        %1091 = vmatpush.bf16.msra.mxu0 %v1008
        %1092 = vmatmul.bf16.gmra.mxu0 %v878
        %v1093 = vpop.f32.mrf.mxu0
        %v1094 = vadd.f32 0.0, %v1093
        %v1095 = vpop.f32.mrf.mxu0
        %1096 = vdwg.mxu0
        %1097 = vmatpush.bf16.msra.mxu0 %v1037
        %1098 = vmatpush.bf16.msra.mxu0 %v1033
        %1099 = vmatpush.bf16.msra.mxu0 %v1029
        %1100 = vmatpush.bf16.msra.mxu0 %v1025
        %1101 = vmatpush.bf16.msra.mxu0 %v1021
        %1102 = vmatpush.bf16.msra.mxu0 %v1017
        %1103 = vmatpush.bf16.msra.mxu0 %v1013
        %1104 = vmatpush.bf16.msra.mxu0 %v1009
        %1105 = vmatmul.bf16.gmra.mxu0 %v878
        %v1106 = vpop.f32.mrf.mxu0
        %v1107 = vadd.f32 0.0, %v1106
        %v1108 = vpop.f32.mrf.mxu0
        %1109 = vdwg.mxu0
        %1110 = vmatpush.bf16.msra.mxu0 %v1038
        %1111 = vmatpush.bf16.msra.mxu0 %v1034
        %1112 = vmatpush.bf16.msra.mxu0 %v1030
        %1113 = vmatpush.bf16.msra.mxu0 %v1026
        %1114 = vmatpush.bf16.msra.mxu0 %v1022
        %1115 = vmatpush.bf16.msra.mxu0 %v1018
        %1116 = vmatpush.bf16.msra.mxu0 %v1014
        %1117 = vmatpush.bf16.msra.mxu0 %v1010
        %1118 = vmatmul.bf16.gmra.mxu0 %v878
        %v1119 = vpop.f32.mrf.mxu0
        %v1120 = vadd.f32 0.0, %v1119
        %v1121 = vpop.f32.mrf.mxu0
        %1122 = vdwg.mxu0
        %v1123 = vadd.f32 %v874, %v1081
        %v1124 = vadd.f32 %v875, %v1094
        %v1125 = vadd.f32 %v876, %v1107
        %v1126 = vadd.f32 %v877, %v1120
        %v1127 = vxor.u32 %v1123, 2147483648
        %v1128 = vmul.f32 %v1127, 1.442695
        %v1129 = vpow.pop %v1128
        %v1130 = vadd.f32 %v1129, 1.0
        %v1131 = vrcp.pop %v1130
        %v1132 = vmul.f32 %v1130, %v1131
        %v1133 = vsub.f32 1.0, %v1132
        %v1134 = vmul.f32 %v1131, %v1133
        %v1135 = vadd.f32 %v1131, %v1134
        %vm1136 = vweird.f32 %v1130
        %vm1137 = vweird.f32 %v1131
        %vm1138 = vmor %vm1136, %vm1137
        %v1139 = vsel %vm1138, %v1131, %v1135
        %v1140 = vand.u32 2147483647, %v1130
        %vm1141 = vcmp.eq.f32.partialorder %v1140, 8.507059e+37
        %v1142 = vand.u32 %v1130, 2147483648
        %v1143 = vor.u32 1.1754944e-38, %v1142
        %v1144 = vsel %vm1141, %v1143, %v1139
        %v1145 = vmul.f32 1.0, %v1144
        %v1146 = vxor.u32 %v1124, 2147483648
        %v1147 = vmul.f32 %v1146, 1.442695
        %v1148 = vpow.pop %v1147
        %v1149 = vadd.f32 %v1148, 1.0
        %v1150 = vrcp.pop %v1149
        %v1151 = vmul.f32 %v1149, %v1150
        %v1152 = vsub.f32 1.0, %v1151
        %v1153 = vmul.f32 %v1150, %v1152
        %v1154 = vadd.f32 %v1150, %v1153
        %vm1155 = vweird.f32 %v1149
        %vm1156 = vweird.f32 %v1150
        %vm1157 = vmor %vm1155, %vm1156
        %v1158 = vsel %vm1157, %v1150, %v1154
        %v1159 = vand.u32 2147483647, %v1149
        %vm1160 = vcmp.eq.f32.partialorder %v1159, 8.507059e+37
        %v1161 = vand.u32 %v1149, 2147483648
        %v1162 = vor.u32 1.1754944e-38, %v1161
        %v1163 = vsel %vm1160, %v1162, %v1158
        %v1164 = vmul.f32 1.0, %v1163
        %v1165 = vtanh.pop %v1125
        %v1166 = vxor.u32 %v1126, 2147483648
        %v1167 = vmul.f32 %v1166, 1.442695
        %v1168 = vpow.pop %v1167
        %v1169 = vadd.f32 %v1168, 1.0
        %v1170 = vrcp.pop %v1169
        %v1171 = vmul.f32 %v1169, %v1170
        %v1172 = vsub.f32 1.0, %v1171
        %v1173 = vmul.f32 %v1170, %v1172
        %v1174 = vadd.f32 %v1170, %v1173
        %vm1175 = vweird.f32 %v1169
        %vm1176 = vweird.f32 %v1170
        %vm1177 = vmor %vm1175, %vm1176
        %v1178 = vsel %vm1177, %v1170, %v1174
        %v1179 = vand.u32 2147483647, %v1169
        %vm1180 = vcmp.eq.f32.partialorder %v1179, 8.507059e+37
        %v1181 = vand.u32 %v1169, 2147483648
        %v1182 = vor.u32 1.1754944e-38, %v1181
        %v1183 = vsel %vm1180, %v1182, %v1178
        %v1184 = vmul.f32 1.0, %v1183
        %v1185 = vmul.f32 %v1164, %v867
        %v1186 = vmul.f32 %v1145, %v1165
        %v1187 = vadd.f32 %v1185, %v1186
        %v1188 = vtanh.pop %v1187
        %v1189 = vmul.f32 %v1184, %v1188
        %s1190 = scalar_lea.vmem [#allocation3], 8
        %1191 = vst [vmem:[%s1190] sm:$0xff] %v1189
        %s1192 = smul.u32 2, 4
        %s1193 = smul.addr %s1192, 8
        %s1194 = scalar_lea.vmem [#allocation2], %s1193
        %v1195 = vld [vmem:[%s1194] sm:$0xff]
        %v1196 = vld [vmem:[%s1194 + $0x8] sm:$0xff]
        %v1197 = vld [vmem:[%s1194 + $0x10] sm:$0xff]
        %v1198 = vld [vmem:[%s1194 + $0x18] sm:$0xff]
        %v1199 = vpack.c.bf16 %v1189, %v1189
        %v1200 = vld [vmem:[#allocation9] sm:$0xff]
        %v1201 = vld [vmem:[#allocation9 + $0x8] sm:$0xff]
        %v1202 = vld [vmem:[#allocation9 + $0x10] sm:$0xff]
        %v1203 = vld [vmem:[#allocation9 + $0x18] sm:$0xff]
        %v1204 = vld [vmem:[#allocation9 + $0x20] sm:$0xff]
        %v1205 = vld [vmem:[#allocation9 + $0x28] sm:$0xff]
        %v1206 = vld [vmem:[#allocation9 + $0x30] sm:$0xff]
        %v1207 = vld [vmem:[#allocation9 + $0x38] sm:$0xff]
        %v1208 = vld [vmem:[#allocation9 + $0x40] sm:$0xff]
        %v1209 = vld [vmem:[#allocation9 + $0x48] sm:$0xff]
        %v1210 = vld [vmem:[#allocation9 + $0x50] sm:$0xff]
        %v1211 = vld [vmem:[#allocation9 + $0x58] sm:$0xff]
        %v1212 = vld [vmem:[#allocation9 + $0x60] sm:$0xff]
        %v1213 = vld [vmem:[#allocation9 + $0x68] sm:$0xff]
        %v1214 = vld [vmem:[#allocation9 + $0x70] sm:$0xff]
        %v1215 = vld [vmem:[#allocation9 + $0x78] sm:$0xff]
        %v1216 = vld [vmem:[#allocation9 + $0x80] sm:$0xff]
        %v1217 = vld [vmem:[#allocation9 + $0x88] sm:$0xff]
        %v1218 = vld [vmem:[#allocation9 + $0x90] sm:$0xff]
        %v1219 = vld [vmem:[#allocation9 + $0x98] sm:$0xff]
        %v1220 = vld [vmem:[#allocation9 + $0xa0] sm:$0xff]
        %v1221 = vld [vmem:[#allocation9 + $0xa8] sm:$0xff]
        %v1222 = vld [vmem:[#allocation9 + $0xb0] sm:$0xff]
        %v1223 = vld [vmem:[#allocation9 + $0xb8] sm:$0xff]
        %v1224 = vld [vmem:[#allocation9 + $0xc0] sm:$0xff]
        %v1225 = vld [vmem:[#allocation9 + $0xc8] sm:$0xff]
        %v1226 = vld [vmem:[#allocation9 + $0xd0] sm:$0xff]
        %v1227 = vld [vmem:[#allocation9 + $0xd8] sm:$0xff]
        %v1228 = vld [vmem:[#allocation9 + $0xe0] sm:$0xff]
        %v1229 = vld [vmem:[#allocation9 + $0xe8] sm:$0xff]
        %v1230 = vld [vmem:[#allocation9 + $0xf0] sm:$0xff]
        %v1231 = vld [vmem:[#allocation9 + $0xf8] sm:$0xff]
        %v1264 = vunpack.c.l.b16 %v1200
        %v1265 = vunpack.c.h.b16 %v1200
        %v1266 = vunpack.c.l.b16 %v1201
        %v1267 = vunpack.c.h.b16 %v1201
        %v1268 = vunpack.c.l.b16 %v1202
        %v1269 = vunpack.c.h.b16 %v1202
        %v1270 = vunpack.c.l.b16 %v1203
        %v1271 = vunpack.c.h.b16 %v1203
        %v1272 = vunpack.c.l.b16 %v1204
        %v1273 = vunpack.c.h.b16 %v1204
        %v1274 = vunpack.c.l.b16 %v1205
        %v1275 = vunpack.c.h.b16 %v1205
        %v1276 = vunpack.c.l.b16 %v1206
        %v1277 = vunpack.c.h.b16 %v1206
        %v1278 = vunpack.c.l.b16 %v1207
        %v1279 = vunpack.c.h.b16 %v1207
        %v1280 = vunpack.c.l.b16 %v1208
        %v1281 = vunpack.c.h.b16 %v1208
        %v1282 = vunpack.c.l.b16 %v1209
        %v1283 = vunpack.c.h.b16 %v1209
        %v1284 = vunpack.c.l.b16 %v1210
        %v1285 = vunpack.c.h.b16 %v1210
        %v1286 = vunpack.c.l.b16 %v1211
        %v1287 = vunpack.c.h.b16 %v1211
        %v1288 = vunpack.c.l.b16 %v1212
        %v1289 = vunpack.c.h.b16 %v1212
        %v1290 = vunpack.c.l.b16 %v1213
        %v1291 = vunpack.c.h.b16 %v1213
        %v1292 = vunpack.c.l.b16 %v1214
        %v1293 = vunpack.c.h.b16 %v1214
        %v1294 = vunpack.c.l.b16 %v1215
        %v1295 = vunpack.c.h.b16 %v1215
        %v1296 = vunpack.c.l.b16 %v1216
        %v1297 = vunpack.c.h.b16 %v1216
        %v1298 = vunpack.c.l.b16 %v1217
        %v1299 = vunpack.c.h.b16 %v1217
        %v1300 = vunpack.c.l.b16 %v1218
        %v1301 = vunpack.c.h.b16 %v1218
        %v1302 = vunpack.c.l.b16 %v1219
        %v1303 = vunpack.c.h.b16 %v1219
        %v1304 = vunpack.c.l.b16 %v1220
        %v1305 = vunpack.c.h.b16 %v1220
        %v1306 = vunpack.c.l.b16 %v1221
        %v1307 = vunpack.c.h.b16 %v1221
        %v1308 = vunpack.c.l.b16 %v1222
        %v1309 = vunpack.c.h.b16 %v1222
        %v1310 = vunpack.c.l.b16 %v1223
        %v1311 = vunpack.c.h.b16 %v1223
        %v1312 = vunpack.c.l.b16 %v1224
        %v1313 = vunpack.c.h.b16 %v1224
        %v1314 = vunpack.c.l.b16 %v1225
        %v1315 = vunpack.c.h.b16 %v1225
        %v1316 = vunpack.c.l.b16 %v1226
        %v1317 = vunpack.c.h.b16 %v1226
        %v1318 = vunpack.c.l.b16 %v1227
        %v1319 = vunpack.c.h.b16 %v1227
        %v1320 = vunpack.c.l.b16 %v1228
        %v1321 = vunpack.c.h.b16 %v1228
        %v1322 = vunpack.c.l.b16 %v1229
        %v1323 = vunpack.c.h.b16 %v1229
        %v1324 = vunpack.c.l.b16 %v1230
        %v1325 = vunpack.c.h.b16 %v1230
        %v1326 = vunpack.c.l.b16 %v1231
        %v1327 = vunpack.c.h.b16 %v1231
        %v1328 = vpack.c.b16 %v1268, %v1264
        %v1329 = vpack.c.b16 %v1269, %v1265
        %v1330 = vpack.c.b16 %v1270, %v1266
        %v1331 = vpack.c.b16 %v1271, %v1267
        %v1332 = vpack.c.b16 %v1276, %v1272
        %v1333 = vpack.c.b16 %v1277, %v1273
        %v1334 = vpack.c.b16 %v1278, %v1274
        %v1335 = vpack.c.b16 %v1279, %v1275
        %v1336 = vpack.c.b16 %v1284, %v1280
        %v1337 = vpack.c.b16 %v1285, %v1281
        %v1338 = vpack.c.b16 %v1286, %v1282
        %v1339 = vpack.c.b16 %v1287, %v1283
        %v1340 = vpack.c.b16 %v1292, %v1288
        %v1341 = vpack.c.b16 %v1293, %v1289
        %v1342 = vpack.c.b16 %v1294, %v1290
        %v1343 = vpack.c.b16 %v1295, %v1291
        %v1344 = vpack.c.b16 %v1300, %v1296
        %v1345 = vpack.c.b16 %v1301, %v1297
        %v1346 = vpack.c.b16 %v1302, %v1298
        %v1347 = vpack.c.b16 %v1303, %v1299
        %v1348 = vpack.c.b16 %v1308, %v1304
        %v1349 = vpack.c.b16 %v1309, %v1305
        %v1350 = vpack.c.b16 %v1310, %v1306
        %v1351 = vpack.c.b16 %v1311, %v1307
        %v1352 = vpack.c.b16 %v1316, %v1312
        %v1353 = vpack.c.b16 %v1317, %v1313
        %v1354 = vpack.c.b16 %v1318, %v1314
        %v1355 = vpack.c.b16 %v1319, %v1315
        %v1356 = vpack.c.b16 %v1324, %v1320
        %v1357 = vpack.c.b16 %v1325, %v1321
        %v1358 = vpack.c.b16 %v1326, %v1322
        %v1359 = vpack.c.b16 %v1327, %v1323
        %1392 = vmatpush.bf16.msra.mxu0 %v1356
        %1393 = vmatpush.bf16.msra.mxu0 %v1352
        %1394 = vmatpush.bf16.msra.mxu0 %v1348
        %1395 = vmatpush.bf16.msra.mxu0 %v1344
        %1396 = vmatpush.bf16.msra.mxu0 %v1340
        %1397 = vmatpush.bf16.msra.mxu0 %v1336
        %1398 = vmatpush.bf16.msra.mxu0 %v1332
        %1399 = vmatpush.bf16.msra.mxu0 %v1328
        %1400 = vmatmul.bf16.gmra.mxu0 %v1199
        %v1401 = vpop.f32.mrf.mxu0
        %v1402 = vadd.f32 0.0, %v1401
        %v1403 = vpop.f32.mrf.mxu0
        %1404 = vdwg.mxu0
        %1405 = vmatpush.bf16.msra.mxu0 %v1357
        %1406 = vmatpush.bf16.msra.mxu0 %v1353
        %1407 = vmatpush.bf16.msra.mxu0 %v1349
        %1408 = vmatpush.bf16.msra.mxu0 %v1345
        %1409 = vmatpush.bf16.msra.mxu0 %v1341
        %1410 = vmatpush.bf16.msra.mxu0 %v1337
        %1411 = vmatpush.bf16.msra.mxu0 %v1333
        %1412 = vmatpush.bf16.msra.mxu0 %v1329
        %1413 = vmatmul.bf16.gmra.mxu0 %v1199
        %v1414 = vpop.f32.mrf.mxu0
        %v1415 = vadd.f32 0.0, %v1414
        %v1416 = vpop.f32.mrf.mxu0
        %1417 = vdwg.mxu0
        %1418 = vmatpush.bf16.msra.mxu0 %v1358
        %1419 = vmatpush.bf16.msra.mxu0 %v1354
        %1420 = vmatpush.bf16.msra.mxu0 %v1350
        %1421 = vmatpush.bf16.msra.mxu0 %v1346
        %1422 = vmatpush.bf16.msra.mxu0 %v1342
        %1423 = vmatpush.bf16.msra.mxu0 %v1338
        %1424 = vmatpush.bf16.msra.mxu0 %v1334
        %1425 = vmatpush.bf16.msra.mxu0 %v1330
        %1426 = vmatmul.bf16.gmra.mxu0 %v1199
        %v1427 = vpop.f32.mrf.mxu0
        %v1428 = vadd.f32 0.0, %v1427
        %v1429 = vpop.f32.mrf.mxu0
        %1430 = vdwg.mxu0
        %1431 = vmatpush.bf16.msra.mxu0 %v1359
        %1432 = vmatpush.bf16.msra.mxu0 %v1355
        %1433 = vmatpush.bf16.msra.mxu0 %v1351
        %1434 = vmatpush.bf16.msra.mxu0 %v1347
        %1435 = vmatpush.bf16.msra.mxu0 %v1343
        %1436 = vmatpush.bf16.msra.mxu0 %v1339
        %1437 = vmatpush.bf16.msra.mxu0 %v1335
        %1438 = vmatpush.bf16.msra.mxu0 %v1331
        %1439 = vmatmul.bf16.gmra.mxu0 %v1199
        %v1440 = vpop.f32.mrf.mxu0
        %v1441 = vadd.f32 0.0, %v1440
        %v1442 = vpop.f32.mrf.mxu0
        %1443 = vdwg.mxu0
        %v1444 = vadd.f32 %v1195, %v1402
        %v1445 = vadd.f32 %v1196, %v1415
        %v1446 = vadd.f32 %v1197, %v1428
        %v1447 = vadd.f32 %v1198, %v1441
        %v1448 = vxor.u32 %v1444, 2147483648
        %v1449 = vmul.f32 %v1448, 1.442695
        %v1450 = vpow.pop %v1449
        %v1451 = vadd.f32 %v1450, 1.0
        %v1452 = vrcp.pop %v1451
        %v1453 = vmul.f32 %v1451, %v1452
        %v1454 = vsub.f32 1.0, %v1453
        %v1455 = vmul.f32 %v1452, %v1454
        %v1456 = vadd.f32 %v1452, %v1455
        %vm1457 = vweird.f32 %v1451
        %vm1458 = vweird.f32 %v1452
        %vm1459 = vmor %vm1457, %vm1458
        %v1460 = vsel %vm1459, %v1452, %v1456
        %v1461 = vand.u32 2147483647, %v1451
        %vm1462 = vcmp.eq.f32.partialorder %v1461, 8.507059e+37
        %v1463 = vand.u32 %v1451, 2147483648
        %v1464 = vor.u32 1.1754944e-38, %v1463
        %v1465 = vsel %vm1462, %v1464, %v1460
        %v1466 = vmul.f32 1.0, %v1465
        %v1467 = vxor.u32 %v1445, 2147483648
        %v1468 = vmul.f32 %v1467, 1.442695
        %v1469 = vpow.pop %v1468
        %v1470 = vadd.f32 %v1469, 1.0
        %v1471 = vrcp.pop %v1470
        %v1472 = vmul.f32 %v1470, %v1471
        %v1473 = vsub.f32 1.0, %v1472
        %v1474 = vmul.f32 %v1471, %v1473
        %v1475 = vadd.f32 %v1471, %v1474
        %vm1476 = vweird.f32 %v1470
        %vm1477 = vweird.f32 %v1471
        %vm1478 = vmor %vm1476, %vm1477
        %v1479 = vsel %vm1478, %v1471, %v1475
        %v1480 = vand.u32 2147483647, %v1470
        %vm1481 = vcmp.eq.f32.partialorder %v1480, 8.507059e+37
        %v1482 = vand.u32 %v1470, 2147483648
        %v1483 = vor.u32 1.1754944e-38, %v1482
        %v1484 = vsel %vm1481, %v1483, %v1479
        %v1485 = vmul.f32 1.0, %v1484
        %v1486 = vtanh.pop %v1446
        %v1487 = vxor.u32 %v1447, 2147483648
        %v1488 = vmul.f32 %v1487, 1.442695
        %v1489 = vpow.pop %v1488
        %v1490 = vadd.f32 %v1489, 1.0
        %v1491 = vrcp.pop %v1490
        %v1492 = vmul.f32 %v1490, %v1491
        %v1493 = vsub.f32 1.0, %v1492
        %v1494 = vmul.f32 %v1491, %v1493
        %v1495 = vadd.f32 %v1491, %v1494
        %vm1496 = vweird.f32 %v1490
        %vm1497 = vweird.f32 %v1491
        %vm1498 = vmor %vm1496, %vm1497
        %v1499 = vsel %vm1498, %v1491, %v1495
        %v1500 = vand.u32 2147483647, %v1490
        %vm1501 = vcmp.eq.f32.partialorder %v1500, 8.507059e+37
        %v1502 = vand.u32 %v1490, 2147483648
        %v1503 = vor.u32 1.1754944e-38, %v1502
        %v1504 = vsel %vm1501, %v1503, %v1499
        %v1505 = vmul.f32 1.0, %v1504
        %v1506 = vmul.f32 %v1485, %v1187
        %v1507 = vmul.f32 %v1466, %v1486
        %v1508 = vadd.f32 %v1506, %v1507
        %v1509 = vtanh.pop %v1508
        %v1510 = vmul.f32 %v1505, %v1509
        %s1511 = scalar_lea.vmem [#allocation3], 16
        %1512 = vst [vmem:[%s1511] sm:$0xff] %v1510
        %s1513 = smul.u32 3, 4
        %s1514 = smul.addr %s1513, 8
        %s1515 = scalar_lea.vmem [#allocation2], %s1514
        %v1516 = vld [vmem:[%s1515] sm:$0xff]
        %v1517 = vld [vmem:[%s1515 + $0x8] sm:$0xff]
        %v1518 = vld [vmem:[%s1515 + $0x10] sm:$0xff]
        %v1519 = vld [vmem:[%s1515 + $0x18] sm:$0xff]
        %v1520 = vpack.c.bf16 %v1510, %v1510
        %v1521 = vld [vmem:[#allocation9] sm:$0xff]
        %v1522 = vld [vmem:[#allocation9 + $0x8] sm:$0xff]
        %v1523 = vld [vmem:[#allocation9 + $0x10] sm:$0xff]
        %v1524 = vld [vmem:[#allocation9 + $0x18] sm:$0xff]
        %v1525 = vld [vmem:[#allocation9 + $0x20] sm:$0xff]
        %v1526 = vld [vmem:[#allocation9 + $0x28] sm:$0xff]
        %v1527 = vld [vmem:[#allocation9 + $0x30] sm:$0xff]
        %v1528 = vld [vmem:[#allocation9 + $0x38] sm:$0xff]
        %v1529 = vld [vmem:[#allocation9 + $0x40] sm:$0xff]
        %v1530 = vld [vmem:[#allocation9 + $0x48] sm:$0xff]
        %v1531 = vld [vmem:[#allocation9 + $0x50] sm:$0xff]
        %v1532 = vld [vmem:[#allocation9 + $0x58] sm:$0xff]
        %v1533 = vld [vmem:[#allocation9 + $0x60] sm:$0xff]
        %v1534 = vld [vmem:[#allocation9 + $0x68] sm:$0xff]
        %v1535 = vld [vmem:[#allocation9 + $0x70] sm:$0xff]
        %v1536 = vld [vmem:[#allocation9 + $0x78] sm:$0xff]
        %v1537 = vld [vmem:[#allocation9 + $0x80] sm:$0xff]
        %v1538 = vld [vmem:[#allocation9 + $0x88] sm:$0xff]
        %v1539 = vld [vmem:[#allocation9 + $0x90] sm:$0xff]
        %v1540 = vld [vmem:[#allocation9 + $0x98] sm:$0xff]
        %v1541 = vld [vmem:[#allocation9 + $0xa0] sm:$0xff]
        %v1542 = vld [vmem:[#allocation9 + $0xa8] sm:$0xff]
        %v1543 = vld [vmem:[#allocation9 + $0xb0] sm:$0xff]
        %v1544 = vld [vmem:[#allocation9 + $0xb8] sm:$0xff]
        %v1545 = vld [vmem:[#allocation9 + $0xc0] sm:$0xff]
        %v1546 = vld [vmem:[#allocation9 + $0xc8] sm:$0xff]
        %v1547 = vld [vmem:[#allocation9 + $0xd0] sm:$0xff]
        %v1548 = vld [vmem:[#allocation9 + $0xd8] sm:$0xff]
        %v1549 = vld [vmem:[#allocation9 + $0xe0] sm:$0xff]
        %v1550 = vld [vmem:[#allocation9 + $0xe8] sm:$0xff]
        %v1551 = vld [vmem:[#allocation9 + $0xf0] sm:$0xff]
        %v1552 = vld [vmem:[#allocation9 + $0xf8] sm:$0xff]
        %v1585 = vunpack.c.l.b16 %v1521
        %v1586 = vunpack.c.h.b16 %v1521
        %v1587 = vunpack.c.l.b16 %v1522
        %v1588 = vunpack.c.h.b16 %v1522
        %v1589 = vunpack.c.l.b16 %v1523
        %v1590 = vunpack.c.h.b16 %v1523
        %v1591 = vunpack.c.l.b16 %v1524
        %v1592 = vunpack.c.h.b16 %v1524
        %v1593 = vunpack.c.l.b16 %v1525
        %v1594 = vunpack.c.h.b16 %v1525
        %v1595 = vunpack.c.l.b16 %v1526
        %v1596 = vunpack.c.h.b16 %v1526
        %v1597 = vunpack.c.l.b16 %v1527
        %v1598 = vunpack.c.h.b16 %v1527
        %v1599 = vunpack.c.l.b16 %v1528
        %v1600 = vunpack.c.h.b16 %v1528
        %v1601 = vunpack.c.l.b16 %v1529
        %v1602 = vunpack.c.h.b16 %v1529
        %v1603 = vunpack.c.l.b16 %v1530
        %v1604 = vunpack.c.h.b16 %v1530
        %v1605 = vunpack.c.l.b16 %v1531
        %v1606 = vunpack.c.h.b16 %v1531
        %v1607 = vunpack.c.l.b16 %v1532
        %v1608 = vunpack.c.h.b16 %v1532
        %v1609 = vunpack.c.l.b16 %v1533
        %v1610 = vunpack.c.h.b16 %v1533
        %v1611 = vunpack.c.l.b16 %v1534
        %v1612 = vunpack.c.h.b16 %v1534
        %v1613 = vunpack.c.l.b16 %v1535
        %v1614 = vunpack.c.h.b16 %v1535
        %v1615 = vunpack.c.l.b16 %v1536
        %v1616 = vunpack.c.h.b16 %v1536
        %v1617 = vunpack.c.l.b16 %v1537
        %v1618 = vunpack.c.h.b16 %v1537
        %v1619 = vunpack.c.l.b16 %v1538
        %v1620 = vunpack.c.h.b16 %v1538
        %v1621 = vunpack.c.l.b16 %v1539
        %v1622 = vunpack.c.h.b16 %v1539
        %v1623 = vunpack.c.l.b16 %v1540
        %v1624 = vunpack.c.h.b16 %v1540
        %v1625 = vunpack.c.l.b16 %v1541
        %v1626 = vunpack.c.h.b16 %v1541
        %v1627 = vunpack.c.l.b16 %v1542
        %v1628 = vunpack.c.h.b16 %v1542
        %v1629 = vunpack.c.l.b16 %v1543
        %v1630 = vunpack.c.h.b16 %v1543
        %v1631 = vunpack.c.l.b16 %v1544
        %v1632 = vunpack.c.h.b16 %v1544
        %v1633 = vunpack.c.l.b16 %v1545
        %v1634 = vunpack.c.h.b16 %v1545
        %v1635 = vunpack.c.l.b16 %v1546
        %v1636 = vunpack.c.h.b16 %v1546
        %v1637 = vunpack.c.l.b16 %v1547
        %v1638 = vunpack.c.h.b16 %v1547
        %v1639 = vunpack.c.l.b16 %v1548
        %v1640 = vunpack.c.h.b16 %v1548
        %v1641 = vunpack.c.l.b16 %v1549
        %v1642 = vunpack.c.h.b16 %v1549
        %v1643 = vunpack.c.l.b16 %v1550
        %v1644 = vunpack.c.h.b16 %v1550
        %v1645 = vunpack.c.l.b16 %v1551
        %v1646 = vunpack.c.h.b16 %v1551
        %v1647 = vunpack.c.l.b16 %v1552
        %v1648 = vunpack.c.h.b16 %v1552
        %v1649 = vpack.c.b16 %v1589, %v1585
        %v1650 = vpack.c.b16 %v1590, %v1586
        %v1651 = vpack.c.b16 %v1591, %v1587
        %v1652 = vpack.c.b16 %v1592, %v1588
        %v1653 = vpack.c.b16 %v1597, %v1593
        %v1654 = vpack.c.b16 %v1598, %v1594
        %v1655 = vpack.c.b16 %v1599, %v1595
        %v1656 = vpack.c.b16 %v1600, %v1596
        %v1657 = vpack.c.b16 %v1605, %v1601
        %v1658 = vpack.c.b16 %v1606, %v1602
        %v1659 = vpack.c.b16 %v1607, %v1603
        %v1660 = vpack.c.b16 %v1608, %v1604
        %v1661 = vpack.c.b16 %v1613, %v1609
        %v1662 = vpack.c.b16 %v1614, %v1610
        %v1663 = vpack.c.b16 %v1615, %v1611
        %v1664 = vpack.c.b16 %v1616, %v1612
        %v1665 = vpack.c.b16 %v1621, %v1617
        %v1666 = vpack.c.b16 %v1622, %v1618
        %v1667 = vpack.c.b16 %v1623, %v1619
        %v1668 = vpack.c.b16 %v1624, %v1620
        %v1669 = vpack.c.b16 %v1629, %v1625
        %v1670 = vpack.c.b16 %v1630, %v1626
        %v1671 = vpack.c.b16 %v1631, %v1627
        %v1672 = vpack.c.b16 %v1632, %v1628
        %v1673 = vpack.c.b16 %v1637, %v1633
        %v1674 = vpack.c.b16 %v1638, %v1634
        %v1675 = vpack.c.b16 %v1639, %v1635
        %v1676 = vpack.c.b16 %v1640, %v1636
        %v1677 = vpack.c.b16 %v1645, %v1641
        %v1678 = vpack.c.b16 %v1646, %v1642
        %v1679 = vpack.c.b16 %v1647, %v1643
        %v1680 = vpack.c.b16 %v1648, %v1644
        %1713 = vmatpush.bf16.msra.mxu0 %v1677
        %1714 = vmatpush.bf16.msra.mxu0 %v1673
        %1715 = vmatpush.bf16.msra.mxu0 %v1669
        %1716 = vmatpush.bf16.msra.mxu0 %v1665
        %1717 = vmatpush.bf16.msra.mxu0 %v1661
        %1718 = vmatpush.bf16.msra.mxu0 %v1657
        %1719 = vmatpush.bf16.msra.mxu0 %v1653
        %1720 = vmatpush.bf16.msra.mxu0 %v1649
        %1721 = vmatmul.bf16.gmra.mxu0 %v1520
        %v1722 = vpop.f32.mrf.mxu0
        %v1723 = vadd.f32 0.0, %v1722
        %v1724 = vpop.f32.mrf.mxu0
        %1725 = vdwg.mxu0
        %1726 = vmatpush.bf16.msra.mxu0 %v1678
        %1727 = vmatpush.bf16.msra.mxu0 %v1674
        %1728 = vmatpush.bf16.msra.mxu0 %v1670
        %1729 = vmatpush.bf16.msra.mxu0 %v1666
        %1730 = vmatpush.bf16.msra.mxu0 %v1662
        %1731 = vmatpush.bf16.msra.mxu0 %v1658
        %1732 = vmatpush.bf16.msra.mxu0 %v1654
        %1733 = vmatpush.bf16.msra.mxu0 %v1650
        %1734 = vmatmul.bf16.gmra.mxu0 %v1520
        %v1735 = vpop.f32.mrf.mxu0
        %v1736 = vadd.f32 0.0, %v1735
        %v1737 = vpop.f32.mrf.mxu0
        %1738 = vdwg.mxu0
        %1739 = vmatpush.bf16.msra.mxu0 %v1679
        %1740 = vmatpush.bf16.msra.mxu0 %v1675
        %1741 = vmatpush.bf16.msra.mxu0 %v1671
        %1742 = vmatpush.bf16.msra.mxu0 %v1667
        %1743 = vmatpush.bf16.msra.mxu0 %v1663
        %1744 = vmatpush.bf16.msra.mxu0 %v1659
        %1745 = vmatpush.bf16.msra.mxu0 %v1655
        %1746 = vmatpush.bf16.msra.mxu0 %v1651
        %1747 = vmatmul.bf16.gmra.mxu0 %v1520
        %v1748 = vpop.f32.mrf.mxu0
        %v1749 = vadd.f32 0.0, %v1748
        %v1750 = vpop.f32.mrf.mxu0
        %1751 = vdwg.mxu0
        %1752 = vmatpush.bf16.msra.mxu0 %v1680
        %1753 = vmatpush.bf16.msra.mxu0 %v1676
        %1754 = vmatpush.bf16.msra.mxu0 %v1672
        %1755 = vmatpush.bf16.msra.mxu0 %v1668
        %1756 = vmatpush.bf16.msra.mxu0 %v1664
        %1757 = vmatpush.bf16.msra.mxu0 %v1660
        %1758 = vmatpush.bf16.msra.mxu0 %v1656
        %1759 = vmatpush.bf16.msra.mxu0 %v1652
        %1760 = vmatmul.bf16.gmra.mxu0 %v1520
        %v1761 = vpop.f32.mrf.mxu0
        %v1762 = vadd.f32 0.0, %v1761
        %v1763 = vpop.f32.mrf.mxu0
        %1764 = vdwg.mxu0
        %v1765 = vadd.f32 %v1516, %v1723
        %v1766 = vadd.f32 %v1517, %v1736
        %v1767 = vadd.f32 %v1518, %v1749
        %v1768 = vadd.f32 %v1519, %v1762
        %v1769 = vxor.u32 %v1765, 2147483648
        %v1770 = vmul.f32 %v1769, 1.442695
        %v1771 = vpow.pop %v1770
        %v1772 = vadd.f32 %v1771, 1.0
        %v1773 = vrcp.pop %v1772
        %v1774 = vmul.f32 %v1772, %v1773
        %v1775 = vsub.f32 1.0, %v1774
        %v1776 = vmul.f32 %v1773, %v1775
        %v1777 = vadd.f32 %v1773, %v1776
        %vm1778 = vweird.f32 %v1772
        %vm1779 = vweird.f32 %v1773
        %vm1780 = vmor %vm1778, %vm1779
        %v1781 = vsel %vm1780, %v1773, %v1777
        %v1782 = vand.u32 2147483647, %v1772
        %vm1783 = vcmp.eq.f32.partialorder %v1782, 8.507059e+37
        %v1784 = vand.u32 %v1772, 2147483648
        %v1785 = vor.u32 1.1754944e-38, %v1784
        %v1786 = vsel %vm1783, %v1785, %v1781
        %v1787 = vmul.f32 1.0, %v1786
        %v1788 = vxor.u32 %v1766, 2147483648
        %v1789 = vmul.f32 %v1788, 1.442695
        %v1790 = vpow.pop %v1789
        %v1791 = vadd.f32 %v1790, 1.0
        %v1792 = vrcp.pop %v1791
        %v1793 = vmul.f32 %v1791, %v1792
        %v1794 = vsub.f32 1.0, %v1793
        %v1795 = vmul.f32 %v1792, %v1794
        %v1796 = vadd.f32 %v1792, %v1795
        %vm1797 = vweird.f32 %v1791
        %vm1798 = vweird.f32 %v1792
        %vm1799 = vmor %vm1797, %vm1798
        %v1800 = vsel %vm1799, %v1792, %v1796
        %v1801 = vand.u32 2147483647, %v1791
        %vm1802 = vcmp.eq.f32.partialorder %v1801, 8.507059e+37
        %v1803 = vand.u32 %v1791, 2147483648
        %v1804 = vor.u32 1.1754944e-38, %v1803
        %v1805 = vsel %vm1802, %v1804, %v1800
        %v1806 = vmul.f32 1.0, %v1805
        %v1807 = vtanh.pop %v1767
        %v1808 = vxor.u32 %v1768, 2147483648
        %v1809 = vmul.f32 %v1808, 1.442695
        %v1810 = vpow.pop %v1809
        %v1811 = vadd.f32 %v1810, 1.0
        %v1812 = vrcp.pop %v1811
        %v1813 = vmul.f32 %v1811, %v1812
        %v1814 = vsub.f32 1.0, %v1813
        %v1815 = vmul.f32 %v1812, %v1814
        %v1816 = vadd.f32 %v1812, %v1815
        %vm1817 = vweird.f32 %v1811
        %vm1818 = vweird.f32 %v1812
        %vm1819 = vmor %vm1817, %vm1818
        %v1820 = vsel %vm1819, %v1812, %v1816
        %v1821 = vand.u32 2147483647, %v1811
        %vm1822 = vcmp.eq.f32.partialorder %v1821, 8.507059e+37
        %v1823 = vand.u32 %v1811, 2147483648
        %v1824 = vor.u32 1.1754944e-38, %v1823
        %v1825 = vsel %vm1822, %v1824, %v1820
        %v1826 = vmul.f32 1.0, %v1825
        %v1827 = vmul.f32 %v1806, %v1508
        %v1828 = vmul.f32 %v1787, %v1807
        %v1829 = vadd.f32 %v1827, %v1828
        %v1830 = vtanh.pop %v1829
        %v1831 = vmul.f32 %v1826, %v1830
        %s1832 = scalar_lea.vmem [#allocation3], 24
        %1833 = vst [vmem:[%s1832] sm:$0xff] %v1831
        %1834 = vst [vmem:[#allocation4] sm:$0xff] %v1831
        %1835 = vst [vmem:[#allocation5] sm:$0xff] %v1829
        %v1836 = vld [vmem:[#allocation3] sm:$0xff]
        %v1837 = vld [vmem:[#allocation3 + $0x8] sm:$0xff]
        %v1838 = vld [vmem:[#allocation3 + $0x10] sm:$0xff]
        %v1839 = vld [vmem:[#allocation3 + $0x18] sm:$0xff]
        %v1840 = vpack.c.bf16 %v1837, %v1836
        %v1841 = vpack.c.bf16 %v1839, %v1838
        %v1842 = vld [vmem:[#allocation11] sm:$0xff]
        %v1843 = vld [vmem:[#allocation11 + $0x8] sm:$0xff]
        %v1844 = vld [vmem:[#allocation11 + $0x10] sm:$0xff]
        %v1845 = vld [vmem:[#allocation11 + $0x18] sm:$0xff]
        %v1846 = vld [vmem:[#allocation11 + $0x20] sm:$0xff]
        %v1847 = vld [vmem:[#allocation11 + $0x28] sm:$0xff]
        %v1848 = vld [vmem:[#allocation11 + $0x30] sm:$0xff]
        %v1849 = vld [vmem:[#allocation11 + $0x38] sm:$0xff]
        %v1850 = vld [vmem:[#allocation11 + $0x40] sm:$0xff]
        %v1851 = vld [vmem:[#allocation11 + $0x48] sm:$0xff]
        %v1852 = vld [vmem:[#allocation11 + $0x50] sm:$0xff]
        %v1853 = vld [vmem:[#allocation11 + $0x58] sm:$0xff]
        %v1854 = vld [vmem:[#allocation11 + $0x60] sm:$0xff]
        %v1855 = vld [vmem:[#allocation11 + $0x68] sm:$0xff]
        %v1856 = vld [vmem:[#allocation11 + $0x70] sm:$0xff]
        %v1857 = vld [vmem:[#allocation11 + $0x78] sm:$0xff]
        %v1858 = vld [vmem:[#allocation11 + $0x80] sm:$0xff]
        %v1859 = vld [vmem:[#allocation11 + $0x88] sm:$0xff]
        %v1860 = vld [vmem:[#allocation11 + $0x90] sm:$0xff]
        %v1861 = vld [vmem:[#allocation11 + $0x98] sm:$0xff]
        %v1862 = vld [vmem:[#allocation11 + $0xa0] sm:$0xff]
        %v1863 = vld [vmem:[#allocation11 + $0xa8] sm:$0xff]
        %v1864 = vld [vmem:[#allocation11 + $0xb0] sm:$0xff]
        %v1865 = vld [vmem:[#allocation11 + $0xb8] sm:$0xff]
        %v1866 = vld [vmem:[#allocation11 + $0xc0] sm:$0xff]
        %v1867 = vld [vmem:[#allocation11 + $0xc8] sm:$0xff]
        %v1868 = vld [vmem:[#allocation11 + $0xd0] sm:$0xff]
        %v1869 = vld [vmem:[#allocation11 + $0xd8] sm:$0xff]
        %v1870 = vld [vmem:[#allocation11 + $0xe0] sm:$0xff]
        %v1871 = vld [vmem:[#allocation11 + $0xe8] sm:$0xff]
        %v1872 = vld [vmem:[#allocation11 + $0xf0] sm:$0xff]
        %v1873 = vld [vmem:[#allocation11 + $0xf8] sm:$0xff]
        %v1874 = vld [vmem:[%s6] sm:$0xf]
        %v1876 = vperm.slane %v1874, 0
        %v1877 = vperm.slane %v1874, 1
        %v1878 = vperm.slane %v1874, 2
        %v1879 = vperm.slane %v1874, 3
        %v1916 = vunpack.c.l.b16 %v1842
        %v1917 = vunpack.c.h.b16 %v1842
        %v1918 = vunpack.c.l.b16 %v1843
        %v1919 = vunpack.c.h.b16 %v1843
        %v1920 = vunpack.c.l.b16 %v1844
        %v1921 = vunpack.c.h.b16 %v1844
        %v1922 = vunpack.c.l.b16 %v1845
        %v1923 = vunpack.c.h.b16 %v1845
        %v1924 = vunpack.c.l.b16 %v1846
        %v1925 = vunpack.c.h.b16 %v1846
        %v1926 = vunpack.c.l.b16 %v1847
        %v1927 = vunpack.c.h.b16 %v1847
        %v1928 = vunpack.c.l.b16 %v1848
        %v1929 = vunpack.c.h.b16 %v1848
        %v1930 = vunpack.c.l.b16 %v1849
        %v1931 = vunpack.c.h.b16 %v1849
        %v1932 = vunpack.c.l.b16 %v1850
        %v1933 = vunpack.c.h.b16 %v1850
        %v1934 = vunpack.c.l.b16 %v1851
        %v1935 = vunpack.c.h.b16 %v1851
        %v1936 = vunpack.c.l.b16 %v1852
        %v1937 = vunpack.c.h.b16 %v1852
        %v1938 = vunpack.c.l.b16 %v1853
        %v1939 = vunpack.c.h.b16 %v1853
        %v1940 = vunpack.c.l.b16 %v1854
        %v1941 = vunpack.c.h.b16 %v1854
        %v1942 = vunpack.c.l.b16 %v1855
        %v1943 = vunpack.c.h.b16 %v1855
        %v1944 = vunpack.c.l.b16 %v1856
        %v1945 = vunpack.c.h.b16 %v1856
        %v1946 = vunpack.c.l.b16 %v1857
        %v1947 = vunpack.c.h.b16 %v1857
        %v1948 = vunpack.c.l.b16 %v1858
        %v1949 = vunpack.c.h.b16 %v1858
        %v1950 = vunpack.c.l.b16 %v1859
        %v1951 = vunpack.c.h.b16 %v1859
        %v1952 = vunpack.c.l.b16 %v1860
        %v1953 = vunpack.c.h.b16 %v1860
        %v1954 = vunpack.c.l.b16 %v1861
        %v1955 = vunpack.c.h.b16 %v1861
        %v1956 = vunpack.c.l.b16 %v1862
        %v1957 = vunpack.c.h.b16 %v1862
        %v1958 = vunpack.c.l.b16 %v1863
        %v1959 = vunpack.c.h.b16 %v1863
        %v1960 = vunpack.c.l.b16 %v1864
        %v1961 = vunpack.c.h.b16 %v1864
        %v1962 = vunpack.c.l.b16 %v1865
        %v1963 = vunpack.c.h.b16 %v1865
        %v1964 = vunpack.c.l.b16 %v1866
        %v1965 = vunpack.c.h.b16 %v1866
        %v1966 = vunpack.c.l.b16 %v1867
        %v1967 = vunpack.c.h.b16 %v1867
        %v1968 = vunpack.c.l.b16 %v1868
        %v1969 = vunpack.c.h.b16 %v1868
        %v1970 = vunpack.c.l.b16 %v1869
        %v1971 = vunpack.c.h.b16 %v1869
        %v1972 = vunpack.c.l.b16 %v1870
        %v1973 = vunpack.c.h.b16 %v1870
        %v1974 = vunpack.c.l.b16 %v1871
        %v1975 = vunpack.c.h.b16 %v1871
        %v1976 = vunpack.c.l.b16 %v1872
        %v1977 = vunpack.c.h.b16 %v1872
        %v1978 = vunpack.c.l.b16 %v1873
        %v1979 = vunpack.c.h.b16 %v1873
        %v1980 = vpack.c.b16 %v1920, %v1916
        %v1981 = vpack.c.b16 %v1921, %v1917
        %v1982 = vpack.c.b16 %v1922, %v1918
        %v1983 = vpack.c.b16 %v1923, %v1919
        %v1984 = vpack.c.b16 %v1928, %v1924
        %v1985 = vpack.c.b16 %v1929, %v1925
        %v1986 = vpack.c.b16 %v1930, %v1926
        %v1987 = vpack.c.b16 %v1931, %v1927
        %v1988 = vpack.c.b16 %v1936, %v1932
        %v1989 = vpack.c.b16 %v1937, %v1933
        %v1990 = vpack.c.b16 %v1938, %v1934
        %v1991 = vpack.c.b16 %v1939, %v1935
        %v1992 = vpack.c.b16 %v1944, %v1940
        %v1993 = vpack.c.b16 %v1945, %v1941
        %v1994 = vpack.c.b16 %v1946, %v1942
        %v1995 = vpack.c.b16 %v1947, %v1943
        %v1996 = vpack.c.b16 %v1952, %v1948
        %v1997 = vpack.c.b16 %v1953, %v1949
        %v1998 = vpack.c.b16 %v1954, %v1950
        %v1999 = vpack.c.b16 %v1955, %v1951
        %v2000 = vpack.c.b16 %v1960, %v1956
        %v2001 = vpack.c.b16 %v1961, %v1957
        %v2002 = vpack.c.b16 %v1962, %v1958
        %v2003 = vpack.c.b16 %v1963, %v1959
        %v2004 = vpack.c.b16 %v1968, %v1964
        %v2005 = vpack.c.b16 %v1969, %v1965
        %v2006 = vpack.c.b16 %v1970, %v1966
        %v2007 = vpack.c.b16 %v1971, %v1967
        %v2008 = vpack.c.b16 %v1976, %v1972
        %v2009 = vpack.c.b16 %v1977, %v1973
        %v2010 = vpack.c.b16 %v1978, %v1974
        %v2011 = vpack.c.b16 %v1979, %v1975
        %2044 = vmatpush.bf16.msra.mxu0 %v2008
        %2045 = vmatpush.bf16.msra.mxu0 %v2004
        %2046 = vmatpush.bf16.msra.mxu0 %v2000
        %2047 = vmatpush.bf16.msra.mxu0 %v1996
        %2048 = vmatpush.bf16.msra.mxu0 %v1992
        %2049 = vmatpush.bf16.msra.mxu0 %v1988
        %2050 = vmatpush.bf16.msra.mxu0 %v1984
        %2051 = vmatpush.bf16.msra.mxu0 %v1980
        %2052 = vmatmul.bf16.gmra.mxu0 %v1840
        %v2053 = vpop.f32.mrf.mxu0
        %v2054 = vadd.f32 %v1876, %v2053
        %v2055 = vpop.f32.mrf.mxu0
        %v2056 = vadd.f32 %v1876, %v2055
        %2057 = vmatmul.bf16.gmra.mxu0 %v1841
        %v2058 = vpop.f32.mrf.mxu0
        %v2059 = vadd.f32 %v1876, %v2058
        %v2060 = vpop.f32.mrf.mxu0
        %v2061 = vadd.f32 %v1876, %v2060
        %2062 = vdwg.mxu0
        %2063 = vmatpush.bf16.msra.mxu0 %v2009
        %2064 = vmatpush.bf16.msra.mxu0 %v2005
        %2065 = vmatpush.bf16.msra.mxu0 %v2001
        %2066 = vmatpush.bf16.msra.mxu0 %v1997
        %2067 = vmatpush.bf16.msra.mxu0 %v1993
        %2068 = vmatpush.bf16.msra.mxu0 %v1989
        %2069 = vmatpush.bf16.msra.mxu0 %v1985
        %2070 = vmatpush.bf16.msra.mxu0 %v1981
        %2071 = vmatmul.bf16.gmra.mxu0 %v1840
        %v2072 = vpop.f32.mrf.mxu0
        %v2073 = vadd.f32 %v1877, %v2072
        %v2074 = vpop.f32.mrf.mxu0
        %v2075 = vadd.f32 %v1877, %v2074
        %2076 = vmatmul.bf16.gmra.mxu0 %v1841
        %v2077 = vpop.f32.mrf.mxu0
        %v2078 = vadd.f32 %v1877, %v2077
        %v2079 = vpop.f32.mrf.mxu0
        %v2080 = vadd.f32 %v1877, %v2079
        %2081 = vdwg.mxu0
        %2082 = vmatpush.bf16.msra.mxu0 %v2010
        %2083 = vmatpush.bf16.msra.mxu0 %v2006
        %2084 = vmatpush.bf16.msra.mxu0 %v2002
        %2085 = vmatpush.bf16.msra.mxu0 %v1998
        %2086 = vmatpush.bf16.msra.mxu0 %v1994
        %2087 = vmatpush.bf16.msra.mxu0 %v1990
        %2088 = vmatpush.bf16.msra.mxu0 %v1986
        %2089 = vmatpush.bf16.msra.mxu0 %v1982
        %2090 = vmatmul.bf16.gmra.mxu0 %v1840
        %v2091 = vpop.f32.mrf.mxu0
        %v2092 = vadd.f32 %v1878, %v2091
        %v2093 = vpop.f32.mrf.mxu0
        %v2094 = vadd.f32 %v1878, %v2093
        %2095 = vmatmul.bf16.gmra.mxu0 %v1841
        %v2096 = vpop.f32.mrf.mxu0
        %v2097 = vadd.f32 %v1878, %v2096
        %v2098 = vpop.f32.mrf.mxu0
        %v2099 = vadd.f32 %v1878, %v2098
        %2100 = vdwg.mxu0
        %2101 = vmatpush.bf16.msra.mxu0 %v2011
        %2102 = vmatpush.bf16.msra.mxu0 %v2007
        %2103 = vmatpush.bf16.msra.mxu0 %v2003
        %2104 = vmatpush.bf16.msra.mxu0 %v1999
        %2105 = vmatpush.bf16.msra.mxu0 %v1995
        %2106 = vmatpush.bf16.msra.mxu0 %v1991
        %2107 = vmatpush.bf16.msra.mxu0 %v1987
        %2108 = vmatpush.bf16.msra.mxu0 %v1983
        %2109 = vmatmul.bf16.gmra.mxu0 %v1840
        %v2110 = vpop.f32.mrf.mxu0
        %v2111 = vadd.f32 %v1879, %v2110
        %v2112 = vpop.f32.mrf.mxu0
        %v2113 = vadd.f32 %v1879, %v2112
        %2114 = vmatmul.bf16.gmra.mxu0 %v1841
        %v2115 = vpop.f32.mrf.mxu0
        %v2116 = vadd.f32 %v1879, %v2115
        %v2117 = vpop.f32.mrf.mxu0
        %v2118 = vadd.f32 %v1879, %v2117
        %2119 = vdwg.mxu0
        %2120 = vst [vmem:[#allocation2] sm:$0xff] %v2054
        %2121 = vst [vmem:[#allocation2 + $0x8] sm:$0xff] %v2073
        %2122 = vst [vmem:[#allocation2 + $0x10] sm:$0xff] %v2092
        %2123 = vst [vmem:[#allocation2 + $0x18] sm:$0xff] %v2111
        %2124 = vst [vmem:[#allocation2 + $0x20] sm:$0xff] %v2056
        %2125 = vst [vmem:[#allocation2 + $0x28] sm:$0xff] %v2075
        %2126 = vst [vmem:[#allocation2 + $0x30] sm:$0xff] %v2094
        %2127 = vst [vmem:[#allocation2 + $0x38] sm:$0xff] %v2113
        %2128 = vst [vmem:[#allocation2 + $0x40] sm:$0xff] %v2059
        %2129 = vst [vmem:[#allocation2 + $0x48] sm:$0xff] %v2078
        %2130 = vst [vmem:[#allocation2 + $0x50] sm:$0xff] %v2097
        %2131 = vst [vmem:[#allocation2 + $0x58] sm:$0xff] %v2116
        %2132 = vst [vmem:[#allocation2 + $0x60] sm:$0xff] %v2061
        %2133 = vst [vmem:[#allocation2 + $0x68] sm:$0xff] %v2080
        %2134 = vst [vmem:[#allocation2 + $0x70] sm:$0xff] %v2099
        %2135 = vst [vmem:[#allocation2 + $0x78] sm:$0xff] %v2118
        %s2136 = scalar_lea.vmem [#allocation4], 8
        %v2137 = vld [vmem:[%s2136] sm:$0xff]
        %s2138 = scalar_lea.vmem [#allocation5], 8
        %v2139 = vld [vmem:[%s2138] sm:$0xff]
        %v2140 = vld [vmem:[%s553] sm:$0xff]
        %v2141 = vld [vmem:[%s553 + $0x8] sm:$0xff]
        %v2142 = vld [vmem:[%s553 + $0x10] sm:$0xff]
        %v2143 = vld [vmem:[%s553 + $0x18] sm:$0xff]
        %v2144 = vpack.c.bf16 %v2137, %v2137
        %v2145 = vld [vmem:[#allocation12] sm:$0xff]
        %v2146 = vld [vmem:[#allocation12 + $0x8] sm:$0xff]
        %v2147 = vld [vmem:[#allocation12 + $0x10] sm:$0xff]
        %v2148 = vld [vmem:[#allocation12 + $0x18] sm:$0xff]
        %v2149 = vld [vmem:[#allocation12 + $0x20] sm:$0xff]
        %v2150 = vld [vmem:[#allocation12 + $0x28] sm:$0xff]
        %v2151 = vld [vmem:[#allocation12 + $0x30] sm:$0xff]
        %v2152 = vld [vmem:[#allocation12 + $0x38] sm:$0xff]
        %v2153 = vld [vmem:[#allocation12 + $0x40] sm:$0xff]
        %v2154 = vld [vmem:[#allocation12 + $0x48] sm:$0xff]
        %v2155 = vld [vmem:[#allocation12 + $0x50] sm:$0xff]
        %v2156 = vld [vmem:[#allocation12 + $0x58] sm:$0xff]
        %v2157 = vld [vmem:[#allocation12 + $0x60] sm:$0xff]
        %v2158 = vld [vmem:[#allocation12 + $0x68] sm:$0xff]
        %v2159 = vld [vmem:[#allocation12 + $0x70] sm:$0xff]
        %v2160 = vld [vmem:[#allocation12 + $0x78] sm:$0xff]
        %v2161 = vld [vmem:[#allocation12 + $0x80] sm:$0xff]
        %v2162 = vld [vmem:[#allocation12 + $0x88] sm:$0xff]
        %v2163 = vld [vmem:[#allocation12 + $0x90] sm:$0xff]
        %v2164 = vld [vmem:[#allocation12 + $0x98] sm:$0xff]
        %v2165 = vld [vmem:[#allocation12 + $0xa0] sm:$0xff]
        %v2166 = vld [vmem:[#allocation12 + $0xa8] sm:$0xff]
        %v2167 = vld [vmem:[#allocation12 + $0xb0] sm:$0xff]
        %v2168 = vld [vmem:[#allocation12 + $0xb8] sm:$0xff]
        %v2169 = vld [vmem:[#allocation12 + $0xc0] sm:$0xff]
        %v2170 = vld [vmem:[#allocation12 + $0xc8] sm:$0xff]
        %v2171 = vld [vmem:[#allocation12 + $0xd0] sm:$0xff]
        %v2172 = vld [vmem:[#allocation12 + $0xd8] sm:$0xff]
        %v2173 = vld [vmem:[#allocation12 + $0xe0] sm:$0xff]
        %v2174 = vld [vmem:[#allocation12 + $0xe8] sm:$0xff]
        %v2175 = vld [vmem:[#allocation12 + $0xf0] sm:$0xff]
        %v2176 = vld [vmem:[#allocation12 + $0xf8] sm:$0xff]
        %v2209 = vunpack.c.l.b16 %v2145
        %v2210 = vunpack.c.h.b16 %v2145
        %v2211 = vunpack.c.l.b16 %v2146
        %v2212 = vunpack.c.h.b16 %v2146
        %v2213 = vunpack.c.l.b16 %v2147
        %v2214 = vunpack.c.h.b16 %v2147
        %v2215 = vunpack.c.l.b16 %v2148
        %v2216 = vunpack.c.h.b16 %v2148
        %v2217 = vunpack.c.l.b16 %v2149
        %v2218 = vunpack.c.h.b16 %v2149
        %v2219 = vunpack.c.l.b16 %v2150
        %v2220 = vunpack.c.h.b16 %v2150
        %v2221 = vunpack.c.l.b16 %v2151
        %v2222 = vunpack.c.h.b16 %v2151
        %v2223 = vunpack.c.l.b16 %v2152
        %v2224 = vunpack.c.h.b16 %v2152
        %v2225 = vunpack.c.l.b16 %v2153
        %v2226 = vunpack.c.h.b16 %v2153
        %v2227 = vunpack.c.l.b16 %v2154
        %v2228 = vunpack.c.h.b16 %v2154
        %v2229 = vunpack.c.l.b16 %v2155
        %v2230 = vunpack.c.h.b16 %v2155
        %v2231 = vunpack.c.l.b16 %v2156
        %v2232 = vunpack.c.h.b16 %v2156
        %v2233 = vunpack.c.l.b16 %v2157
        %v2234 = vunpack.c.h.b16 %v2157
        %v2235 = vunpack.c.l.b16 %v2158
        %v2236 = vunpack.c.h.b16 %v2158
        %v2237 = vunpack.c.l.b16 %v2159
        %v2238 = vunpack.c.h.b16 %v2159
        %v2239 = vunpack.c.l.b16 %v2160
        %v2240 = vunpack.c.h.b16 %v2160
        %v2241 = vunpack.c.l.b16 %v2161
        %v2242 = vunpack.c.h.b16 %v2161
        %v2243 = vunpack.c.l.b16 %v2162
        %v2244 = vunpack.c.h.b16 %v2162
        %v2245 = vunpack.c.l.b16 %v2163
        %v2246 = vunpack.c.h.b16 %v2163
        %v2247 = vunpack.c.l.b16 %v2164
        %v2248 = vunpack.c.h.b16 %v2164
        %v2249 = vunpack.c.l.b16 %v2165
        %v2250 = vunpack.c.h.b16 %v2165
        %v2251 = vunpack.c.l.b16 %v2166
        %v2252 = vunpack.c.h.b16 %v2166
        %v2253 = vunpack.c.l.b16 %v2167
        %v2254 = vunpack.c.h.b16 %v2167
        %v2255 = vunpack.c.l.b16 %v2168
        %v2256 = vunpack.c.h.b16 %v2168
        %v2257 = vunpack.c.l.b16 %v2169
        %v2258 = vunpack.c.h.b16 %v2169
        %v2259 = vunpack.c.l.b16 %v2170
        %v2260 = vunpack.c.h.b16 %v2170
        %v2261 = vunpack.c.l.b16 %v2171
        %v2262 = vunpack.c.h.b16 %v2171
        %v2263 = vunpack.c.l.b16 %v2172
        %v2264 = vunpack.c.h.b16 %v2172
        %v2265 = vunpack.c.l.b16 %v2173
        %v2266 = vunpack.c.h.b16 %v2173
        %v2267 = vunpack.c.l.b16 %v2174
        %v2268 = vunpack.c.h.b16 %v2174
        %v2269 = vunpack.c.l.b16 %v2175
        %v2270 = vunpack.c.h.b16 %v2175
        %v2271 = vunpack.c.l.b16 %v2176
        %v2272 = vunpack.c.h.b16 %v2176
        %v2273 = vpack.c.b16 %v2213, %v2209
        %v2274 = vpack.c.b16 %v2214, %v2210
        %v2275 = vpack.c.b16 %v2215, %v2211
        %v2276 = vpack.c.b16 %v2216, %v2212
        %v2277 = vpack.c.b16 %v2221, %v2217
        %v2278 = vpack.c.b16 %v2222, %v2218
        %v2279 = vpack.c.b16 %v2223, %v2219
        %v2280 = vpack.c.b16 %v2224, %v2220
        %v2281 = vpack.c.b16 %v2229, %v2225
        %v2282 = vpack.c.b16 %v2230, %v2226
        %v2283 = vpack.c.b16 %v2231, %v2227
        %v2284 = vpack.c.b16 %v2232, %v2228
        %v2285 = vpack.c.b16 %v2237, %v2233
        %v2286 = vpack.c.b16 %v2238, %v2234
        %v2287 = vpack.c.b16 %v2239, %v2235
        %v2288 = vpack.c.b16 %v2240, %v2236
        %v2289 = vpack.c.b16 %v2245, %v2241
        %v2290 = vpack.c.b16 %v2246, %v2242
        %v2291 = vpack.c.b16 %v2247, %v2243
        %v2292 = vpack.c.b16 %v2248, %v2244
        %v2293 = vpack.c.b16 %v2253, %v2249
        %v2294 = vpack.c.b16 %v2254, %v2250
        %v2295 = vpack.c.b16 %v2255, %v2251
        %v2296 = vpack.c.b16 %v2256, %v2252
        %v2297 = vpack.c.b16 %v2261, %v2257
        %v2298 = vpack.c.b16 %v2262, %v2258
        %v2299 = vpack.c.b16 %v2263, %v2259
        %v2300 = vpack.c.b16 %v2264, %v2260
        %v2301 = vpack.c.b16 %v2269, %v2265
        %v2302 = vpack.c.b16 %v2270, %v2266
        %v2303 = vpack.c.b16 %v2271, %v2267
        %v2304 = vpack.c.b16 %v2272, %v2268
        %2337 = vmatpush.bf16.msra.mxu0 %v2301
        %2338 = vmatpush.bf16.msra.mxu0 %v2297
        %2339 = vmatpush.bf16.msra.mxu0 %v2293
        %2340 = vmatpush.bf16.msra.mxu0 %v2289
        %2341 = vmatpush.bf16.msra.mxu0 %v2285
        %2342 = vmatpush.bf16.msra.mxu0 %v2281
        %2343 = vmatpush.bf16.msra.mxu0 %v2277
        %2344 = vmatpush.bf16.msra.mxu0 %v2273
        %2345 = vmatmul.bf16.gmra.mxu0 %v2144
        %v2346 = vpop.f32.mrf.mxu0
        %v2347 = vadd.f32 0.0, %v2346
        %v2348 = vpop.f32.mrf.mxu0
        %2349 = vdwg.mxu0
        %2350 = vmatpush.bf16.msra.mxu0 %v2302
        %2351 = vmatpush.bf16.msra.mxu0 %v2298
        %2352 = vmatpush.bf16.msra.mxu0 %v2294
        %2353 = vmatpush.bf16.msra.mxu0 %v2290
        %2354 = vmatpush.bf16.msra.mxu0 %v2286
        %2355 = vmatpush.bf16.msra.mxu0 %v2282
        %2356 = vmatpush.bf16.msra.mxu0 %v2278
        %2357 = vmatpush.bf16.msra.mxu0 %v2274
        %2358 = vmatmul.bf16.gmra.mxu0 %v2144
        %v2359 = vpop.f32.mrf.mxu0
        %v2360 = vadd.f32 0.0, %v2359
        %v2361 = vpop.f32.mrf.mxu0
        %2362 = vdwg.mxu0
        %2363 = vmatpush.bf16.msra.mxu0 %v2303
        %2364 = vmatpush.bf16.msra.mxu0 %v2299
        %2365 = vmatpush.bf16.msra.mxu0 %v2295
        %2366 = vmatpush.bf16.msra.mxu0 %v2291
        %2367 = vmatpush.bf16.msra.mxu0 %v2287
        %2368 = vmatpush.bf16.msra.mxu0 %v2283
        %2369 = vmatpush.bf16.msra.mxu0 %v2279
        %2370 = vmatpush.bf16.msra.mxu0 %v2275
        %2371 = vmatmul.bf16.gmra.mxu0 %v2144
        %v2372 = vpop.f32.mrf.mxu0
        %v2373 = vadd.f32 0.0, %v2372
        %v2374 = vpop.f32.mrf.mxu0
        %2375 = vdwg.mxu0
        %2376 = vmatpush.bf16.msra.mxu0 %v2304
        %2377 = vmatpush.bf16.msra.mxu0 %v2300
        %2378 = vmatpush.bf16.msra.mxu0 %v2296
        %2379 = vmatpush.bf16.msra.mxu0 %v2292
        %2380 = vmatpush.bf16.msra.mxu0 %v2288
        %2381 = vmatpush.bf16.msra.mxu0 %v2284
        %2382 = vmatpush.bf16.msra.mxu0 %v2280
        %2383 = vmatpush.bf16.msra.mxu0 %v2276
        %2384 = vmatmul.bf16.gmra.mxu0 %v2144
        %v2385 = vpop.f32.mrf.mxu0
        %v2386 = vadd.f32 0.0, %v2385
        %v2387 = vpop.f32.mrf.mxu0
        %2388 = vdwg.mxu0
        %v2389 = vadd.f32 %v2140, %v2347
        %v2390 = vadd.f32 %v2141, %v2360
        %v2391 = vadd.f32 %v2142, %v2373
        %v2392 = vadd.f32 %v2143, %v2386
        %v2393 = vxor.u32 %v2389, 2147483648
        %v2394 = vmul.f32 %v2393, 1.442695
        %v2395 = vpow.pop %v2394
        %v2396 = vadd.f32 %v2395, 1.0
        %v2397 = vrcp.pop %v2396
        %v2398 = vmul.f32 %v2396, %v2397
        %v2399 = vsub.f32 1.0, %v2398
        %v2400 = vmul.f32 %v2397, %v2399
        %v2401 = vadd.f32 %v2397, %v2400
        %vm2402 = vweird.f32 %v2396
        %vm2403 = vweird.f32 %v2397
        %vm2404 = vmor %vm2402, %vm2403
        %v2405 = vsel %vm2404, %v2397, %v2401
        %v2406 = vand.u32 2147483647, %v2396
        %vm2407 = vcmp.eq.f32.partialorder %v2406, 8.507059e+37
        %v2408 = vand.u32 %v2396, 2147483648
        %v2409 = vor.u32 1.1754944e-38, %v2408
        %v2410 = vsel %vm2407, %v2409, %v2405
        %v2411 = vmul.f32 1.0, %v2410
        %v2412 = vxor.u32 %v2390, 2147483648
        %v2413 = vmul.f32 %v2412, 1.442695
        %v2414 = vpow.pop %v2413
        %v2415 = vadd.f32 %v2414, 1.0
        %v2416 = vrcp.pop %v2415
        %v2417 = vmul.f32 %v2415, %v2416
        %v2418 = vsub.f32 1.0, %v2417
        %v2419 = vmul.f32 %v2416, %v2418
        %v2420 = vadd.f32 %v2416, %v2419
        %vm2421 = vweird.f32 %v2415
        %vm2422 = vweird.f32 %v2416
        %vm2423 = vmor %vm2421, %vm2422
        %v2424 = vsel %vm2423, %v2416, %v2420
        %v2425 = vand.u32 2147483647, %v2415
        %vm2426 = vcmp.eq.f32.partialorder %v2425, 8.507059e+37
        %v2427 = vand.u32 %v2415, 2147483648
        %v2428 = vor.u32 1.1754944e-38, %v2427
        %v2429 = vsel %vm2426, %v2428, %v2424
        %v2430 = vmul.f32 1.0, %v2429
        %v2431 = vtanh.pop %v2391
        %v2432 = vxor.u32 %v2392, 2147483648
        %v2433 = vmul.f32 %v2432, 1.442695
        %v2434 = vpow.pop %v2433
        %v2435 = vadd.f32 %v2434, 1.0
        %v2436 = vrcp.pop %v2435
        %v2437 = vmul.f32 %v2435, %v2436
        %v2438 = vsub.f32 1.0, %v2437
        %v2439 = vmul.f32 %v2436, %v2438
        %v2440 = vadd.f32 %v2436, %v2439
        %vm2441 = vweird.f32 %v2435
        %vm2442 = vweird.f32 %v2436
        %vm2443 = vmor %vm2441, %vm2442
        %v2444 = vsel %vm2443, %v2436, %v2440
        %v2445 = vand.u32 2147483647, %v2435
        %vm2446 = vcmp.eq.f32.partialorder %v2445, 8.507059e+37
        %v2447 = vand.u32 %v2435, 2147483648
        %v2448 = vor.u32 1.1754944e-38, %v2447
        %v2449 = vsel %vm2446, %v2448, %v2444
        %v2450 = vmul.f32 1.0, %v2449
        %v2451 = vmul.f32 %v2430, %v2139
        %v2452 = vmul.f32 %v2411, %v2431
        %v2453 = vadd.f32 %v2451, %v2452
        %v2454 = vtanh.pop %v2453
        %v2455 = vmul.f32 %v2450, %v2454
        %2456 = vst [vmem:[#allocation3] sm:$0xff] %v2455
        %v2457 = vld [vmem:[%s873] sm:$0xff]
        %v2458 = vld [vmem:[%s873 + $0x8] sm:$0xff]
        %v2459 = vld [vmem:[%s873 + $0x10] sm:$0xff]
        %v2460 = vld [vmem:[%s873 + $0x18] sm:$0xff]
        %v2461 = vpack.c.bf16 %v2455, %v2455
        %v2462 = vld [vmem:[#allocation12] sm:$0xff]
        %v2463 = vld [vmem:[#allocation12 + $0x8] sm:$0xff]
        %v2464 = vld [vmem:[#allocation12 + $0x10] sm:$0xff]
        %v2465 = vld [vmem:[#allocation12 + $0x18] sm:$0xff]
        %v2466 = vld [vmem:[#allocation12 + $0x20] sm:$0xff]
        %v2467 = vld [vmem:[#allocation12 + $0x28] sm:$0xff]
        %v2468 = vld [vmem:[#allocation12 + $0x30] sm:$0xff]
        %v2469 = vld [vmem:[#allocation12 + $0x38] sm:$0xff]
        %v2470 = vld [vmem:[#allocation12 + $0x40] sm:$0xff]
        %v2471 = vld [vmem:[#allocation12 + $0x48] sm:$0xff]
        %v2472 = vld [vmem:[#allocation12 + $0x50] sm:$0xff]
        %v2473 = vld [vmem:[#allocation12 + $0x58] sm:$0xff]
        %v2474 = vld [vmem:[#allocation12 + $0x60] sm:$0xff]
        %v2475 = vld [vmem:[#allocation12 + $0x68] sm:$0xff]
        %v2476 = vld [vmem:[#allocation12 + $0x70] sm:$0xff]
        %v2477 = vld [vmem:[#allocation12 + $0x78] sm:$0xff]
        %v2478 = vld [vmem:[#allocation12 + $0x80] sm:$0xff]
        %v2479 = vld [vmem:[#allocation12 + $0x88] sm:$0xff]
        %v2480 = vld [vmem:[#allocation12 + $0x90] sm:$0xff]
        %v2481 = vld [vmem:[#allocation12 + $0x98] sm:$0xff]
        %v2482 = vld [vmem:[#allocation12 + $0xa0] sm:$0xff]
        %v2483 = vld [vmem:[#allocation12 + $0xa8] sm:$0xff]
        %v2484 = vld [vmem:[#allocation12 + $0xb0] sm:$0xff]
        %v2485 = vld [vmem:[#allocation12 + $0xb8] sm:$0xff]
        %v2486 = vld [vmem:[#allocation12 + $0xc0] sm:$0xff]
        %v2487 = vld [vmem:[#allocation12 + $0xc8] sm:$0xff]
        %v2488 = vld [vmem:[#allocation12 + $0xd0] sm:$0xff]
        %v2489 = vld [vmem:[#allocation12 + $0xd8] sm:$0xff]
        %v2490 = vld [vmem:[#allocation12 + $0xe0] sm:$0xff]
        %v2491 = vld [vmem:[#allocation12 + $0xe8] sm:$0xff]
        %v2492 = vld [vmem:[#allocation12 + $0xf0] sm:$0xff]
        %v2493 = vld [vmem:[#allocation12 + $0xf8] sm:$0xff]
        %v2526 = vunpack.c.l.b16 %v2462
        %v2527 = vunpack.c.h.b16 %v2462
        %v2528 = vunpack.c.l.b16 %v2463
        %v2529 = vunpack.c.h.b16 %v2463
        %v2530 = vunpack.c.l.b16 %v2464
        %v2531 = vunpack.c.h.b16 %v2464
        %v2532 = vunpack.c.l.b16 %v2465
        %v2533 = vunpack.c.h.b16 %v2465
        %v2534 = vunpack.c.l.b16 %v2466
        %v2535 = vunpack.c.h.b16 %v2466
        %v2536 = vunpack.c.l.b16 %v2467
        %v2537 = vunpack.c.h.b16 %v2467
        %v2538 = vunpack.c.l.b16 %v2468
        %v2539 = vunpack.c.h.b16 %v2468
        %v2540 = vunpack.c.l.b16 %v2469
        %v2541 = vunpack.c.h.b16 %v2469
        %v2542 = vunpack.c.l.b16 %v2470
        %v2543 = vunpack.c.h.b16 %v2470
        %v2544 = vunpack.c.l.b16 %v2471
        %v2545 = vunpack.c.h.b16 %v2471
        %v2546 = vunpack.c.l.b16 %v2472
        %v2547 = vunpack.c.h.b16 %v2472
        %v2548 = vunpack.c.l.b16 %v2473
        %v2549 = vunpack.c.h.b16 %v2473
        %v2550 = vunpack.c.l.b16 %v2474
        %v2551 = vunpack.c.h.b16 %v2474
        %v2552 = vunpack.c.l.b16 %v2475
        %v2553 = vunpack.c.h.b16 %v2475
        %v2554 = vunpack.c.l.b16 %v2476
        %v2555 = vunpack.c.h.b16 %v2476
        %v2556 = vunpack.c.l.b16 %v2477
        %v2557 = vunpack.c.h.b16 %v2477
        %v2558 = vunpack.c.l.b16 %v2478
        %v2559 = vunpack.c.h.b16 %v2478
        %v2560 = vunpack.c.l.b16 %v2479
        %v2561 = vunpack.c.h.b16 %v2479
        %v2562 = vunpack.c.l.b16 %v2480
        %v2563 = vunpack.c.h.b16 %v2480
        %v2564 = vunpack.c.l.b16 %v2481
        %v2565 = vunpack.c.h.b16 %v2481
        %v2566 = vunpack.c.l.b16 %v2482
        %v2567 = vunpack.c.h.b16 %v2482
        %v2568 = vunpack.c.l.b16 %v2483
        %v2569 = vunpack.c.h.b16 %v2483
        %v2570 = vunpack.c.l.b16 %v2484
        %v2571 = vunpack.c.h.b16 %v2484
        %v2572 = vunpack.c.l.b16 %v2485
        %v2573 = vunpack.c.h.b16 %v2485
        %v2574 = vunpack.c.l.b16 %v2486
        %v2575 = vunpack.c.h.b16 %v2486
        %v2576 = vunpack.c.l.b16 %v2487
        %v2577 = vunpack.c.h.b16 %v2487
        %v2578 = vunpack.c.l.b16 %v2488
        %v2579 = vunpack.c.h.b16 %v2488
        %v2580 = vunpack.c.l.b16 %v2489
        %v2581 = vunpack.c.h.b16 %v2489
        %v2582 = vunpack.c.l.b16 %v2490
        %v2583 = vunpack.c.h.b16 %v2490
        %v2584 = vunpack.c.l.b16 %v2491
        %v2585 = vunpack.c.h.b16 %v2491
        %v2586 = vunpack.c.l.b16 %v2492
        %v2587 = vunpack.c.h.b16 %v2492
        %v2588 = vunpack.c.l.b16 %v2493
        %v2589 = vunpack.c.h.b16 %v2493
        %v2590 = vpack.c.b16 %v2530, %v2526
        %v2591 = vpack.c.b16 %v2531, %v2527
        %v2592 = vpack.c.b16 %v2532, %v2528
        %v2593 = vpack.c.b16 %v2533, %v2529
        %v2594 = vpack.c.b16 %v2538, %v2534
        %v2595 = vpack.c.b16 %v2539, %v2535
        %v2596 = vpack.c.b16 %v2540, %v2536
        %v2597 = vpack.c.b16 %v2541, %v2537
        %v2598 = vpack.c.b16 %v2546, %v2542
        %v2599 = vpack.c.b16 %v2547, %v2543
        %v2600 = vpack.c.b16 %v2548, %v2544
        %v2601 = vpack.c.b16 %v2549, %v2545
        %v2602 = vpack.c.b16 %v2554, %v2550
        %v2603 = vpack.c.b16 %v2555, %v2551
        %v2604 = vpack.c.b16 %v2556, %v2552
        %v2605 = vpack.c.b16 %v2557, %v2553
        %v2606 = vpack.c.b16 %v2562, %v2558
        %v2607 = vpack.c.b16 %v2563, %v2559
        %v2608 = vpack.c.b16 %v2564, %v2560
        %v2609 = vpack.c.b16 %v2565, %v2561
        %v2610 = vpack.c.b16 %v2570, %v2566
        %v2611 = vpack.c.b16 %v2571, %v2567
        %v2612 = vpack.c.b16 %v2572, %v2568
        %v2613 = vpack.c.b16 %v2573, %v2569
        %v2614 = vpack.c.b16 %v2578, %v2574
        %v2615 = vpack.c.b16 %v2579, %v2575
        %v2616 = vpack.c.b16 %v2580, %v2576
        %v2617 = vpack.c.b16 %v2581, %v2577
        %v2618 = vpack.c.b16 %v2586, %v2582
        %v2619 = vpack.c.b16 %v2587, %v2583
        %v2620 = vpack.c.b16 %v2588, %v2584
        %v2621 = vpack.c.b16 %v2589, %v2585
        %2654 = vmatpush.bf16.msra.mxu0 %v2618
        %2655 = vmatpush.bf16.msra.mxu0 %v2614
        %2656 = vmatpush.bf16.msra.mxu0 %v2610
        %2657 = vmatpush.bf16.msra.mxu0 %v2606
        %2658 = vmatpush.bf16.msra.mxu0 %v2602
        %2659 = vmatpush.bf16.msra.mxu0 %v2598
        %2660 = vmatpush.bf16.msra.mxu0 %v2594
        %2661 = vmatpush.bf16.msra.mxu0 %v2590
        %2662 = vmatmul.bf16.gmra.mxu0 %v2461
        %v2663 = vpop.f32.mrf.mxu0
        %v2664 = vadd.f32 0.0, %v2663
        %v2665 = vpop.f32.mrf.mxu0
        %2666 = vdwg.mxu0
        %2667 = vmatpush.bf16.msra.mxu0 %v2619
        %2668 = vmatpush.bf16.msra.mxu0 %v2615
        %2669 = vmatpush.bf16.msra.mxu0 %v2611
        %2670 = vmatpush.bf16.msra.mxu0 %v2607
        %2671 = vmatpush.bf16.msra.mxu0 %v2603
        %2672 = vmatpush.bf16.msra.mxu0 %v2599
        %2673 = vmatpush.bf16.msra.mxu0 %v2595
        %2674 = vmatpush.bf16.msra.mxu0 %v2591
        %2675 = vmatmul.bf16.gmra.mxu0 %v2461
        %v2676 = vpop.f32.mrf.mxu0
        %v2677 = vadd.f32 0.0, %v2676
        %v2678 = vpop.f32.mrf.mxu0
        %2679 = vdwg.mxu0
        %2680 = vmatpush.bf16.msra.mxu0 %v2620
        %2681 = vmatpush.bf16.msra.mxu0 %v2616
        %2682 = vmatpush.bf16.msra.mxu0 %v2612
        %2683 = vmatpush.bf16.msra.mxu0 %v2608
        %2684 = vmatpush.bf16.msra.mxu0 %v2604
        %2685 = vmatpush.bf16.msra.mxu0 %v2600
        %2686 = vmatpush.bf16.msra.mxu0 %v2596
        %2687 = vmatpush.bf16.msra.mxu0 %v2592
        %2688 = vmatmul.bf16.gmra.mxu0 %v2461
        %v2689 = vpop.f32.mrf.mxu0
        %v2690 = vadd.f32 0.0, %v2689
        %v2691 = vpop.f32.mrf.mxu0
        %2692 = vdwg.mxu0
        %2693 = vmatpush.bf16.msra.mxu0 %v2621
        %2694 = vmatpush.bf16.msra.mxu0 %v2617
        %2695 = vmatpush.bf16.msra.mxu0 %v2613
        %2696 = vmatpush.bf16.msra.mxu0 %v2609
        %2697 = vmatpush.bf16.msra.mxu0 %v2605
        %2698 = vmatpush.bf16.msra.mxu0 %v2601
        %2699 = vmatpush.bf16.msra.mxu0 %v2597
        %2700 = vmatpush.bf16.msra.mxu0 %v2593
        %2701 = vmatmul.bf16.gmra.mxu0 %v2461
        %v2702 = vpop.f32.mrf.mxu0
        %v2703 = vadd.f32 0.0, %v2702
        %v2704 = vpop.f32.mrf.mxu0
        %2705 = vdwg.mxu0
        %v2706 = vadd.f32 %v2457, %v2664
        %v2707 = vadd.f32 %v2458, %v2677
        %v2708 = vadd.f32 %v2459, %v2690
        %v2709 = vadd.f32 %v2460, %v2703
        %v2710 = vxor.u32 %v2706, 2147483648
        %v2711 = vmul.f32 %v2710, 1.442695
        %v2712 = vpow.pop %v2711
        %v2713 = vadd.f32 %v2712, 1.0
        %v2714 = vrcp.pop %v2713
        %v2715 = vmul.f32 %v2713, %v2714
        %v2716 = vsub.f32 1.0, %v2715
        %v2717 = vmul.f32 %v2714, %v2716
        %v2718 = vadd.f32 %v2714, %v2717
        %vm2719 = vweird.f32 %v2713
        %vm2720 = vweird.f32 %v2714
        %vm2721 = vmor %vm2719, %vm2720
        %v2722 = vsel %vm2721, %v2714, %v2718
        %v2723 = vand.u32 2147483647, %v2713
        %vm2724 = vcmp.eq.f32.partialorder %v2723, 8.507059e+37
        %v2725 = vand.u32 %v2713, 2147483648
        %v2726 = vor.u32 1.1754944e-38, %v2725
        %v2727 = vsel %vm2724, %v2726, %v2722
        %v2728 = vmul.f32 1.0, %v2727
        %v2729 = vxor.u32 %v2707, 2147483648
        %v2730 = vmul.f32 %v2729, 1.442695
        %v2731 = vpow.pop %v2730
        %v2732 = vadd.f32 %v2731, 1.0
        %v2733 = vrcp.pop %v2732
        %v2734 = vmul.f32 %v2732, %v2733
        %v2735 = vsub.f32 1.0, %v2734
        %v2736 = vmul.f32 %v2733, %v2735
        %v2737 = vadd.f32 %v2733, %v2736
        %vm2738 = vweird.f32 %v2732
        %vm2739 = vweird.f32 %v2733
        %vm2740 = vmor %vm2738, %vm2739
        %v2741 = vsel %vm2740, %v2733, %v2737
        %v2742 = vand.u32 2147483647, %v2732
        %vm2743 = vcmp.eq.f32.partialorder %v2742, 8.507059e+37
        %v2744 = vand.u32 %v2732, 2147483648
        %v2745 = vor.u32 1.1754944e-38, %v2744
        %v2746 = vsel %vm2743, %v2745, %v2741
        %v2747 = vmul.f32 1.0, %v2746
        %v2748 = vtanh.pop %v2708
        %v2749 = vxor.u32 %v2709, 2147483648
        %v2750 = vmul.f32 %v2749, 1.442695
        %v2751 = vpow.pop %v2750
        %v2752 = vadd.f32 %v2751, 1.0
        %v2753 = vrcp.pop %v2752
        %v2754 = vmul.f32 %v2752, %v2753
        %v2755 = vsub.f32 1.0, %v2754
        %v2756 = vmul.f32 %v2753, %v2755
        %v2757 = vadd.f32 %v2753, %v2756
        %vm2758 = vweird.f32 %v2752
        %vm2759 = vweird.f32 %v2753
        %vm2760 = vmor %vm2758, %vm2759
        %v2761 = vsel %vm2760, %v2753, %v2757
        %v2762 = vand.u32 2147483647, %v2752
        %vm2763 = vcmp.eq.f32.partialorder %v2762, 8.507059e+37
        %v2764 = vand.u32 %v2752, 2147483648
        %v2765 = vor.u32 1.1754944e-38, %v2764
        %v2766 = vsel %vm2763, %v2765, %v2761
        %v2767 = vmul.f32 1.0, %v2766
        %v2768 = vmul.f32 %v2747, %v2453
        %v2769 = vmul.f32 %v2728, %v2748
        %v2770 = vadd.f32 %v2768, %v2769
        %v2771 = vtanh.pop %v2770
        %v2772 = vmul.f32 %v2767, %v2771
        %2773 = vst [vmem:[%s1190] sm:$0xff] %v2772
        %v2774 = vld [vmem:[%s1194] sm:$0xff]
        %v2775 = vld [vmem:[%s1194 + $0x8] sm:$0xff]
        %v2776 = vld [vmem:[%s1194 + $0x10] sm:$0xff]
        %v2777 = vld [vmem:[%s1194 + $0x18] sm:$0xff]
        %v2778 = vpack.c.bf16 %v2772, %v2772
        %v2779 = vld [vmem:[#allocation12] sm:$0xff]
        %v2780 = vld [vmem:[#allocation12 + $0x8] sm:$0xff]
        %v2781 = vld [vmem:[#allocation12 + $0x10] sm:$0xff]
        %v2782 = vld [vmem:[#allocation12 + $0x18] sm:$0xff]
        %v2783 = vld [vmem:[#allocation12 + $0x20] sm:$0xff]
        %v2784 = vld [vmem:[#allocation12 + $0x28] sm:$0xff]
        %v2785 = vld [vmem:[#allocation12 + $0x30] sm:$0xff]
        %v2786 = vld [vmem:[#allocation12 + $0x38] sm:$0xff]
        %v2787 = vld [vmem:[#allocation12 + $0x40] sm:$0xff]
        %v2788 = vld [vmem:[#allocation12 + $0x48] sm:$0xff]
        %v2789 = vld [vmem:[#allocation12 + $0x50] sm:$0xff]
        %v2790 = vld [vmem:[#allocation12 + $0x58] sm:$0xff]
        %v2791 = vld [vmem:[#allocation12 + $0x60] sm:$0xff]
        %v2792 = vld [vmem:[#allocation12 + $0x68] sm:$0xff]
        %v2793 = vld [vmem:[#allocation12 + $0x70] sm:$0xff]
        %v2794 = vld [vmem:[#allocation12 + $0x78] sm:$0xff]
        %v2795 = vld [vmem:[#allocation12 + $0x80] sm:$0xff]
        %v2796 = vld [vmem:[#allocation12 + $0x88] sm:$0xff]
        %v2797 = vld [vmem:[#allocation12 + $0x90] sm:$0xff]
        %v2798 = vld [vmem:[#allocation12 + $0x98] sm:$0xff]
        %v2799 = vld [vmem:[#allocation12 + $0xa0] sm:$0xff]
        %v2800 = vld [vmem:[#allocation12 + $0xa8] sm:$0xff]
        %v2801 = vld [vmem:[#allocation12 + $0xb0] sm:$0xff]
        %v2802 = vld [vmem:[#allocation12 + $0xb8] sm:$0xff]
        %v2803 = vld [vmem:[#allocation12 + $0xc0] sm:$0xff]
        %v2804 = vld [vmem:[#allocation12 + $0xc8] sm:$0xff]
        %v2805 = vld [vmem:[#allocation12 + $0xd0] sm:$0xff]
        %v2806 = vld [vmem:[#allocation12 + $0xd8] sm:$0xff]
        %v2807 = vld [vmem:[#allocation12 + $0xe0] sm:$0xff]
        %v2808 = vld [vmem:[#allocation12 + $0xe8] sm:$0xff]
        %v2809 = vld [vmem:[#allocation12 + $0xf0] sm:$0xff]
        %v2810 = vld [vmem:[#allocation12 + $0xf8] sm:$0xff]
        %v2843 = vunpack.c.l.b16 %v2779
        %v2844 = vunpack.c.h.b16 %v2779
        %v2845 = vunpack.c.l.b16 %v2780
        %v2846 = vunpack.c.h.b16 %v2780
        %v2847 = vunpack.c.l.b16 %v2781
        %v2848 = vunpack.c.h.b16 %v2781
        %v2849 = vunpack.c.l.b16 %v2782
        %v2850 = vunpack.c.h.b16 %v2782
        %v2851 = vunpack.c.l.b16 %v2783
        %v2852 = vunpack.c.h.b16 %v2783
        %v2853 = vunpack.c.l.b16 %v2784
        %v2854 = vunpack.c.h.b16 %v2784
        %v2855 = vunpack.c.l.b16 %v2785
        %v2856 = vunpack.c.h.b16 %v2785
        %v2857 = vunpack.c.l.b16 %v2786
        %v2858 = vunpack.c.h.b16 %v2786
        %v2859 = vunpack.c.l.b16 %v2787
        %v2860 = vunpack.c.h.b16 %v2787
        %v2861 = vunpack.c.l.b16 %v2788
        %v2862 = vunpack.c.h.b16 %v2788
        %v2863 = vunpack.c.l.b16 %v2789
        %v2864 = vunpack.c.h.b16 %v2789
        %v2865 = vunpack.c.l.b16 %v2790
        %v2866 = vunpack.c.h.b16 %v2790
        %v2867 = vunpack.c.l.b16 %v2791
        %v2868 = vunpack.c.h.b16 %v2791
        %v2869 = vunpack.c.l.b16 %v2792
        %v2870 = vunpack.c.h.b16 %v2792
        %v2871 = vunpack.c.l.b16 %v2793
        %v2872 = vunpack.c.h.b16 %v2793
        %v2873 = vunpack.c.l.b16 %v2794
        %v2874 = vunpack.c.h.b16 %v2794
        %v2875 = vunpack.c.l.b16 %v2795
        %v2876 = vunpack.c.h.b16 %v2795
        %v2877 = vunpack.c.l.b16 %v2796
        %v2878 = vunpack.c.h.b16 %v2796
        %v2879 = vunpack.c.l.b16 %v2797
        %v2880 = vunpack.c.h.b16 %v2797
        %v2881 = vunpack.c.l.b16 %v2798
        %v2882 = vunpack.c.h.b16 %v2798
        %v2883 = vunpack.c.l.b16 %v2799
        %v2884 = vunpack.c.h.b16 %v2799
        %v2885 = vunpack.c.l.b16 %v2800
        %v2886 = vunpack.c.h.b16 %v2800
        %v2887 = vunpack.c.l.b16 %v2801
        %v2888 = vunpack.c.h.b16 %v2801
        %v2889 = vunpack.c.l.b16 %v2802
        %v2890 = vunpack.c.h.b16 %v2802
        %v2891 = vunpack.c.l.b16 %v2803
        %v2892 = vunpack.c.h.b16 %v2803
        %v2893 = vunpack.c.l.b16 %v2804
        %v2894 = vunpack.c.h.b16 %v2804
        %v2895 = vunpack.c.l.b16 %v2805
        %v2896 = vunpack.c.h.b16 %v2805
        %v2897 = vunpack.c.l.b16 %v2806
        %v2898 = vunpack.c.h.b16 %v2806
        %v2899 = vunpack.c.l.b16 %v2807
        %v2900 = vunpack.c.h.b16 %v2807
        %v2901 = vunpack.c.l.b16 %v2808
        %v2902 = vunpack.c.h.b16 %v2808
        %v2903 = vunpack.c.l.b16 %v2809
        %v2904 = vunpack.c.h.b16 %v2809
        %v2905 = vunpack.c.l.b16 %v2810
        %v2906 = vunpack.c.h.b16 %v2810
        %v2907 = vpack.c.b16 %v2847, %v2843
        %v2908 = vpack.c.b16 %v2848, %v2844
        %v2909 = vpack.c.b16 %v2849, %v2845
        %v2910 = vpack.c.b16 %v2850, %v2846
        %v2911 = vpack.c.b16 %v2855, %v2851
        %v2912 = vpack.c.b16 %v2856, %v2852
        %v2913 = vpack.c.b16 %v2857, %v2853
        %v2914 = vpack.c.b16 %v2858, %v2854
        %v2915 = vpack.c.b16 %v2863, %v2859
        %v2916 = vpack.c.b16 %v2864, %v2860
        %v2917 = vpack.c.b16 %v2865, %v2861
        %v2918 = vpack.c.b16 %v2866, %v2862
        %v2919 = vpack.c.b16 %v2871, %v2867
        %v2920 = vpack.c.b16 %v2872, %v2868
        %v2921 = vpack.c.b16 %v2873, %v2869
        %v2922 = vpack.c.b16 %v2874, %v2870
        %v2923 = vpack.c.b16 %v2879, %v2875
        %v2924 = vpack.c.b16 %v2880, %v2876
        %v2925 = vpack.c.b16 %v2881, %v2877
        %v2926 = vpack.c.b16 %v2882, %v2878
        %v2927 = vpack.c.b16 %v2887, %v2883
        %v2928 = vpack.c.b16 %v2888, %v2884
        %v2929 = vpack.c.b16 %v2889, %v2885
        %v2930 = vpack.c.b16 %v2890, %v2886
        %v2931 = vpack.c.b16 %v2895, %v2891
        %v2932 = vpack.c.b16 %v2896, %v2892
        %v2933 = vpack.c.b16 %v2897, %v2893
        %v2934 = vpack.c.b16 %v2898, %v2894
        %v2935 = vpack.c.b16 %v2903, %v2899
        %v2936 = vpack.c.b16 %v2904, %v2900
        %v2937 = vpack.c.b16 %v2905, %v2901
        %v2938 = vpack.c.b16 %v2906, %v2902
        %2971 = vmatpush.bf16.msra.mxu0 %v2935
        %2972 = vmatpush.bf16.msra.mxu0 %v2931
        %2973 = vmatpush.bf16.msra.mxu0 %v2927
        %2974 = vmatpush.bf16.msra.mxu0 %v2923
        %2975 = vmatpush.bf16.msra.mxu0 %v2919
        %2976 = vmatpush.bf16.msra.mxu0 %v2915
        %2977 = vmatpush.bf16.msra.mxu0 %v2911
        %2978 = vmatpush.bf16.msra.mxu0 %v2907
        %2979 = vmatmul.bf16.gmra.mxu0 %v2778
        %v2980 = vpop.f32.mrf.mxu0
        %v2981 = vadd.f32 0.0, %v2980
        %v2982 = vpop.f32.mrf.mxu0
        %2983 = vdwg.mxu0
        %2984 = vmatpush.bf16.msra.mxu0 %v2936
        %2985 = vmatpush.bf16.msra.mxu0 %v2932
        %2986 = vmatpush.bf16.msra.mxu0 %v2928
        %2987 = vmatpush.bf16.msra.mxu0 %v2924
        %2988 = vmatpush.bf16.msra.mxu0 %v2920
        %2989 = vmatpush.bf16.msra.mxu0 %v2916
        %2990 = vmatpush.bf16.msra.mxu0 %v2912
        %2991 = vmatpush.bf16.msra.mxu0 %v2908
        %2992 = vmatmul.bf16.gmra.mxu0 %v2778
        %v2993 = vpop.f32.mrf.mxu0
        %v2994 = vadd.f32 0.0, %v2993
        %v2995 = vpop.f32.mrf.mxu0
        %2996 = vdwg.mxu0
        %2997 = vmatpush.bf16.msra.mxu0 %v2937
        %2998 = vmatpush.bf16.msra.mxu0 %v2933
        %2999 = vmatpush.bf16.msra.mxu0 %v2929
        %3000 = vmatpush.bf16.msra.mxu0 %v2925
        %3001 = vmatpush.bf16.msra.mxu0 %v2921
        %3002 = vmatpush.bf16.msra.mxu0 %v2917
        %3003 = vmatpush.bf16.msra.mxu0 %v2913
        %3004 = vmatpush.bf16.msra.mxu0 %v2909
        %3005 = vmatmul.bf16.gmra.mxu0 %v2778
        %v3006 = vpop.f32.mrf.mxu0
        %v3007 = vadd.f32 0.0, %v3006
        %v3008 = vpop.f32.mrf.mxu0
        %3009 = vdwg.mxu0
        %3010 = vmatpush.bf16.msra.mxu0 %v2938
        %3011 = vmatpush.bf16.msra.mxu0 %v2934
        %3012 = vmatpush.bf16.msra.mxu0 %v2930
        %3013 = vmatpush.bf16.msra.mxu0 %v2926
        %3014 = vmatpush.bf16.msra.mxu0 %v2922
        %3015 = vmatpush.bf16.msra.mxu0 %v2918
        %3016 = vmatpush.bf16.msra.mxu0 %v2914
        %3017 = vmatpush.bf16.msra.mxu0 %v2910
        %3018 = vmatmul.bf16.gmra.mxu0 %v2778
        %v3019 = vpop.f32.mrf.mxu0
        %v3020 = vadd.f32 0.0, %v3019
        %v3021 = vpop.f32.mrf.mxu0
        %3022 = vdwg.mxu0
        %v3023 = vadd.f32 %v2774, %v2981
        %v3024 = vadd.f32 %v2775, %v2994
        %v3025 = vadd.f32 %v2776, %v3007
        %v3026 = vadd.f32 %v2777, %v3020
        %v3027 = vxor.u32 %v3023, 2147483648
        %v3028 = vmul.f32 %v3027, 1.442695
        %v3029 = vpow.pop %v3028
        %v3030 = vadd.f32 %v3029, 1.0
        %v3031 = vrcp.pop %v3030
        %v3032 = vmul.f32 %v3030, %v3031
        %v3033 = vsub.f32 1.0, %v3032
        %v3034 = vmul.f32 %v3031, %v3033
        %v3035 = vadd.f32 %v3031, %v3034
        %vm3036 = vweird.f32 %v3030
        %vm3037 = vweird.f32 %v3031
        %vm3038 = vmor %vm3036, %vm3037
        %v3039 = vsel %vm3038, %v3031, %v3035
        %v3040 = vand.u32 2147483647, %v3030
        %vm3041 = vcmp.eq.f32.partialorder %v3040, 8.507059e+37
        %v3042 = vand.u32 %v3030, 2147483648
        %v3043 = vor.u32 1.1754944e-38, %v3042
        %v3044 = vsel %vm3041, %v3043, %v3039
        %v3045 = vmul.f32 1.0, %v3044
        %v3046 = vxor.u32 %v3024, 2147483648
        %v3047 = vmul.f32 %v3046, 1.442695
        %v3048 = vpow.pop %v3047
        %v3049 = vadd.f32 %v3048, 1.0
        %v3050 = vrcp.pop %v3049
        %v3051 = vmul.f32 %v3049, %v3050
        %v3052 = vsub.f32 1.0, %v3051
        %v3053 = vmul.f32 %v3050, %v3052
        %v3054 = vadd.f32 %v3050, %v3053
        %vm3055 = vweird.f32 %v3049
        %vm3056 = vweird.f32 %v3050
        %vm3057 = vmor %vm3055, %vm3056
        %v3058 = vsel %vm3057, %v3050, %v3054
        %v3059 = vand.u32 2147483647, %v3049
        %vm3060 = vcmp.eq.f32.partialorder %v3059, 8.507059e+37
        %v3061 = vand.u32 %v3049, 2147483648
        %v3062 = vor.u32 1.1754944e-38, %v3061
        %v3063 = vsel %vm3060, %v3062, %v3058
        %v3064 = vmul.f32 1.0, %v3063
        %v3065 = vtanh.pop %v3025
        %v3066 = vxor.u32 %v3026, 2147483648
        %v3067 = vmul.f32 %v3066, 1.442695
        %v3068 = vpow.pop %v3067
        %v3069 = vadd.f32 %v3068, 1.0
        %v3070 = vrcp.pop %v3069
        %v3071 = vmul.f32 %v3069, %v3070
        %v3072 = vsub.f32 1.0, %v3071
        %v3073 = vmul.f32 %v3070, %v3072
        %v3074 = vadd.f32 %v3070, %v3073
        %vm3075 = vweird.f32 %v3069
        %vm3076 = vweird.f32 %v3070
        %vm3077 = vmor %vm3075, %vm3076
        %v3078 = vsel %vm3077, %v3070, %v3074
        %v3079 = vand.u32 2147483647, %v3069
        %vm3080 = vcmp.eq.f32.partialorder %v3079, 8.507059e+37
        %v3081 = vand.u32 %v3069, 2147483648
        %v3082 = vor.u32 1.1754944e-38, %v3081
        %v3083 = vsel %vm3080, %v3082, %v3078
        %v3084 = vmul.f32 1.0, %v3083
        %v3085 = vmul.f32 %v3064, %v2770
        %v3086 = vmul.f32 %v3045, %v3065
        %v3087 = vadd.f32 %v3085, %v3086
        %v3088 = vtanh.pop %v3087
        %v3089 = vmul.f32 %v3084, %v3088
        %3090 = vst [vmem:[%s1511] sm:$0xff] %v3089
        %v3091 = vld [vmem:[%s1515] sm:$0xff]
        %v3092 = vld [vmem:[%s1515 + $0x8] sm:$0xff]
        %v3093 = vld [vmem:[%s1515 + $0x10] sm:$0xff]
        %v3094 = vld [vmem:[%s1515 + $0x18] sm:$0xff]
        %v3095 = vpack.c.bf16 %v3089, %v3089
        %v3096 = vld [vmem:[#allocation12] sm:$0xff]
        %v3097 = vld [vmem:[#allocation12 + $0x8] sm:$0xff]
        %v3098 = vld [vmem:[#allocation12 + $0x10] sm:$0xff]
        %v3099 = vld [vmem:[#allocation12 + $0x18] sm:$0xff]
        %v3100 = vld [vmem:[#allocation12 + $0x20] sm:$0xff]
        %v3101 = vld [vmem:[#allocation12 + $0x28] sm:$0xff]
        %v3102 = vld [vmem:[#allocation12 + $0x30] sm:$0xff]
        %v3103 = vld [vmem:[#allocation12 + $0x38] sm:$0xff]
        %v3104 = vld [vmem:[#allocation12 + $0x40] sm:$0xff]
        %v3105 = vld [vmem:[#allocation12 + $0x48] sm:$0xff]
        %v3106 = vld [vmem:[#allocation12 + $0x50] sm:$0xff]
        %v3107 = vld [vmem:[#allocation12 + $0x58] sm:$0xff]
        %v3108 = vld [vmem:[#allocation12 + $0x60] sm:$0xff]
        %v3109 = vld [vmem:[#allocation12 + $0x68] sm:$0xff]
        %v3110 = vld [vmem:[#allocation12 + $0x70] sm:$0xff]
        %v3111 = vld [vmem:[#allocation12 + $0x78] sm:$0xff]
        %v3112 = vld [vmem:[#allocation12 + $0x80] sm:$0xff]
        %v3113 = vld [vmem:[#allocation12 + $0x88] sm:$0xff]
        %v3114 = vld [vmem:[#allocation12 + $0x90] sm:$0xff]
        %v3115 = vld [vmem:[#allocation12 + $0x98] sm:$0xff]
        %v3116 = vld [vmem:[#allocation12 + $0xa0] sm:$0xff]
        %v3117 = vld [vmem:[#allocation12 + $0xa8] sm:$0xff]
        %v3118 = vld [vmem:[#allocation12 + $0xb0] sm:$0xff]
        %v3119 = vld [vmem:[#allocation12 + $0xb8] sm:$0xff]
        %v3120 = vld [vmem:[#allocation12 + $0xc0] sm:$0xff]
        %v3121 = vld [vmem:[#allocation12 + $0xc8] sm:$0xff]
        %v3122 = vld [vmem:[#allocation12 + $0xd0] sm:$0xff]
        %v3123 = vld [vmem:[#allocation12 + $0xd8] sm:$0xff]
        %v3124 = vld [vmem:[#allocation12 + $0xe0] sm:$0xff]
        %v3125 = vld [vmem:[#allocation12 + $0xe8] sm:$0xff]
        %v3126 = vld [vmem:[#allocation12 + $0xf0] sm:$0xff]
        %v3127 = vld [vmem:[#allocation12 + $0xf8] sm:$0xff]
        %v3160 = vunpack.c.l.b16 %v3096
        %v3161 = vunpack.c.h.b16 %v3096
        %v3162 = vunpack.c.l.b16 %v3097
        %v3163 = vunpack.c.h.b16 %v3097
        %v3164 = vunpack.c.l.b16 %v3098
        %v3165 = vunpack.c.h.b16 %v3098
        %v3166 = vunpack.c.l.b16 %v3099
        %v3167 = vunpack.c.h.b16 %v3099
        %v3168 = vunpack.c.l.b16 %v3100
        %v3169 = vunpack.c.h.b16 %v3100
        %v3170 = vunpack.c.l.b16 %v3101
        %v3171 = vunpack.c.h.b16 %v3101
        %v3172 = vunpack.c.l.b16 %v3102
        %v3173 = vunpack.c.h.b16 %v3102
        %v3174 = vunpack.c.l.b16 %v3103
        %v3175 = vunpack.c.h.b16 %v3103
        %v3176 = vunpack.c.l.b16 %v3104
        %v3177 = vunpack.c.h.b16 %v3104
        %v3178 = vunpack.c.l.b16 %v3105
        %v3179 = vunpack.c.h.b16 %v3105
        %v3180 = vunpack.c.l.b16 %v3106
        %v3181 = vunpack.c.h.b16 %v3106
        %v3182 = vunpack.c.l.b16 %v3107
        %v3183 = vunpack.c.h.b16 %v3107
        %v3184 = vunpack.c.l.b16 %v3108
        %v3185 = vunpack.c.h.b16 %v3108
        %v3186 = vunpack.c.l.b16 %v3109
        %v3187 = vunpack.c.h.b16 %v3109
        %v3188 = vunpack.c.l.b16 %v3110
        %v3189 = vunpack.c.h.b16 %v3110
        %v3190 = vunpack.c.l.b16 %v3111
        %v3191 = vunpack.c.h.b16 %v3111
        %v3192 = vunpack.c.l.b16 %v3112
        %v3193 = vunpack.c.h.b16 %v3112
        %v3194 = vunpack.c.l.b16 %v3113
        %v3195 = vunpack.c.h.b16 %v3113
        %v3196 = vunpack.c.l.b16 %v3114
        %v3197 = vunpack.c.h.b16 %v3114
        %v3198 = vunpack.c.l.b16 %v3115
        %v3199 = vunpack.c.h.b16 %v3115
        %v3200 = vunpack.c.l.b16 %v3116
        %v3201 = vunpack.c.h.b16 %v3116
        %v3202 = vunpack.c.l.b16 %v3117
        %v3203 = vunpack.c.h.b16 %v3117
        %v3204 = vunpack.c.l.b16 %v3118
        %v3205 = vunpack.c.h.b16 %v3118
        %v3206 = vunpack.c.l.b16 %v3119
        %v3207 = vunpack.c.h.b16 %v3119
        %v3208 = vunpack.c.l.b16 %v3120
        %v3209 = vunpack.c.h.b16 %v3120
        %v3210 = vunpack.c.l.b16 %v3121
        %v3211 = vunpack.c.h.b16 %v3121
        %v3212 = vunpack.c.l.b16 %v3122
        %v3213 = vunpack.c.h.b16 %v3122
        %v3214 = vunpack.c.l.b16 %v3123
        %v3215 = vunpack.c.h.b16 %v3123
        %v3216 = vunpack.c.l.b16 %v3124
        %v3217 = vunpack.c.h.b16 %v3124
        %v3218 = vunpack.c.l.b16 %v3125
        %v3219 = vunpack.c.h.b16 %v3125
        %v3220 = vunpack.c.l.b16 %v3126
        %v3221 = vunpack.c.h.b16 %v3126
        %v3222 = vunpack.c.l.b16 %v3127
        %v3223 = vunpack.c.h.b16 %v3127
        %v3224 = vpack.c.b16 %v3164, %v3160
        %v3225 = vpack.c.b16 %v3165, %v3161
        %v3226 = vpack.c.b16 %v3166, %v3162
        %v3227 = vpack.c.b16 %v3167, %v3163
        %v3228 = vpack.c.b16 %v3172, %v3168
        %v3229 = vpack.c.b16 %v3173, %v3169
        %v3230 = vpack.c.b16 %v3174, %v3170
        %v3231 = vpack.c.b16 %v3175, %v3171
        %v3232 = vpack.c.b16 %v3180, %v3176
        %v3233 = vpack.c.b16 %v3181, %v3177
        %v3234 = vpack.c.b16 %v3182, %v3178
        %v3235 = vpack.c.b16 %v3183, %v3179
        %v3236 = vpack.c.b16 %v3188, %v3184
        %v3237 = vpack.c.b16 %v3189, %v3185
        %v3238 = vpack.c.b16 %v3190, %v3186
        %v3239 = vpack.c.b16 %v3191, %v3187
        %v3240 = vpack.c.b16 %v3196, %v3192
        %v3241 = vpack.c.b16 %v3197, %v3193
        %v3242 = vpack.c.b16 %v3198, %v3194
        %v3243 = vpack.c.b16 %v3199, %v3195
        %v3244 = vpack.c.b16 %v3204, %v3200
        %v3245 = vpack.c.b16 %v3205, %v3201
        %v3246 = vpack.c.b16 %v3206, %v3202
        %v3247 = vpack.c.b16 %v3207, %v3203
        %v3248 = vpack.c.b16 %v3212, %v3208
        %v3249 = vpack.c.b16 %v3213, %v3209
        %v3250 = vpack.c.b16 %v3214, %v3210
        %v3251 = vpack.c.b16 %v3215, %v3211
        %v3252 = vpack.c.b16 %v3220, %v3216
        %v3253 = vpack.c.b16 %v3221, %v3217
        %v3254 = vpack.c.b16 %v3222, %v3218
        %v3255 = vpack.c.b16 %v3223, %v3219
        %3288 = vmatpush.bf16.msra.mxu0 %v3252
        %3289 = vmatpush.bf16.msra.mxu0 %v3248
        %3290 = vmatpush.bf16.msra.mxu0 %v3244
        %3291 = vmatpush.bf16.msra.mxu0 %v3240
        %3292 = vmatpush.bf16.msra.mxu0 %v3236
        %3293 = vmatpush.bf16.msra.mxu0 %v3232
        %3294 = vmatpush.bf16.msra.mxu0 %v3228
        %3295 = vmatpush.bf16.msra.mxu0 %v3224
        %3296 = vmatmul.bf16.gmra.mxu0 %v3095
        %v3297 = vpop.f32.mrf.mxu0
        %v3298 = vadd.f32 0.0, %v3297
        %v3299 = vpop.f32.mrf.mxu0
        %3300 = vdwg.mxu0
        %3301 = vmatpush.bf16.msra.mxu0 %v3253
        %3302 = vmatpush.bf16.msra.mxu0 %v3249
        %3303 = vmatpush.bf16.msra.mxu0 %v3245
        %3304 = vmatpush.bf16.msra.mxu0 %v3241
        %3305 = vmatpush.bf16.msra.mxu0 %v3237
        %3306 = vmatpush.bf16.msra.mxu0 %v3233
        %3307 = vmatpush.bf16.msra.mxu0 %v3229
        %3308 = vmatpush.bf16.msra.mxu0 %v3225
        %3309 = vmatmul.bf16.gmra.mxu0 %v3095
        %v3310 = vpop.f32.mrf.mxu0
        %v3311 = vadd.f32 0.0, %v3310
        %v3312 = vpop.f32.mrf.mxu0
        %3313 = vdwg.mxu0
        %3314 = vmatpush.bf16.msra.mxu0 %v3254
        %3315 = vmatpush.bf16.msra.mxu0 %v3250
        %3316 = vmatpush.bf16.msra.mxu0 %v3246
        %3317 = vmatpush.bf16.msra.mxu0 %v3242
        %3318 = vmatpush.bf16.msra.mxu0 %v3238
        %3319 = vmatpush.bf16.msra.mxu0 %v3234
        %3320 = vmatpush.bf16.msra.mxu0 %v3230
        %3321 = vmatpush.bf16.msra.mxu0 %v3226
        %3322 = vmatmul.bf16.gmra.mxu0 %v3095
        %v3323 = vpop.f32.mrf.mxu0
        %v3324 = vadd.f32 0.0, %v3323
        %v3325 = vpop.f32.mrf.mxu0
        %3326 = vdwg.mxu0
        %3327 = vmatpush.bf16.msra.mxu0 %v3255
        %3328 = vmatpush.bf16.msra.mxu0 %v3251
        %3329 = vmatpush.bf16.msra.mxu0 %v3247
        %3330 = vmatpush.bf16.msra.mxu0 %v3243
        %3331 = vmatpush.bf16.msra.mxu0 %v3239
        %3332 = vmatpush.bf16.msra.mxu0 %v3235
        %3333 = vmatpush.bf16.msra.mxu0 %v3231
        %3334 = vmatpush.bf16.msra.mxu0 %v3227
        %3335 = vmatmul.bf16.gmra.mxu0 %v3095
        %v3336 = vpop.f32.mrf.mxu0
        %v3337 = vadd.f32 0.0, %v3336
        %v3338 = vpop.f32.mrf.mxu0
        %3339 = vdwg.mxu0
        %v3340 = vadd.f32 %v3091, %v3298
        %v3341 = vadd.f32 %v3092, %v3311
        %v3342 = vadd.f32 %v3093, %v3324
        %v3343 = vadd.f32 %v3094, %v3337
        %v3344 = vxor.u32 %v3340, 2147483648
        %v3345 = vmul.f32 %v3344, 1.442695
        %v3346 = vpow.pop %v3345
        %v3347 = vadd.f32 %v3346, 1.0
        %v3348 = vrcp.pop %v3347
        %v3349 = vmul.f32 %v3347, %v3348
        %v3350 = vsub.f32 1.0, %v3349
        %v3351 = vmul.f32 %v3348, %v3350
        %v3352 = vadd.f32 %v3348, %v3351
        %vm3353 = vweird.f32 %v3347
        %vm3354 = vweird.f32 %v3348
        %vm3355 = vmor %vm3353, %vm3354
        %v3356 = vsel %vm3355, %v3348, %v3352
        %v3357 = vand.u32 2147483647, %v3347
        %vm3358 = vcmp.eq.f32.partialorder %v3357, 8.507059e+37
        %v3359 = vand.u32 %v3347, 2147483648
        %v3360 = vor.u32 1.1754944e-38, %v3359
        %v3361 = vsel %vm3358, %v3360, %v3356
        %v3362 = vmul.f32 1.0, %v3361
        %v3363 = vxor.u32 %v3341, 2147483648
        %v3364 = vmul.f32 %v3363, 1.442695
        %v3365 = vpow.pop %v3364
        %v3366 = vadd.f32 %v3365, 1.0
        %v3367 = vrcp.pop %v3366
        %v3368 = vmul.f32 %v3366, %v3367
        %v3369 = vsub.f32 1.0, %v3368
        %v3370 = vmul.f32 %v3367, %v3369
        %v3371 = vadd.f32 %v3367, %v3370
        %vm3372 = vweird.f32 %v3366
        %vm3373 = vweird.f32 %v3367
        %vm3374 = vmor %vm3372, %vm3373
        %v3375 = vsel %vm3374, %v3367, %v3371
        %v3376 = vand.u32 2147483647, %v3366
        %vm3377 = vcmp.eq.f32.partialorder %v3376, 8.507059e+37
        %v3378 = vand.u32 %v3366, 2147483648
        %v3379 = vor.u32 1.1754944e-38, %v3378
        %v3380 = vsel %vm3377, %v3379, %v3375
        %v3381 = vmul.f32 1.0, %v3380
        %v3382 = vtanh.pop %v3342
        %v3383 = vxor.u32 %v3343, 2147483648
        %v3384 = vmul.f32 %v3383, 1.442695
        %v3385 = vpow.pop %v3384
        %v3386 = vadd.f32 %v3385, 1.0
        %v3387 = vrcp.pop %v3386
        %v3388 = vmul.f32 %v3386, %v3387
        %v3389 = vsub.f32 1.0, %v3388
        %v3390 = vmul.f32 %v3387, %v3389
        %v3391 = vadd.f32 %v3387, %v3390
        %vm3392 = vweird.f32 %v3386
        %vm3393 = vweird.f32 %v3387
        %vm3394 = vmor %vm3392, %vm3393
        %v3395 = vsel %vm3394, %v3387, %v3391
        %v3396 = vand.u32 2147483647, %v3386
        %vm3397 = vcmp.eq.f32.partialorder %v3396, 8.507059e+37
        %v3398 = vand.u32 %v3386, 2147483648
        %v3399 = vor.u32 1.1754944e-38, %v3398
        %v3400 = vsel %vm3397, %v3399, %v3395
        %v3401 = vmul.f32 1.0, %v3400
        %v3402 = vmul.f32 %v3381, %v3087
        %v3403 = vmul.f32 %v3362, %v3382
        %v3404 = vadd.f32 %v3402, %v3403
        %v3405 = vtanh.pop %v3404
        %v3406 = vmul.f32 %v3401, %v3405
        %3407 = vst [vmem:[%s1832] sm:$0xff] %v3406
        %3408 = vst [vmem:[%s2136] sm:$0xff] %v3406
        %3409 = vst [vmem:[%s2138] sm:$0xff] %v3404
        %v3410 = vld [vmem:[#allocation3] sm:$0xff]
        %v3411 = vld [vmem:[#allocation3 + $0x8] sm:$0xff]
        %v3412 = vld [vmem:[#allocation3 + $0x10] sm:$0xff]
        %v3413 = vld [vmem:[#allocation3 + $0x18] sm:$0xff]
        %v3414 = vpack.c.bf16 %v3411, %v3410
        %v3415 = vpack.c.bf16 %v3413, %v3412
        %v3416 = vld [vmem:[%s7] sm:$0xf]
        %v3417 = vld [vmem:[%s7 + $0x4] sm:$0xf]
        %v3418 = vld [vmem:[%s7 + $0x8] sm:$0xf]
        %v3419 = vld [vmem:[%s7 + $0xc] sm:$0xf]
        %v3420 = vld [vmem:[%s7 + $0x10] sm:$0xf]
        %v3421 = vld [vmem:[%s7 + $0x14] sm:$0xf]
        %v3422 = vld [vmem:[%s7 + $0x18] sm:$0xf]
        %v3423 = vld [vmem:[%s7 + $0x1c] sm:$0xf]
        %v3424 = vld [vmem:[%s7 + $0x20] sm:$0xf]
        %v3425 = vld [vmem:[%s7 + $0x24] sm:$0xf]
        %v3426 = vld [vmem:[%s7 + $0x28] sm:$0xf]
        %v3427 = vld [vmem:[%s7 + $0x2c] sm:$0xf]
        %v3428 = vld [vmem:[%s7 + $0x30] sm:$0xf]
        %v3429 = vld [vmem:[%s7 + $0x34] sm:$0xf]
        %v3430 = vld [vmem:[%s7 + $0x38] sm:$0xf]
        %v3431 = vld [vmem:[%s7 + $0x3c] sm:$0xf]
        %v3432 = vld [vmem:[%s8] sm:$0x1]
        %v3434 = vperm.slane %v3432, 0
        %v3452 = vunpack.c.l.b16 %v3416
        %v3453 = vunpack.c.l.b16 %v3417
        %v3454 = vunpack.c.l.b16 %v3418
        %v3455 = vunpack.c.l.b16 %v3419
        %v3456 = vunpack.c.l.b16 %v3420
        %v3457 = vunpack.c.l.b16 %v3421
        %v3458 = vunpack.c.l.b16 %v3422
        %v3459 = vunpack.c.l.b16 %v3423
        %v3460 = vunpack.c.l.b16 %v3424
        %v3461 = vunpack.c.l.b16 %v3425
        %v3462 = vunpack.c.l.b16 %v3426
        %v3463 = vunpack.c.l.b16 %v3427
        %v3464 = vunpack.c.l.b16 %v3428
        %v3465 = vunpack.c.l.b16 %v3429
        %v3466 = vunpack.c.l.b16 %v3430
        %v3467 = vunpack.c.l.b16 %v3431
        %v3468 = vpack.c.b16 %v3453, %v3452
        %v3469 = vpack.c.b16 %v3455, %v3454
        %v3470 = vpack.c.b16 %v3457, %v3456
        %v3471 = vpack.c.b16 %v3459, %v3458
        %v3472 = vpack.c.b16 %v3461, %v3460
        %v3473 = vpack.c.b16 %v3463, %v3462
        %v3474 = vpack.c.b16 %v3465, %v3464
        %v3475 = vpack.c.b16 %v3467, %v3466
        %3484 = vmatpush.bf16.msra.mxu0 %v3475
        %3485 = vmatpush.bf16.msra.mxu0 %v3474
        %3486 = vmatpush.bf16.msra.mxu0 %v3473
        %3487 = vmatpush.bf16.msra.mxu0 %v3472
        %3488 = vmatpush.bf16.msra.mxu0 %v3471
        %3489 = vmatpush.bf16.msra.mxu0 %v3470
        %3490 = vmatpush.bf16.msra.mxu0 %v3469
        %3491 = vmatpush.bf16.msra.mxu0 %v3468
        %3492 = vmatmul.bf16.gmra.mxu0 %v3414
        %v3493 = vpop.f32.mrf.mxu0
        %v3494 = vadd.f32 %v3434, %v3493
        %v3495 = vpop.f32.mrf.mxu0
        %v3496 = vadd.f32 %v3434, %v3495
        %3497 = vmatmul.bf16.gmra.mxu0 %v3415
        %v3498 = vpop.f32.mrf.mxu0
        %v3499 = vadd.f32 %v3434, %v3498
        %v3500 = vpop.f32.mrf.mxu0
        %v3501 = vadd.f32 %v3434, %v3500
        %3502 = vdwg.mxu0
        %3503 = vst [vmem:[%s393] sm:$0xff] %v3494
        %3504 = vst [vmem:[%s393 + $0x8] sm:$0xff] %v3496
        %3505 = vst [vmem:[%s393 + $0x10] sm:$0xff] %v3499
        %3506 = vst [vmem:[%s393 + $0x18] sm:$0xff] %v3501
        %s3507 = sand.u32 %s228, 1
        %s3508 = scalar_lea.sflag [#allocation8], %s3507
        %s3509 = sand.u32 %s228, 1
        %s3510 = smul.addr %s3509, 32
        %s3511 = scalar_lea.vmem [#allocation14], %s3510
        // Predicated region
        $region77: #{tpu_custom_call.1} parent=55 // pred_check
          %p3512 = pneg %p238
        $region78: #{tpu_custom_call.1} parent=55 // pred_check_branch
          %3514 = sbr.rel (%p3512) target = $region80
        $region79: #{tpu_custom_call.1} parent=55 // pred_region
          %s3515 = smul.u32 4, %s26
          %3517 = vsyncadd %s3508, 0
          %s3518 = smul.addr %s3515, 8
          %s3519 = scalar_lea.hbm %s9, %s3518
          %s3520 = sshll.u32 %s3511, 4
          %s3521 = int_to_ptr.vmem [resolvable:$true] %s3520
          %s3522 = sshll.u32 %s3519, 4
          %s3523 = int_to_ptr.hbm [resolvable:$true] %s3522
          %3528 = dma.vmem_to_hbm [thread:$0]  %s3521, 512, %s3523, %s3508, 128, 128, 8
        $region80: #{tpu_custom_call.1} parent=55 // pred_fallthru
          _
      $region56: #{tpu_custom_call.1} parent=5 // pred_fallthru
        _
      %p3529 = scmp.le.s32.totalorder 2, %s21
      // Predicated region
      $region81: #{tpu_custom_call.1} parent=5 // pred_check
        %p3530 = pneg %p3529
      $region82: #{tpu_custom_call.1} parent=5 // pred_check_branch
        %3532 = sbr.rel (%p3530) target = $region84
      $region83: #{tpu_custom_call.1} parent=5 // pred_region
        %s3533 = ssub.s32 %s21, 2
        // Predicated region
        $region85: #{tpu_custom_call.1} parent=83 // pred_check
          %p3534 = pneg %p244
        $region86: #{tpu_custom_call.1} parent=83 // pred_check_branch
          %3536 = sbr.rel (%p3534) target = $region88
        $region87: #{tpu_custom_call.1} parent=83 // pred_region
          %s3537 = sand.u32 %s229, 1
          %s3538 = scalar_lea.sflag [#allocation8], %s3537
          %s3539 = sand.u32 %s229, 1
          %s3540 = smul.addr %s3539, 32
          %s3541 = scalar_lea.vmem [#allocation14], %s3540
          %3543 = dma.done %s3538, 512
        $region88: #{tpu_custom_call.1} parent=83 // pred_fallthru
          _
      $region84: #{tpu_custom_call.1} parent=5 // pred_fallthru
        _
    $region6: #{tpu_custom_call.1} parent=1 // loop_footer
      %s25 = sadd.s32 1, %s21
    $region7: #{tpu_custom_call.1} parent=1 // loop_footer_branch
      %20 = sbr.rel target = $region3
    $region8: #{tpu_custom_call.1} parent=1 // loop_exit
      _
    %3544 = vsyncpa [#allocation7], 1
    %s3545 = scalar_lea.sflag [#allocation7], 1
    %3546 = vsyncpa %s3545, 1
    %3547 = vsyncpa [#allocation10], 1
    %3548 = vsyncpa [#allocation13], 1
    %3549 = vsyncpa [#allocation8], 1
    %s3550 = scalar_lea.sflag [#allocation8], 1
    %3551 = vsyncpa %s3550, 1

</llo_original>
